<compile_context>
chip_gen: v7x
topology: tpu7x:2x2x1
jax: 0.10.0
libtpu: 0.0.40
codegen_flags: <defaults>
</compile_context>

<pallas_src>
import functools

import jax
import jax.numpy as jnp
from jax.experimental import pallas as pl
from jax.experimental.pallas import tpu as pltpu


# ----------------------------------------------------------------------------
# Kernel: full encoder (all layers) in one invocation.
# ----------------------------------------------------------------------------
def _layer_norm(x, gamma, beta, eps=1e-5):
    mu = jnp.mean(x, axis=-1, keepdims=True)
    var = jnp.mean((x - mu) ** 2, axis=-1, keepdims=True)
    return (x - mu) * jax.lax.rsqrt(var + eps) * gamma + beta


def _transformer_kernel(x_ref, wqkv_ref, wo_ref, w1_ref, w2_ref, vecs_ref,
                        out_ref, *, nhead, num_layers):
    src = x_ref[...]                          # (S, E) f32, stays in vregs throughout
    S, E = src.shape
    F = w1_ref.shape[-1]
    dh = E // nhead

    for l in range(num_layers):               # static unroll; weights indexed by const l
        vecs = vecs_ref[l]                    # (8, Wmax): all 1-row params of this layer
        bqkv = vecs[0:1, :3 * E]              # (1, 3E)  (q part already pre-scaled)
        bo   = vecs[1:2, :E]
        b1   = vecs[2:3, :F]
        b2   = vecs[3:4, :E]
        g1   = vecs[4:5, :E]
        be1  = vecs[5:6, :E]
        g2   = vecs[6:7, :E]
        be2  = vecs[7:8, :E]

        # --- fused QKV projection: one (S,E)x(E,3E) MXU matmul (1/sqrt(dh) pre-folded) ---
        qkv = jnp.dot(src, wqkv_ref[l],
                      preferred_element_type=jnp.float32) + bqkv          # (S, 3E)

        # --- multi-head attention: per-head loop, accumulate through Wo slices ---
        attn = jnp.zeros((S, E), jnp.float32)
        for h in range(nhead):                # static; nhead is small
            qh = qkv[:, h * dh:(h + 1) * dh]                  # (S, dh)
            kh = qkv[:, E + h * dh:E + (h + 1) * dh]          # (S, dh)
            vh = qkv[:, 2 * E + h * dh:2 * E + (h + 1) * dh]  # (S, dh)
            s = jax.lax.dot_general(qh, kh, (((1,), (1,)), ((), ())),
                                    preferred_element_type=jnp.float32)   # (S, S)
            s = s - jnp.max(s, axis=-1, keepdims=True)
            p = jnp.exp(s)
            # reciprocal-multiply instead of an elementwise divide
            p = p * pl.reciprocal(jnp.sum(p, axis=-1, keepdims=True), approx=False)
            head = jnp.dot(p, vh, preferred_element_type=jnp.float32)     # (S, dh)
            # head -> output projection via Wo[l, h] (leading-axis index, no lane concat)
            attn = attn + jnp.dot(head, wo_ref[l, h],
                                  preferred_element_type=jnp.float32)     # (S, E)
        attn = attn + bo

        # dropout(p=0.1) is identity in eval mode
        src = _layer_norm(src + attn, g1, be1)

        # --- feed-forward (relu) ---
        ff = jnp.dot(src, w1_ref[l], preferred_element_type=jnp.float32) + b1
        ff = jnp.maximum(ff, 0.0)
        ff = jnp.dot(ff, w2_ref[l], preferred_element_type=jnp.float32) + b2
        src = _layer_norm(src + ff, g2, be2)

    out_ref[...] = src                         # single store at the end


# ----------------------------------------------------------------------------
# Host-side parameter repacking.
# ----------------------------------------------------------------------------
def pack_params(params, *, nhead):
    """Repack per-layer params for the kernel:
       - fuse wq|wk|wv -> (L, E, 3E) with 1/sqrt(dh) folded into the q block
       - reshape wo -> (L, nhead, dh, E) for per-head accumulation
       - pack all eight 1-row vector params into one (L, 8, Wmax) array."""
    (wq, wk, wv, bq, bk, bv, wo, bo, w1, b1, w2, b2, g1, be1, g2, be2) = params
    L, E, _ = wq.shape
    F = w1.shape[-1]
    dh = E // nhead
    scale = jnp.float32(1.0 / float(dh) ** 0.5)

    wqkv = jnp.concatenate([wq * scale, wk, wv], axis=-1)        # (L, E, 3E)
    wo_h = wo.reshape(L, nhead, dh, E)                           # (L, H, dh, E)

    wmax = max(3 * E, F)

    def row(v):                                                  # (L, 1, w) -> (L, 1, Wmax)
        return jnp.pad(v, ((0, 0), (0, 0), (0, wmax - v.shape[-1])))

    bqkv = jnp.concatenate([bq * scale, bk, bv], axis=-1)        # (L, 1, 3E)
    vecs = jnp.concatenate(
        [row(bqkv), row(bo), row(b1), row(b2),
         row(g1), row(be1), row(g2), row(be2)], axis=1)          # (L, 8, Wmax)

    return (wqkv, wo_h, w1, w2, vecs)


def transformer_encoder_pallas(x2d, packed_params, *, nhead, num_layers):
    S, E = x2d.shape
    n_inputs = 1 + len(packed_params)
    kernel = functools.partial(_transformer_kernel, nhead=nhead, num_layers=num_layers)
    # No grid: single invocation, everything (activations + all layer weights)
    # resident in VMEM (< 100 KB total, far under the scoped VMEM limits).
    return pl.pallas_call(
        kernel,
        out_shape=jax.ShapeDtypeStruct((S, E), jnp.float32),
        in_specs=[pl.BlockSpec(memory_space=pltpu.MemorySpace.VMEM)] * n_inputs,
        out_specs=pl.BlockSpec(memory_space=pltpu.MemorySpace.VMEM),
    )(x2d, *packed_params)


# ----------------------------------------------------------------------------
# Pure-JAX reference (same eval-mode math, using the ORIGINAL unfused params so it
# also validates the host-side repacking / scale folding).
# ----------------------------------------------------------------------------
def reference_encoder(x2d, params, *, nhead, num_layers):
    (wq, wk, wv, bq, bk, bv, wo, bo, w1, b1, w2, b2, g1, be1, g2, be2) = params
    src = x2d
    E = src.shape[-1]
    dh = E // nhead
    for l in range(num_layers):
        q = src @ wq[l] + bq[l]
        k = src @ wk[l] + bk[l]
        v = src @ wv[l] + bv[l]
        outs = []
        for h in range(nhead):
            qh = q[:, h * dh:(h + 1) * dh] / jnp.sqrt(jnp.float32(dh))
            kh = k[:, h * dh:(h + 1) * dh]
            vh = v[:, h * dh:(h + 1) * dh]
            s = qh @ kh.T
            p = jax.nn.softmax(s, axis=-1)
            outs.append(p @ vh)
        attn = jnp.concatenate(outs, axis=-1) @ wo[l] + bo[l]
        src = _layer_norm(src + attn, g1[l], be1[l])
        ff = jnp.maximum(src @ w1[l] + b1[l], 0.0) @ w2[l] + b2[l]
        src = _layer_norm(src + ff, g2[l], be2[l])
    return src


# ----------------------------------------------------------------------------
# Deterministic parameter construction + module forward glue.
# ----------------------------------------------------------------------------
def make_params(key, num_layers, d_model, dim_feedforward):
    ks = jax.random.split(key, 8 * num_layers)
    wq, wk, wv = [], [], []
    bq, bk, bv = [], [], []
    wo, bo, w1, b1, w2, b2 = [], [], [], [], [], []
    g1, be1, g2, be2 = [], [], [], []
    E, F = d_model, dim_feedforward
    for l in range(num_layers):
        k0, k1, k2, k3, k4, k5, k6, k7 = ks[8 * l:8 * (l + 1)]
        wq.append(0.05 * jax.random.normal(k0, (E, E), jnp.float32))
        wk.append(0.05 * jax.random.normal(k1, (E, E), jnp.float32))
        wv.append(0.05 * jax.random.normal(k2, (E, E), jnp.float32))
        wo.append(0.05 * jax.random.normal(k3, (E, E), jnp.float32))
        w1.append(0.05 * jax.random.normal(k4, (E, F), jnp.float32))
        w2.append(0.05 * jax.random.normal(k5, (F, E), jnp.float32))
        bq.append(0.01 * jax.random.normal(k6, (1, E), jnp.float32))
        bk.append(jnp.zeros((1, E), jnp.float32))
        bv.append(0.01 * jax.random.normal(k7, (1, E), jnp.float32))
        bo.append(jnp.zeros((1, E), jnp.float32))
        b1.append(jnp.zeros((1, F), jnp.float32))
        b2.append(jnp.zeros((1, E), jnp.float32))
        g1.append(jnp.ones((1, E), jnp.float32))
        be1.append(jnp.zeros((1, E), jnp.float32))
        g2.append(jnp.ones((1, E), jnp.float32))
        be2.append(jnp.zeros((1, E), jnp.float32))
    stack = lambda xs: jnp.stack(xs, axis=0)
    return tuple(stack(p) for p in
                 (wq, wk, wv, bq, bk, bv, wo, bo, w1, b1, w2, b2, g1, be1, g2, be2))


def transformer_forward(x, cls_emb, pos_emb, packed_params, *, ways, shot,
                        nhead, num_layers):
    """x: (ways*shot, d_model) support features.  Returns (S, 1, d_model)."""
    n_arng = jnp.arange(ways)
    cls_tokens = cls_emb[n_arng]                                   # (ways, D)
    cls_sup = jnp.concatenate([cls_tokens, x], axis=0)             # (S, D)
    pos_idx = jnp.concatenate([n_arng, jnp.repeat(n_arng, shot)])  # (S,)
    pos_tokens = pos_emb[pos_idx]                                  # (S, D)
    transformer_input = cls_sup + pos_tokens                       # (S, D)
    out2d = transformer_encoder_pallas(transformer_input, packed_params,
                                       nhead=nhead, num_layers=num_layers)
    return out2d[:, None, :]                                       # (S, 1, D)


if __name__ == "__main__":
    # Small config consistent with the module's forward pass (eval / 'test' split).
    ways = {"train": 4, "test": 4}
    shot = {"train": 2, "test": 2}
    num_layers = 2
    nhead = 4
    d_model = 32
    dim_feedforward = 32   # must equal d_model for the concat in forward() to typecheck

    W, K = ways["test"], shot["test"]
    S = W + W * K

    key = jax.random.PRNGKey(0)
    k_x, k_cls, k_pos, k_enc = jax.random.split(key, 4)

    x = jax.random.normal(k_x, (W * K, d_model), jnp.float32)       # support features
    cls_emb = jax.random.normal(k_cls, (max(ways.values()), dim_feedforward), jnp.float32)
    pos_emb = jax.random.normal(k_pos, (max(ways.values()), dim_feedforward), jnp.float32)
    enc_params = make_params(k_enc, num_layers, d_model, dim_feedforward)
    packed = pack_params(enc_params, nhead=nhead)

    fwd = jax.jit(functools.partial(transformer_forward, ways=W, shot=K,
                                    nhead=nhead, num_layers=num_layers))
    out = fwd(x, cls_emb, pos_emb, packed)
    out = jax.block_until_ready(out)

    # Verify against a pure-JAX reference of the same eval-mode math (unfused params).
    n_arng = jnp.arange(W)
    inp = (jnp.concatenate([cls_emb[n_arng], x], axis=0)
           + pos_emb[jnp.concatenate([n_arng, jnp.repeat(n_arng, K)])])
    ref = reference_encoder(inp, enc_params, nhead=nhead, num_layers=num_layers)[:, None, :]

    assert out.shape == (S, 1, d_model)
    assert jnp.allclose(out, ref, rtol=1e-4, atol=1e-4), "mismatch vs reference"
    # TODO(synk): training-mode dropout (p=0.1) is not implemented; kernel reproduces eval semantics.
    print("KERNEL_OK")
</pallas_src>

<mosaic_0001>
module attributes {stable_mosaic.version = 11 : i64} {
  func.func @_transformer_kernel(%arg0: memref<12x32xf32, #tpu.memory_space<vmem>>, %arg1: memref<2x32x96xf32, #tpu.memory_space<vmem>>, %arg2: memref<2x4x8x32xf32, #tpu.memory_space<vmem>>, %arg3: memref<2x32x32xf32, #tpu.memory_space<vmem>>, %arg4: memref<2x32x32xf32, #tpu.memory_space<vmem>>, %arg5: memref<2x8x96xf32, #tpu.memory_space<vmem>>, %arg6: memref<12x32xf32, #tpu.memory_space<vmem>>) attributes {dimension_semantics = [], scalar_prefetch = 0 : i64, scratch_operands = 0 : i64, tpu.core_type = #tpu.core_type<tc>} {
    %c0 = arith.constant 0 : index
    %c0_0 = arith.constant 0 : index
    %0 = vector.load %arg0[%c0, %c0_0] : memref<12x32xf32, #tpu.memory_space<vmem>>, vector<12x32xf32>
    %c0_1 = arith.constant 0 : index
    %c0_2 = arith.constant 0 : index
    %c0_3 = arith.constant 0 : index
    %1 = vector.load %arg5[%c0_1, %c0_2, %c0_3] : memref<2x8x96xf32, #tpu.memory_space<vmem>>, vector<1x8x96xf32>
    %2 = vector.shape_cast %1 : vector<1x8x96xf32> to vector<8x96xf32>
    %3 = vector.extract_strided_slice %2 {offsets = [0, 0], sizes = [1, 96], strides = [1, 1]} : vector<8x96xf32> to vector<1x96xf32>
    %4 = vector.extract_strided_slice %2 {offsets = [1, 0], sizes = [1, 32], strides = [1, 1]} : vector<8x96xf32> to vector<1x32xf32>
    %5 = vector.extract_strided_slice %2 {offsets = [2, 0], sizes = [1, 32], strides = [1, 1]} : vector<8x96xf32> to vector<1x32xf32>
    %6 = vector.extract_strided_slice %2 {offsets = [3, 0], sizes = [1, 32], strides = [1, 1]} : vector<8x96xf32> to vector<1x32xf32>
    %7 = vector.extract_strided_slice %2 {offsets = [4, 0], sizes = [1, 32], strides = [1, 1]} : vector<8x96xf32> to vector<1x32xf32>
    %8 = vector.extract_strided_slice %2 {offsets = [5, 0], sizes = [1, 32], strides = [1, 1]} : vector<8x96xf32> to vector<1x32xf32>
    %9 = vector.extract_strided_slice %2 {offsets = [6, 0], sizes = [1, 32], strides = [1, 1]} : vector<8x96xf32> to vector<1x32xf32>
    %10 = vector.extract_strided_slice %2 {offsets = [7, 0], sizes = [1, 32], strides = [1, 1]} : vector<8x96xf32> to vector<1x32xf32>
    %c0_4 = arith.constant 0 : index
    %c0_5 = arith.constant 0 : index
    %c0_6 = arith.constant 0 : index
    %11 = vector.load %arg1[%c0_4, %c0_5, %c0_6] : memref<2x32x96xf32, #tpu.memory_space<vmem>>, vector<1x32x96xf32>
    %12 = vector.shape_cast %11 : vector<1x32x96xf32> to vector<32x96xf32>
    %cst = arith.constant dense<0.000000e+00> : vector<12x96xf32>
    %13 = tpu.matmul %0, %12, %cst {dimension_numbers = #tpu.dot_dimension_numbers<[1], [0], [0], [1], [0, 0, 1, 1], [], []>} : vector<12x32xf32>, vector<32x96xf32>, vector<12x96xf32> -> vector<12x96xf32>
    %14 = vector.broadcast %3 : vector<1x96xf32> to vector<12x96xf32>
    %15 = arith.addf %13, %14 : vector<12x96xf32>
    %cst_7 = arith.constant 0.000000e+00 : f32
    %16 = vector.broadcast %cst_7 : f32 to vector<12x32xf32>
    %17 = vector.extract_strided_slice %15 {offsets = [0, 0], sizes = [12, 8], strides = [1, 1]} : vector<12x96xf32> to vector<12x8xf32>
    %18 = vector.extract_strided_slice %15 {offsets = [0, 32], sizes = [12, 8], strides = [1, 1]} : vector<12x96xf32> to vector<12x8xf32>
    %19 = vector.extract_strided_slice %15 {offsets = [0, 64], sizes = [12, 8], strides = [1, 1]} : vector<12x96xf32> to vector<12x8xf32>
    %cst_8 = arith.constant dense<0.000000e+00> : vector<12x12xf32>
    %20 = tpu.matmul %17, %18, %cst_8 {dimension_numbers = #tpu.dot_dimension_numbers<[1], [1], [0], [0], [0, 0, 1, 0], [], []>} : vector<12x8xf32>, vector<12x8xf32>, vector<12x12xf32> -> vector<12x12xf32>
    %cst_9 = arith.constant dense<0xFF800000> : vector<12xf32>
    %21 = vector.multi_reduction <maximumf>, %20, %cst_9 [1] : vector<12x12xf32> to vector<12xf32>
    %22 = vector.shape_cast %21 : vector<12xf32> to vector<12x1xf32>
    %23 = vector.broadcast %22 : vector<12x1xf32> to vector<12x12xf32>
    %24 = arith.subf %20, %23 : vector<12x12xf32>
    %25 = math.exp %24 : vector<12x12xf32>
    %cst_10 = arith.constant dense<0.000000e+00> : vector<12xf32>
    %26 = vector.multi_reduction <add>, %25, %cst_10 [1] : vector<12x12xf32> to vector<12xf32>
    %27 = vector.shape_cast %26 : vector<12xf32> to vector<12x1xf32>
    %28 = tpu.reciprocal %27 : vector<12x1xf32> -> vector<12x1xf32>
    %29 = vector.broadcast %28 : vector<12x1xf32> to vector<12x12xf32>
    %30 = arith.mulf %25, %29 : vector<12x12xf32>
    %cst_11 = arith.constant dense<0.000000e+00> : vector<12x8xf32>
    %31 = tpu.matmul %30, %19, %cst_11 {dimension_numbers = #tpu.dot_dimension_numbers<[1], [0], [0], [1], [0, 0, 1, 1], [], []>} : vector<12x12xf32>, vector<12x8xf32>, vector<12x8xf32> -> vector<12x8xf32>
    %c0_12 = arith.constant 0 : index
    %c0_13 = arith.constant 0 : index
    %c0_14 = arith.constant 0 : index
    %c0_15 = arith.constant 0 : index
    %32 = vector.load %arg2[%c0_12, %c0_13, %c0_14, %c0_15] : memref<2x4x8x32xf32, #tpu.memory_space<vmem>>, vector<1x1x8x32xf32>
    %33 = vector.shape_cast %32 : vector<1x1x8x32xf32> to vector<8x32xf32>
    %cst_16 = arith.constant dense<0.000000e+00> : vector<12x32xf32>
    %34 = tpu.matmul %31, %33, %cst_16 {dimension_numbers = #tpu.dot_dimension_numbers<[1], [0], [0], [1], [0, 0, 1, 1], [], []>} : vector<12x8xf32>, vector<8x32xf32>, vector<12x32xf32> -> vector<12x32xf32>
    %35 = arith.addf %16, %34 : vector<12x32xf32>
    %36 = vector.extract_strided_slice %15 {offsets = [0, 8], sizes = [12, 8], strides = [1, 1]} : vector<12x96xf32> to vector<12x8xf32>
    %37 = vector.extract_strided_slice %15 {offsets = [0, 40], sizes = [12, 8], strides = [1, 1]} : vector<12x96xf32> to vector<12x8xf32>
    %38 = vector.extract_strided_slice %15 {offsets = [0, 72], sizes = [12, 8], strides = [1, 1]} : vector<12x96xf32> to vector<12x8xf32>
    %cst_17 = arith.constant dense<0.000000e+00> : vector<12x12xf32>
    %39 = tpu.matmul %36, %37, %cst_17 {dimension_numbers = #tpu.dot_dimension_numbers<[1], [1], [0], [0], [0, 0, 1, 0], [], []>} : vector<12x8xf32>, vector<12x8xf32>, vector<12x12xf32> -> vector<12x12xf32>
    %cst_18 = arith.constant dense<0xFF800000> : vector<12xf32>
    %40 = vector.multi_reduction <maximumf>, %39, %cst_18 [1] : vector<12x12xf32> to vector<12xf32>
    %41 = vector.shape_cast %40 : vector<12xf32> to vector<12x1xf32>
    %42 = vector.broadcast %41 : vector<12x1xf32> to vector<12x12xf32>
    %43 = arith.subf %39, %42 : vector<12x12xf32>
    %44 = math.exp %43 : vector<12x12xf32>
    %cst_19 = arith.constant dense<0.000000e+00> : vector<12xf32>
    %45 = vector.multi_reduction <add>, %44, %cst_19 [1] : vector<12x12xf32> to vector<12xf32>
    %46 = vector.shape_cast %45 : vector<12xf32> to vector<12x1xf32>
    %47 = tpu.reciprocal %46 : vector<12x1xf32> -> vector<12x1xf32>
    %48 = vector.broadcast %47 : vector<12x1xf32> to vector<12x12xf32>
    %49 = arith.mulf %44, %48 : vector<12x12xf32>
    %cst_20 = arith.constant dense<0.000000e+00> : vector<12x8xf32>
    %50 = tpu.matmul %49, %38, %cst_20 {dimension_numbers = #tpu.dot_dimension_numbers<[1], [0], [0], [1], [0, 0, 1, 1], [], []>} : vector<12x12xf32>, vector<12x8xf32>, vector<12x8xf32> -> vector<12x8xf32>
    %c0_21 = arith.constant 0 : index
    %c1 = arith.constant 1 : index
    %c0_22 = arith.constant 0 : index
    %c0_23 = arith.constant 0 : index
    %51 = vector.load %arg2[%c0_21, %c1, %c0_22, %c0_23] : memref<2x4x8x32xf32, #tpu.memory_space<vmem>>, vector<1x1x8x32xf32>
    %52 = vector.shape_cast %51 : vector<1x1x8x32xf32> to vector<8x32xf32>
    %cst_24 = arith.constant dense<0.000000e+00> : vector<12x32xf32>
    %53 = tpu.matmul %50, %52, %cst_24 {dimension_numbers = #tpu.dot_dimension_numbers<[1], [0], [0], [1], [0, 0, 1, 1], [], []>} : vector<12x8xf32>, vector<8x32xf32>, vector<12x32xf32> -> vector<12x32xf32>
    %54 = arith.addf %35, %53 : vector<12x32xf32>
    %55 = vector.extract_strided_slice %15 {offsets = [0, 16], sizes = [12, 8], strides = [1, 1]} : vector<12x96xf32> to vector<12x8xf32>
    %56 = vector.extract_strided_slice %15 {offsets = [0, 48], sizes = [12, 8], strides = [1, 1]} : vector<12x96xf32> to vector<12x8xf32>
    %57 = vector.extract_strided_slice %15 {offsets = [0, 80], sizes = [12, 8], strides = [1, 1]} : vector<12x96xf32> to vector<12x8xf32>
    %cst_25 = arith.constant dense<0.000000e+00> : vector<12x12xf32>
    %58 = tpu.matmul %55, %56, %cst_25 {dimension_numbers = #tpu.dot_dimension_numbers<[1], [1], [0], [0], [0, 0, 1, 0], [], []>} : vector<12x8xf32>, vector<12x8xf32>, vector<12x12xf32> -> vector<12x12xf32>
    %cst_26 = arith.constant dense<0xFF800000> : vector<12xf32>
    %59 = vector.multi_reduction <maximumf>, %58, %cst_26 [1] : vector<12x12xf32> to vector<12xf32>
    %60 = vector.shape_cast %59 : vector<12xf32> to vector<12x1xf32>
    %61 = vector.broadcast %60 : vector<12x1xf32> to vector<12x12xf32>
    %62 = arith.subf %58, %61 : vector<12x12xf32>
    %63 = math.exp %62 : vector<12x12xf32>
    %cst_27 = arith.constant dense<0.000000e+00> : vector<12xf32>
    %64 = vector.multi_reduction <add>, %63, %cst_27 [1] : vector<12x12xf32> to vector<12xf32>
    %65 = vector.shape_cast %64 : vector<12xf32> to vector<12x1xf32>
    %66 = tpu.reciprocal %65 : vector<12x1xf32> -> vector<12x1xf32>
    %67 = vector.broadcast %66 : vector<12x1xf32> to vector<12x12xf32>
    %68 = arith.mulf %63, %67 : vector<12x12xf32>
    %cst_28 = arith.constant dense<0.000000e+00> : vector<12x8xf32>
    %69 = tpu.matmul %68, %57, %cst_28 {dimension_numbers = #tpu.dot_dimension_numbers<[1], [0], [0], [1], [0, 0, 1, 1], [], []>} : vector<12x12xf32>, vector<12x8xf32>, vector<12x8xf32> -> vector<12x8xf32>
    %c0_29 = arith.constant 0 : index
    %c2 = arith.constant 2 : index
    %c0_30 = arith.constant 0 : index
    %c0_31 = arith.constant 0 : index
    %70 = vector.load %arg2[%c0_29, %c2, %c0_30, %c0_31] : memref<2x4x8x32xf32, #tpu.memory_space<vmem>>, vector<1x1x8x32xf32>
    %71 = vector.shape_cast %70 : vector<1x1x8x32xf32> to vector<8x32xf32>
    %cst_32 = arith.constant dense<0.000000e+00> : vector<12x32xf32>
    %72 = tpu.matmul %69, %71, %cst_32 {dimension_numbers = #tpu.dot_dimension_numbers<[1], [0], [0], [1], [0, 0, 1, 1], [], []>} : vector<12x8xf32>, vector<8x32xf32>, vector<12x32xf32> -> vector<12x32xf32>
    %73 = arith.addf %54, %72 : vector<12x32xf32>
    %74 = vector.extract_strided_slice %15 {offsets = [0, 24], sizes = [12, 8], strides = [1, 1]} : vector<12x96xf32> to vector<12x8xf32>
    %75 = vector.extract_strided_slice %15 {offsets = [0, 56], sizes = [12, 8], strides = [1, 1]} : vector<12x96xf32> to vector<12x8xf32>
    %76 = vector.extract_strided_slice %15 {offsets = [0, 88], sizes = [12, 8], strides = [1, 1]} : vector<12x96xf32> to vector<12x8xf32>
    %cst_33 = arith.constant dense<0.000000e+00> : vector<12x12xf32>
    %77 = tpu.matmul %74, %75, %cst_33 {dimension_numbers = #tpu.dot_dimension_numbers<[1], [1], [0], [0], [0, 0, 1, 0], [], []>} : vector<12x8xf32>, vector<12x8xf32>, vector<12x12xf32> -> vector<12x12xf32>
    %cst_34 = arith.constant dense<0xFF800000> : vector<12xf32>
    %78 = vector.multi_reduction <maximumf>, %77, %cst_34 [1] : vector<12x12xf32> to vector<12xf32>
    %79 = vector.shape_cast %78 : vector<12xf32> to vector<12x1xf32>
    %80 = vector.broadcast %79 : vector<12x1xf32> to vector<12x12xf32>
    %81 = arith.subf %77, %80 : vector<12x12xf32>
    %82 = math.exp %81 : vector<12x12xf32>
    %cst_35 = arith.constant dense<0.000000e+00> : vector<12xf32>
    %83 = vector.multi_reduction <add>, %82, %cst_35 [1] : vector<12x12xf32> to vector<12xf32>
    %84 = vector.shape_cast %83 : vector<12xf32> to vector<12x1xf32>
    %85 = tpu.reciprocal %84 : vector<12x1xf32> -> vector<12x1xf32>
    %86 = vector.broadcast %85 : vector<12x1xf32> to vector<12x12xf32>
    %87 = arith.mulf %82, %86 : vector<12x12xf32>
    %cst_36 = arith.constant dense<0.000000e+00> : vector<12x8xf32>
    %88 = tpu.matmul %87, %76, %cst_36 {dimension_numbers = #tpu.dot_dimension_numbers<[1], [0], [0], [1], [0, 0, 1, 1], [], []>} : vector<12x12xf32>, vector<12x8xf32>, vector<12x8xf32> -> vector<12x8xf32>
    %c0_37 = arith.constant 0 : index
    %c3 = arith.constant 3 : index
    %c0_38 = arith.constant 0 : index
    %c0_39 = arith.constant 0 : index
    %89 = vector.load %arg2[%c0_37, %c3, %c0_38, %c0_39] : memref<2x4x8x32xf32, #tpu.memory_space<vmem>>, vector<1x1x8x32xf32>
    %90 = vector.shape_cast %89 : vector<1x1x8x32xf32> to vector<8x32xf32>
    %cst_40 = arith.constant dense<0.000000e+00> : vector<12x32xf32>
    %91 = tpu.matmul %88, %90, %cst_40 {dimension_numbers = #tpu.dot_dimension_numbers<[1], [0], [0], [1], [0, 0, 1, 1], [], []>} : vector<12x8xf32>, vector<8x32xf32>, vector<12x32xf32> -> vector<12x32xf32>
    %92 = arith.addf %73, %91 : vector<12x32xf32>
    %93 = vector.broadcast %4 : vector<1x32xf32> to vector<12x32xf32>
    %94 = arith.addf %92, %93 : vector<12x32xf32>
    %95 = arith.addf %0, %94 : vector<12x32xf32>
    %cst_41 = arith.constant dense<0.000000e+00> : vector<12xf32>
    %96 = vector.multi_reduction <add>, %95, %cst_41 [1] : vector<12x32xf32> to vector<12xf32>
    %97 = vector.shape_cast %96 : vector<12xf32> to vector<12x1xf32>
    %cst_42 = arith.constant 3.200000e+01 : f32
    %98 = vector.broadcast %cst_42 : f32 to vector<12x1xf32>
    %99 = arith.divf %97, %98 : vector<12x1xf32>
    %100 = vector.broadcast %99 : vector<12x1xf32> to vector<12x32xf32>
    %101 = arith.subf %95, %100 : vector<12x32xf32>
    %102 = arith.mulf %101, %101 : vector<12x32xf32>
    %cst_43 = arith.constant dense<0.000000e+00> : vector<12xf32>
    %103 = vector.multi_reduction <add>, %102, %cst_43 [1] : vector<12x32xf32> to vector<12xf32>
    %104 = vector.shape_cast %103 : vector<12xf32> to vector<12x1xf32>
    %cst_44 = arith.constant 3.200000e+01 : f32
    %105 = vector.broadcast %cst_44 : f32 to vector<12x1xf32>
    %106 = arith.divf %104, %105 : vector<12x1xf32>
    %107 = vector.broadcast %99 : vector<12x1xf32> to vector<12x32xf32>
    %108 = arith.subf %95, %107 : vector<12x32xf32>
    %cst_45 = arith.constant 9.99999974E-6 : f32
    %109 = vector.broadcast %cst_45 : f32 to vector<12x1xf32>
    %110 = arith.addf %106, %109 : vector<12x1xf32>
    %111 = math.rsqrt %110 : vector<12x1xf32>
    %112 = vector.broadcast %111 : vector<12x1xf32> to vector<12x32xf32>
    %113 = arith.mulf %108, %112 : vector<12x32xf32>
    %114 = vector.broadcast %7 : vector<1x32xf32> to vector<12x32xf32>
    %115 = arith.mulf %113, %114 : vector<12x32xf32>
    %116 = vector.broadcast %8 : vector<1x32xf32> to vector<12x32xf32>
    %117 = arith.addf %115, %116 : vector<12x32xf32>
    %c0_46 = arith.constant 0 : index
    %c0_47 = arith.constant 0 : index
    %c0_48 = arith.constant 0 : index
    %118 = vector.load %arg3[%c0_46, %c0_47, %c0_48] : memref<2x32x32xf32, #tpu.memory_space<vmem>>, vector<1x32x32xf32>
    %119 = vector.shape_cast %118 : vector<1x32x32xf32> to vector<32x32xf32>
    %cst_49 = arith.constant dense<0.000000e+00> : vector<12x32xf32>
    %120 = tpu.matmul %117, %119, %cst_49 {dimension_numbers = #tpu.dot_dimension_numbers<[1], [0], [0], [1], [0, 0, 1, 1], [], []>} : vector<12x32xf32>, vector<32x32xf32>, vector<12x32xf32> -> vector<12x32xf32>
    %121 = vector.broadcast %5 : vector<1x32xf32> to vector<12x32xf32>
    %122 = arith.addf %120, %121 : vector<12x32xf32>
    %cst_50 = arith.constant 0.000000e+00 : f32
    %123 = vector.broadcast %cst_50 : f32 to vector<12x32xf32>
    %124 = arith.maximumf %122, %123 : vector<12x32xf32>
    %c0_51 = arith.constant 0 : index
    %c0_52 = arith.constant 0 : index
    %c0_53 = arith.constant 0 : index
    %125 = vector.load %arg4[%c0_51, %c0_52, %c0_53] : memref<2x32x32xf32, #tpu.memory_space<vmem>>, vector<1x32x32xf32>
    %126 = vector.shape_cast %125 : vector<1x32x32xf32> to vector<32x32xf32>
    %cst_54 = arith.constant dense<0.000000e+00> : vector<12x32xf32>
    %127 = tpu.matmul %124, %126, %cst_54 {dimension_numbers = #tpu.dot_dimension_numbers<[1], [0], [0], [1], [0, 0, 1, 1], [], []>} : vector<12x32xf32>, vector<32x32xf32>, vector<12x32xf32> -> vector<12x32xf32>
    %128 = vector.broadcast %6 : vector<1x32xf32> to vector<12x32xf32>
    %129 = arith.addf %127, %128 : vector<12x32xf32>
    %130 = arith.addf %117, %129 : vector<12x32xf32>
    %cst_55 = arith.constant dense<0.000000e+00> : vector<12xf32>
    %131 = vector.multi_reduction <add>, %130, %cst_55 [1] : vector<12x32xf32> to vector<12xf32>
    %132 = vector.shape_cast %131 : vector<12xf32> to vector<12x1xf32>
    %cst_56 = arith.constant 3.200000e+01 : f32
    %133 = vector.broadcast %cst_56 : f32 to vector<12x1xf32>
    %134 = arith.divf %132, %133 : vector<12x1xf32>
    %135 = vector.broadcast %134 : vector<12x1xf32> to vector<12x32xf32>
    %136 = arith.subf %130, %135 : vector<12x32xf32>
    %137 = arith.mulf %136, %136 : vector<12x32xf32>
    %cst_57 = arith.constant dense<0.000000e+00> : vector<12xf32>
    %138 = vector.multi_reduction <add>, %137, %cst_57 [1] : vector<12x32xf32> to vector<12xf32>
    %139 = vector.shape_cast %138 : vector<12xf32> to vector<12x1xf32>
    %cst_58 = arith.constant 3.200000e+01 : f32
    %140 = vector.broadcast %cst_58 : f32 to vector<12x1xf32>
    %141 = arith.divf %139, %140 : vector<12x1xf32>
    %142 = vector.broadcast %134 : vector<12x1xf32> to vector<12x32xf32>
    %143 = arith.subf %130, %142 : vector<12x32xf32>
    %cst_59 = arith.constant 9.99999974E-6 : f32
    %144 = vector.broadcast %cst_59 : f32 to vector<12x1xf32>
    %145 = arith.addf %141, %144 : vector<12x1xf32>
    %146 = math.rsqrt %145 : vector<12x1xf32>
    %147 = vector.broadcast %146 : vector<12x1xf32> to vector<12x32xf32>
    %148 = arith.mulf %143, %147 : vector<12x32xf32>
    %149 = vector.broadcast %9 : vector<1x32xf32> to vector<12x32xf32>
    %150 = arith.mulf %148, %149 : vector<12x32xf32>
    %151 = vector.broadcast %10 : vector<1x32xf32> to vector<12x32xf32>
    %152 = arith.addf %150, %151 : vector<12x32xf32>
    %c1_60 = arith.constant 1 : index
    %c0_61 = arith.constant 0 : index
    %c0_62 = arith.constant 0 : index
    %153 = vector.load %arg5[%c1_60, %c0_61, %c0_62] : memref<2x8x96xf32, #tpu.memory_space<vmem>>, vector<1x8x96xf32>
    %154 = vector.shape_cast %153 : vector<1x8x96xf32> to vector<8x96xf32>
    %155 = vector.extract_strided_slice %154 {offsets = [0, 0], sizes = [1, 96], strides = [1, 1]} : vector<8x96xf32> to vector<1x96xf32>
    %156 = vector.extract_strided_slice %154 {offsets = [1, 0], sizes = [1, 32], strides = [1, 1]} : vector<8x96xf32> to vector<1x32xf32>
    %157 = vector.extract_strided_slice %154 {offsets = [2, 0], sizes = [1, 32], strides = [1, 1]} : vector<8x96xf32> to vector<1x32xf32>
    %158 = vector.extract_strided_slice %154 {offsets = [3, 0], sizes = [1, 32], strides = [1, 1]} : vector<8x96xf32> to vector<1x32xf32>
    %159 = vector.extract_strided_slice %154 {offsets = [4, 0], sizes = [1, 32], strides = [1, 1]} : vector<8x96xf32> to vector<1x32xf32>
    %160 = vector.extract_strided_slice %154 {offsets = [5, 0], sizes = [1, 32], strides = [1, 1]} : vector<8x96xf32> to vector<1x32xf32>
    %161 = vector.extract_strided_slice %154 {offsets = [6, 0], sizes = [1, 32], strides = [1, 1]} : vector<8x96xf32> to vector<1x32xf32>
    %162 = vector.extract_strided_slice %154 {offsets = [7, 0], sizes = [1, 32], strides = [1, 1]} : vector<8x96xf32> to vector<1x32xf32>
    %c1_63 = arith.constant 1 : index
    %c0_64 = arith.constant 0 : index
    %c0_65 = arith.constant 0 : index
    %163 = vector.load %arg1[%c1_63, %c0_64, %c0_65] : memref<2x32x96xf32, #tpu.memory_space<vmem>>, vector<1x32x96xf32>
    %164 = vector.shape_cast %163 : vector<1x32x96xf32> to vector<32x96xf32>
    %cst_66 = arith.constant dense<0.000000e+00> : vector<12x96xf32>
    %165 = tpu.matmul %152, %164, %cst_66 {dimension_numbers = #tpu.dot_dimension_numbers<[1], [0], [0], [1], [0, 0, 1, 1], [], []>} : vector<12x32xf32>, vector<32x96xf32>, vector<12x96xf32> -> vector<12x96xf32>
    %166 = vector.broadcast %155 : vector<1x96xf32> to vector<12x96xf32>
    %167 = arith.addf %165, %166 : vector<12x96xf32>
    %cst_67 = arith.constant 0.000000e+00 : f32
    %168 = vector.broadcast %cst_67 : f32 to vector<12x32xf32>
    %169 = vector.extract_strided_slice %167 {offsets = [0, 0], sizes = [12, 8], strides = [1, 1]} : vector<12x96xf32> to vector<12x8xf32>
    %170 = vector.extract_strided_slice %167 {offsets = [0, 32], sizes = [12, 8], strides = [1, 1]} : vector<12x96xf32> to vector<12x8xf32>
    %171 = vector.extract_strided_slice %167 {offsets = [0, 64], sizes = [12, 8], strides = [1, 1]} : vector<12x96xf32> to vector<12x8xf32>
    %cst_68 = arith.constant dense<0.000000e+00> : vector<12x12xf32>
    %172 = tpu.matmul %169, %170, %cst_68 {dimension_numbers = #tpu.dot_dimension_numbers<[1], [1], [0], [0], [0, 0, 1, 0], [], []>} : vector<12x8xf32>, vector<12x8xf32>, vector<12x12xf32> -> vector<12x12xf32>
    %cst_69 = arith.constant dense<0xFF800000> : vector<12xf32>
    %173 = vector.multi_reduction <maximumf>, %172, %cst_69 [1] : vector<12x12xf32> to vector<12xf32>
    %174 = vector.shape_cast %173 : vector<12xf32> to vector<12x1xf32>
    %175 = vector.broadcast %174 : vector<12x1xf32> to vector<12x12xf32>
    %176 = arith.subf %172, %175 : vector<12x12xf32>
    %177 = math.exp %176 : vector<12x12xf32>
    %cst_70 = arith.constant dense<0.000000e+00> : vector<12xf32>
    %178 = vector.multi_reduction <add>, %177, %cst_70 [1] : vector<12x12xf32> to vector<12xf32>
    %179 = vector.shape_cast %178 : vector<12xf32> to vector<12x1xf32>
    %180 = tpu.reciprocal %179 : vector<12x1xf32> -> vector<12x1xf32>
    %181 = vector.broadcast %180 : vector<12x1xf32> to vector<12x12xf32>
    %182 = arith.mulf %177, %181 : vector<12x12xf32>
    %cst_71 = arith.constant dense<0.000000e+00> : vector<12x8xf32>
    %183 = tpu.matmul %182, %171, %cst_71 {dimension_numbers = #tpu.dot_dimension_numbers<[1], [0], [0], [1], [0, 0, 1, 1], [], []>} : vector<12x12xf32>, vector<12x8xf32>, vector<12x8xf32> -> vector<12x8xf32>
    %c1_72 = arith.constant 1 : index
    %c0_73 = arith.constant 0 : index
    %c0_74 = arith.constant 0 : index
    %c0_75 = arith.constant 0 : index
    %184 = vector.load %arg2[%c1_72, %c0_73, %c0_74, %c0_75] : memref<2x4x8x32xf32, #tpu.memory_space<vmem>>, vector<1x1x8x32xf32>
    %185 = vector.shape_cast %184 : vector<1x1x8x32xf32> to vector<8x32xf32>
    %cst_76 = arith.constant dense<0.000000e+00> : vector<12x32xf32>
    %186 = tpu.matmul %183, %185, %cst_76 {dimension_numbers = #tpu.dot_dimension_numbers<[1], [0], [0], [1], [0, 0, 1, 1], [], []>} : vector<12x8xf32>, vector<8x32xf32>, vector<12x32xf32> -> vector<12x32xf32>
    %187 = arith.addf %168, %186 : vector<12x32xf32>
    %188 = vector.extract_strided_slice %167 {offsets = [0, 8], sizes = [12, 8], strides = [1, 1]} : vector<12x96xf32> to vector<12x8xf32>
    %189 = vector.extract_strided_slice %167 {offsets = [0, 40], sizes = [12, 8], strides = [1, 1]} : vector<12x96xf32> to vector<12x8xf32>
    %190 = vector.extract_strided_slice %167 {offsets = [0, 72], sizes = [12, 8], strides = [1, 1]} : vector<12x96xf32> to vector<12x8xf32>
    %cst_77 = arith.constant dense<0.000000e+00> : vector<12x12xf32>
    %191 = tpu.matmul %188, %189, %cst_77 {dimension_numbers = #tpu.dot_dimension_numbers<[1], [1], [0], [0], [0, 0, 1, 0], [], []>} : vector<12x8xf32>, vector<12x8xf32>, vector<12x12xf32> -> vector<12x12xf32>
    %cst_78 = arith.constant dense<0xFF800000> : vector<12xf32>
    %192 = vector.multi_reduction <maximumf>, %191, %cst_78 [1] : vector<12x12xf32> to vector<12xf32>
    %193 = vector.shape_cast %192 : vector<12xf32> to vector<12x1xf32>
    %194 = vector.broadcast %193 : vector<12x1xf32> to vector<12x12xf32>
    %195 = arith.subf %191, %194 : vector<12x12xf32>
    %196 = math.exp %195 : vector<12x12xf32>
    %cst_79 = arith.constant dense<0.000000e+00> : vector<12xf32>
    %197 = vector.multi_reduction <add>, %196, %cst_79 [1] : vector<12x12xf32> to vector<12xf32>
    %198 = vector.shape_cast %197 : vector<12xf32> to vector<12x1xf32>
    %199 = tpu.reciprocal %198 : vector<12x1xf32> -> vector<12x1xf32>
    %200 = vector.broadcast %199 : vector<12x1xf32> to vector<12x12xf32>
    %201 = arith.mulf %196, %200 : vector<12x12xf32>
    %cst_80 = arith.constant dense<0.000000e+00> : vector<12x8xf32>
    %202 = tpu.matmul %201, %190, %cst_80 {dimension_numbers = #tpu.dot_dimension_numbers<[1], [0], [0], [1], [0, 0, 1, 1], [], []>} : vector<12x12xf32>, vector<12x8xf32>, vector<12x8xf32> -> vector<12x8xf32>
    %c1_81 = arith.constant 1 : index
    %c1_82 = arith.constant 1 : index
    %c0_83 = arith.constant 0 : index
    %c0_84 = arith.constant 0 : index
    %203 = vector.load %arg2[%c1_81, %c1_82, %c0_83, %c0_84] : memref<2x4x8x32xf32, #tpu.memory_space<vmem>>, vector<1x1x8x32xf32>
    %204 = vector.shape_cast %203 : vector<1x1x8x32xf32> to vector<8x32xf32>
    %cst_85 = arith.constant dense<0.000000e+00> : vector<12x32xf32>
    %205 = tpu.matmul %202, %204, %cst_85 {dimension_numbers = #tpu.dot_dimension_numbers<[1], [0], [0], [1], [0, 0, 1, 1], [], []>} : vector<12x8xf32>, vector<8x32xf32>, vector<12x32xf32> -> vector<12x32xf32>
    %206 = arith.addf %187, %205 : vector<12x32xf32>
    %207 = vector.extract_strided_slice %167 {offsets = [0, 16], sizes = [12, 8], strides = [1, 1]} : vector<12x96xf32> to vector<12x8xf32>
    %208 = vector.extract_strided_slice %167 {offsets = [0, 48], sizes = [12, 8], strides = [1, 1]} : vector<12x96xf32> to vector<12x8xf32>
    %209 = vector.extract_strided_slice %167 {offsets = [0, 80], sizes = [12, 8], strides = [1, 1]} : vector<12x96xf32> to vector<12x8xf32>
    %cst_86 = arith.constant dense<0.000000e+00> : vector<12x12xf32>
    %210 = tpu.matmul %207, %208, %cst_86 {dimension_numbers = #tpu.dot_dimension_numbers<[1], [1], [0], [0], [0, 0, 1, 0], [], []>} : vector<12x8xf32>, vector<12x8xf32>, vector<12x12xf32> -> vector<12x12xf32>
    %cst_87 = arith.constant dense<0xFF800000> : vector<12xf32>
    %211 = vector.multi_reduction <maximumf>, %210, %cst_87 [1] : vector<12x12xf32> to vector<12xf32>
    %212 = vector.shape_cast %211 : vector<12xf32> to vector<12x1xf32>
    %213 = vector.broadcast %212 : vector<12x1xf32> to vector<12x12xf32>
    %214 = arith.subf %210, %213 : vector<12x12xf32>
    %215 = math.exp %214 : vector<12x12xf32>
    %cst_88 = arith.constant dense<0.000000e+00> : vector<12xf32>
    %216 = vector.multi_reduction <add>, %215, %cst_88 [1] : vector<12x12xf32> to vector<12xf32>
    %217 = vector.shape_cast %216 : vector<12xf32> to vector<12x1xf32>
    %218 = tpu.reciprocal %217 : vector<12x1xf32> -> vector<12x1xf32>
    %219 = vector.broadcast %218 : vector<12x1xf32> to vector<12x12xf32>
    %220 = arith.mulf %215, %219 : vector<12x12xf32>
    %cst_89 = arith.constant dense<0.000000e+00> : vector<12x8xf32>
    %221 = tpu.matmul %220, %209, %cst_89 {dimension_numbers = #tpu.dot_dimension_numbers<[1], [0], [0], [1], [0, 0, 1, 1], [], []>} : vector<12x12xf32>, vector<12x8xf32>, vector<12x8xf32> -> vector<12x8xf32>
    %c1_90 = arith.constant 1 : index
    %c2_91 = arith.constant 2 : index
    %c0_92 = arith.constant 0 : index
    %c0_93 = arith.constant 0 : index
    %222 = vector.load %arg2[%c1_90, %c2_91, %c0_92, %c0_93] : memref<2x4x8x32xf32, #tpu.memory_space<vmem>>, vector<1x1x8x32xf32>
    %223 = vector.shape_cast %222 : vector<1x1x8x32xf32> to vector<8x32xf32>
    %cst_94 = arith.constant dense<0.000000e+00> : vector<12x32xf32>
    %224 = tpu.matmul %221, %223, %cst_94 {dimension_numbers = #tpu.dot_dimension_numbers<[1], [0], [0], [1], [0, 0, 1, 1], [], []>} : vector<12x8xf32>, vector<8x32xf32>, vector<12x32xf32> -> vector<12x32xf32>
    %225 = arith.addf %206, %224 : vector<12x32xf32>
    %226 = vector.extract_strided_slice %167 {offsets = [0, 24], sizes = [12, 8], strides = [1, 1]} : vector<12x96xf32> to vector<12x8xf32>
    %227 = vector.extract_strided_slice %167 {offsets = [0, 56], sizes = [12, 8], strides = [1, 1]} : vector<12x96xf32> to vector<12x8xf32>
    %228 = vector.extract_strided_slice %167 {offsets = [0, 88], sizes = [12, 8], strides = [1, 1]} : vector<12x96xf32> to vector<12x8xf32>
    %cst_95 = arith.constant dense<0.000000e+00> : vector<12x12xf32>
    %229 = tpu.matmul %226, %227, %cst_95 {dimension_numbers = #tpu.dot_dimension_numbers<[1], [1], [0], [0], [0, 0, 1, 0], [], []>} : vector<12x8xf32>, vector<12x8xf32>, vector<12x12xf32> -> vector<12x12xf32>
    %cst_96 = arith.constant dense<0xFF800000> : vector<12xf32>
    %230 = vector.multi_reduction <maximumf>, %229, %cst_96 [1] : vector<12x12xf32> to vector<12xf32>
    %231 = vector.shape_cast %230 : vector<12xf32> to vector<12x1xf32>
    %232 = vector.broadcast %231 : vector<12x1xf32> to vector<12x12xf32>
    %233 = arith.subf %229, %232 : vector<12x12xf32>
    %234 = math.exp %233 : vector<12x12xf32>
    %cst_97 = arith.constant dense<0.000000e+00> : vector<12xf32>
    %235 = vector.multi_reduction <add>, %234, %cst_97 [1] : vector<12x12xf32> to vector<12xf32>
    %236 = vector.shape_cast %235 : vector<12xf32> to vector<12x1xf32>
    %237 = tpu.reciprocal %236 : vector<12x1xf32> -> vector<12x1xf32>
    %238 = vector.broadcast %237 : vector<12x1xf32> to vector<12x12xf32>
    %239 = arith.mulf %234, %238 : vector<12x12xf32>
    %cst_98 = arith.constant dense<0.000000e+00> : vector<12x8xf32>
    %240 = tpu.matmul %239, %228, %cst_98 {dimension_numbers = #tpu.dot_dimension_numbers<[1], [0], [0], [1], [0, 0, 1, 1], [], []>} : vector<12x12xf32>, vector<12x8xf32>, vector<12x8xf32> -> vector<12x8xf32>
    %c1_99 = arith.constant 1 : index
    %c3_100 = arith.constant 3 : index
    %c0_101 = arith.constant 0 : index
    %c0_102 = arith.constant 0 : index
    %241 = vector.load %arg2[%c1_99, %c3_100, %c0_101, %c0_102] : memref<2x4x8x32xf32, #tpu.memory_space<vmem>>, vector<1x1x8x32xf32>
    %242 = vector.shape_cast %241 : vector<1x1x8x32xf32> to vector<8x32xf32>
    %cst_103 = arith.constant dense<0.000000e+00> : vector<12x32xf32>
    %243 = tpu.matmul %240, %242, %cst_103 {dimension_numbers = #tpu.dot_dimension_numbers<[1], [0], [0], [1], [0, 0, 1, 1], [], []>} : vector<12x8xf32>, vector<8x32xf32>, vector<12x32xf32> -> vector<12x32xf32>
    %244 = arith.addf %225, %243 : vector<12x32xf32>
    %245 = vector.broadcast %156 : vector<1x32xf32> to vector<12x32xf32>
    %246 = arith.addf %244, %245 : vector<12x32xf32>
    %247 = arith.addf %152, %246 : vector<12x32xf32>
    %cst_104 = arith.constant dense<0.000000e+00> : vector<12xf32>
    %248 = vector.multi_reduction <add>, %247, %cst_104 [1] : vector<12x32xf32> to vector<12xf32>
    %249 = vector.shape_cast %248 : vector<12xf32> to vector<12x1xf32>
    %cst_105 = arith.constant 3.200000e+01 : f32
    %250 = vector.broadcast %cst_105 : f32 to vector<12x1xf32>
    %251 = arith.divf %249, %250 : vector<12x1xf32>
    %252 = vector.broadcast %251 : vector<12x1xf32> to vector<12x32xf32>
    %253 = arith.subf %247, %252 : vector<12x32xf32>
    %254 = arith.mulf %253, %253 : vector<12x32xf32>
    %cst_106 = arith.constant dense<0.000000e+00> : vector<12xf32>
    %255 = vector.multi_reduction <add>, %254, %cst_106 [1] : vector<12x32xf32> to vector<12xf32>
    %256 = vector.shape_cast %255 : vector<12xf32> to vector<12x1xf32>
    %cst_107 = arith.constant 3.200000e+01 : f32
    %257 = vector.broadcast %cst_107 : f32 to vector<12x1xf32>
    %258 = arith.divf %256, %257 : vector<12x1xf32>
    %259 = vector.broadcast %251 : vector<12x1xf32> to vector<12x32xf32>
    %260 = arith.subf %247, %259 : vector<12x32xf32>
    %cst_108 = arith.constant 9.99999974E-6 : f32
    %261 = vector.broadcast %cst_108 : f32 to vector<12x1xf32>
    %262 = arith.addf %258, %261 : vector<12x1xf32>
    %263 = math.rsqrt %262 : vector<12x1xf32>
    %264 = vector.broadcast %263 : vector<12x1xf32> to vector<12x32xf32>
    %265 = arith.mulf %260, %264 : vector<12x32xf32>
    %266 = vector.broadcast %159 : vector<1x32xf32> to vector<12x32xf32>
    %267 = arith.mulf %265, %266 : vector<12x32xf32>
    %268 = vector.broadcast %160 : vector<1x32xf32> to vector<12x32xf32>
    %269 = arith.addf %267, %268 : vector<12x32xf32>
    %c1_109 = arith.constant 1 : index
    %c0_110 = arith.constant 0 : index
    %c0_111 = arith.constant 0 : index
    %270 = vector.load %arg3[%c1_109, %c0_110, %c0_111] : memref<2x32x32xf32, #tpu.memory_space<vmem>>, vector<1x32x32xf32>
    %271 = vector.shape_cast %270 : vector<1x32x32xf32> to vector<32x32xf32>
    %cst_112 = arith.constant dense<0.000000e+00> : vector<12x32xf32>
    %272 = tpu.matmul %269, %271, %cst_112 {dimension_numbers = #tpu.dot_dimension_numbers<[1], [0], [0], [1], [0, 0, 1, 1], [], []>} : vector<12x32xf32>, vector<32x32xf32>, vector<12x32xf32> -> vector<12x32xf32>
    %273 = vector.broadcast %157 : vector<1x32xf32> to vector<12x32xf32>
    %274 = arith.addf %272, %273 : vector<12x32xf32>
    %cst_113 = arith.constant 0.000000e+00 : f32
    %275 = vector.broadcast %cst_113 : f32 to vector<12x32xf32>
    %276 = arith.maximumf %274, %275 : vector<12x32xf32>
    %c1_114 = arith.constant 1 : index
    %c0_115 = arith.constant 0 : index
    %c0_116 = arith.constant 0 : index
    %277 = vector.load %arg4[%c1_114, %c0_115, %c0_116] : memref<2x32x32xf32, #tpu.memory_space<vmem>>, vector<1x32x32xf32>
    %278 = vector.shape_cast %277 : vector<1x32x32xf32> to vector<32x32xf32>
    %cst_117 = arith.constant dense<0.000000e+00> : vector<12x32xf32>
    %279 = tpu.matmul %276, %278, %cst_117 {dimension_numbers = #tpu.dot_dimension_numbers<[1], [0], [0], [1], [0, 0, 1, 1], [], []>} : vector<12x32xf32>, vector<32x32xf32>, vector<12x32xf32> -> vector<12x32xf32>
    %280 = vector.broadcast %158 : vector<1x32xf32> to vector<12x32xf32>
    %281 = arith.addf %279, %280 : vector<12x32xf32>
    %282 = arith.addf %269, %281 : vector<12x32xf32>
    %cst_118 = arith.constant dense<0.000000e+00> : vector<12xf32>
    %283 = vector.multi_reduction <add>, %282, %cst_118 [1] : vector<12x32xf32> to vector<12xf32>
    %284 = vector.shape_cast %283 : vector<12xf32> to vector<12x1xf32>
    %cst_119 = arith.constant 3.200000e+01 : f32
    %285 = vector.broadcast %cst_119 : f32 to vector<12x1xf32>
    %286 = arith.divf %284, %285 : vector<12x1xf32>
    %287 = vector.broadcast %286 : vector<12x1xf32> to vector<12x32xf32>
    %288 = arith.subf %282, %287 : vector<12x32xf32>
    %289 = arith.mulf %288, %288 : vector<12x32xf32>
    %cst_120 = arith.constant dense<0.000000e+00> : vector<12xf32>
    %290 = vector.multi_reduction <add>, %289, %cst_120 [1] : vector<12x32xf32> to vector<12xf32>
    %291 = vector.shape_cast %290 : vector<12xf32> to vector<12x1xf32>
    %cst_121 = arith.constant 3.200000e+01 : f32
    %292 = vector.broadcast %cst_121 : f32 to vector<12x1xf32>
    %293 = arith.divf %291, %292 : vector<12x1xf32>
    %294 = vector.broadcast %286 : vector<12x1xf32> to vector<12x32xf32>
    %295 = arith.subf %282, %294 : vector<12x32xf32>
    %cst_122 = arith.constant 9.99999974E-6 : f32
    %296 = vector.broadcast %cst_122 : f32 to vector<12x1xf32>
    %297 = arith.addf %293, %296 : vector<12x1xf32>
    %298 = math.rsqrt %297 : vector<12x1xf32>
    %299 = vector.broadcast %298 : vector<12x1xf32> to vector<12x32xf32>
    %300 = arith.mulf %295, %299 : vector<12x32xf32>
    %301 = vector.broadcast %161 : vector<1x32xf32> to vector<12x32xf32>
    %302 = arith.mulf %300, %301 : vector<12x32xf32>
    %303 = vector.broadcast %162 : vector<1x32xf32> to vector<12x32xf32>
    %304 = arith.addf %302, %303 : vector<12x32xf32>
    %c0_123 = arith.constant 0 : index
    %c0_124 = arith.constant 0 : index
    %305 = vector.load %arg6[%c0_123, %c0_124] : memref<12x32xf32, #tpu.memory_space<vmem>>, vector<12x32xf32>
    tpu.vector_store %arg6[%c0_123, %c0_124], %304 {strides = array<i32>} : memref<12x32xf32, #tpu.memory_space<vmem>>, vector<12x32xf32>,
    return
  }
}

</mosaic_0001>

<llo_original>
// kernel: transformer_forward.1
$region0: #{transformer_forward.1}
  #allocation0 [shape = 'u32[]', space=smem, size = 0x4, offset = 0x4, fixed_abs, tag = 'smem constant byte address 0x4 - core index']
  #allocation1 [shape = 'u32[144,128]{1,0:T(1,128)}', space=vmem, size = 0x12000, scoped, tag = 'internal scratch']
  %s0 = inlined_call_operand.vmem [shape: f32[12,32], index: 0, kind: input, shape index: {}]
  %s1 = inlined_call_operand.vmem [shape: f32[2,32,96], index: 1, kind: input, shape index: {}]
  %s2 = inlined_call_operand.vmem [shape: f32[2,4,8,32], index: 2, kind: input, shape index: {}]
  %s3 = inlined_call_operand.vmem [shape: f32[2,32,32], index: 3, kind: input, shape index: {}]
  %s4 = inlined_call_operand.hbm [shape: f32[2,32,32], index: 4, kind: input, shape index: {}]
  %s5 = inlined_call_operand.vmem [shape: f32[2,8,96], index: 5, kind: input, shape index: {}]
  %s6 = inlined_call_operand.vmem [shape: f32[12,32], index: 6, kind: output, shape index: {}]
  %s7 = sld [smem:[#allocation0]]
  $region38: #{transformer_forward.1} parent=0
    _
  %s9 = ssub.s32 1, %s7
  %s10 = scalar_select 0, %s9, %s7
  $region1: #{transformer_forward.1} parent=0
    #allocation2 [shape = 'u8[32768]{0}', space=vmem, size = 0x8000, scoped, tag = 'input window, operand 4, single buffered']
    #allocation3 [shape = 's32[1]{0}', space=sflag, size = 0x4, scoped, tag = 'scoped memory for transformer_forward.1']
    %11 = vsyncpa [#allocation3], 0
    // Predicated region
    $region2: #{transformer_forward.1} parent=1 // pred_check
      _
    $region3: #{transformer_forward.1} parent=1 // pred_check_branch
      %13 = sbr.rel (0) target = $region5
    $region4: #{transformer_forward.1} parent=1 // pred_region
      _
    $region5: #{transformer_forward.1} parent=1 // pred_fallthru
      _
    // Predicated region
    $region6: #{transformer_forward.1} parent=1 // pred_check
      _
    $region7: #{transformer_forward.1} parent=1 // pred_check_branch
      %15 = sbr.rel (0) target = $region9
    $region8: #{transformer_forward.1} parent=1 // pred_region
      _
    $region9: #{transformer_forward.1} parent=1 // pred_fallthru
      _
    // Predicated region
    $region10: #{transformer_forward.1} parent=1 // pred_check
      _
    $region11: #{transformer_forward.1} parent=1 // pred_check_branch
      %17 = sbr.rel (0) target = $region13
    $region12: #{transformer_forward.1} parent=1 // pred_region
      _
    $region13: #{transformer_forward.1} parent=1 // pred_fallthru
      _
    // Predicated region
    $region14: #{transformer_forward.1} parent=1 // pred_check
      _
    $region15: #{transformer_forward.1} parent=1 // pred_check_branch
      %19 = sbr.rel (0) target = $region17
    $region16: #{transformer_forward.1} parent=1 // pred_region
      _
    $region17: #{transformer_forward.1} parent=1 // pred_fallthru
      _
    // Predicated region
    $region18: #{transformer_forward.1} parent=1 // pred_check
      _
    $region19: #{transformer_forward.1} parent=1 // pred_check_branch
      %21 = sbr.rel (0) target = $region21
    $region20: #{transformer_forward.1} parent=1 // pred_region
      %s23 = ssub.s32 1024, 1024
      %24 = vsyncadd [#allocation3], %s23
      %s25 = sshll.u32 [#allocation2], 4
      %s26 = int_to_ptr.vmem [resolvable:$true] %s25
      %31 = dma.hbm_to_vmem [thread:$0]  %s4, 1024, %s26, [#allocation3], 128, 128, 8
    $region21: #{transformer_forward.1} parent=1 // pred_fallthru
      _
    // Predicated region
    $region22: #{transformer_forward.1} parent=1 // pred_check
      _
    $region23: #{transformer_forward.1} parent=1 // pred_check_branch
      %33 = sbr.rel (0) target = $region25
    $region24: #{transformer_forward.1} parent=1 // pred_region
      _
    $region25: #{transformer_forward.1} parent=1 // pred_fallthru
      _
    // Predicated region
    $region26: #{transformer_forward.1} parent=1 // pred_check
      _
    $region27: #{transformer_forward.1} parent=1 // pred_check_branch
      %35 = sbr.rel (0) target = $region29
    $region28: #{transformer_forward.1} parent=1 // pred_region
      %36 = dma.done [#allocation3], 1024
    $region29: #{transformer_forward.1} parent=1 // pred_fallthru
      _
    %v37 = vld [vmem:[%s0] sm:$0xff]
    %v38 = vld [vmem:[%s0 + $0x8] sm:$0xf]
    %v39 = vld [vmem:[%s5] sm:$0xff]
    %v40 = vld [vmem:[%s1] sm:$0xff]
    %v41 = vld [vmem:[%s1 + $0x8] sm:$0xff]
    %v42 = vld [vmem:[%s1 + $0x10] sm:$0xff]
    %v43 = vld [vmem:[%s1 + $0x18] sm:$0xff]
    %v44 = vlaneseq
    %v45 = vshrl.u32 %v44, 7
    %v46 = vsub.s32 0, %v45
    %v47 = vrot.slane %v39, %v46
    %vm48 = vcmask 261120
    %v50 = vsel %vm48, %v37, 0
    %v53 = vsel %vm48, %v38, 0
    %55 = vmatprep.subr.mxu0 0.0
    %56 = vmatpush1.msra.mxu0 %v40
    %57 = vmatprep.subr.mxu0 0.0
    %58 = vmatpush1.msra.mxu0 %v41
    %59 = vmatprep.subr.mxu0 0.0
    %60 = vmatpush1.msra.mxu0 %v42
    %61 = vmatprep.subr.mxu0 0.0
    %62 = vmatpush1.msra.mxu0 %v43
    %63 = vmatprep.subr.mxu0 0.0
    %64 = vmatpush1.msra.mxu0 0.0
    %65 = vmatprep.subr.mxu0 0.0
    %66 = vmatpush1.msra.mxu0 0.0
    %67 = vmatprep.subr.mxu0 0.0
    %68 = vmatpush1.msra.mxu0 0.0
    %69 = vmatprep.subr.mxu0 0.0
    %70 = vmatpush1.msra.mxu0 0.0
    %71 = vmatprep.subr.mxu0 0.0
    %72 = vmatpush1.msra.mxu0 0.0
    %73 = vmatprep.subr.mxu0 0.0
    %74 = vmatpush1.msra.mxu0 0.0
    %75 = vmatprep.subr.mxu0 0.0
    %76 = vmatpush1.msra.mxu0 0.0
    %77 = vmatprep.subr.mxu0 0.0
    %78 = vmatpush1.msra.mxu0 0.0
    %79 = vmatprep.subr.mxu0 0.0
    %80 = vmatpush1.msra.mxu0 0.0
    %81 = vmatprep.subr.mxu0 0.0
    %82 = vmatpush1.msra.mxu0 0.0
    %83 = vmatprep.subr.mxu0 0.0
    %84 = vmatpush1.msra.mxu0 0.0
    %85 = vmatprep.subr.mxu0 0.0
    %86 = vmatpush1.msra.mxu0 0.0
    %87 = vmatprep.subr.mxu0 0.0
    %88 = vmatpush1.msra.mxu0 0.0
    %89 = vmatprep.subr.mxu0 0.0
    %90 = vmatpush1.msra.mxu0 0.0
    %91 = vmatprep.subr.mxu0 0.0
    %92 = vmatpush1.msra.mxu0 0.0
    %93 = vmatprep.subr.mxu0 0.0
    %94 = vmatpush1.msra.mxu0 0.0
    %95 = vmatprep.subr.mxu0 0.0
    %96 = vmatpush1.msra.mxu0 0.0
    %97 = vmatprep.subr.mxu0 0.0
    %98 = vmatpush1.msra.mxu0 0.0
    %99 = vmatprep.subr.mxu0 0.0
    %100 = vmatpush1.msra.mxu0 0.0
    %101 = vmatprep.subr.mxu0 0.0
    %102 = vmatpush1.msra.mxu0 0.0
    %103 = vmatprep.subr.mxu0 0.0
    %104 = vmatpush1.msra.mxu0 0.0
    %105 = vmatprep.subr.mxu0 0.0
    %106 = vmatpush1.msra.mxu0 0.0
    %107 = vmatprep.subr.mxu0 0.0
    %108 = vmatpush1.msra.mxu0 0.0
    %109 = vmatprep.subr.mxu0 0.0
    %110 = vmatpush1.msra.mxu0 0.0
    %111 = vmatprep.subr.mxu0 0.0
    %112 = vmatpush1.msra.mxu0 0.0
    %113 = vmatprep.subr.mxu0 0.0
    %114 = vmatpush1.msra.mxu0 0.0
    %115 = vmatprep.subr.mxu0 0.0
    %116 = vmatpush1.msra.mxu0 0.0
    %117 = vmatprep.subr.mxu0 0.0
    %118 = vmatpush1.msra.mxu0 0.0
    %119 = vmatprep.mubr.f32.mxu0 0.0
    %120 = vmatmul.mubr.f32.gmra.mrb[0].mxu0 %v50
    %v121 = vpop.f32.mrb[0].mxu0
    %v122 = vadd.f32 %v47, %v121
    %v123 = vpop.f32.mrb[0].mxu0
    %124 = vmatprep.mubr.f32.mxu0 0.0
    %125 = vmatmul.mubr.f32.gmra.mrb[0].mxu0 %v53
    %v126 = vpop.f32.mrb[0].mxu0
    %v127 = vadd.f32 %v47, %v126
    %v128 = vpop.f32.mrb[0].mxu0
    %129 = vdwg.mxu0
    %132 = vrot.lane.b32.xlu0 %v122, 96
    %v133 = vpop.permute.xlu0 %132
    %134 = vrot.lane.b32.xlu0 %v127, 96
    %v135 = vpop.permute.xlu0 %134
    %vm136 = vcmask 64512
    %v137 = vsel %vm136, %v122, 0
    %v139 = vsel %vm136, %v127, 0
    %v141 = vsel %vm136, %v133, 0
    %v143 = vsel %vm136, %v135, 0
    %145 = vmatprep.subr.mxu0 0.0
    %146 = vmatpush1.xpose.msra.mxu0 %v141
    %147 = vmatprep.subr.mxu0 0.0
    %148 = vmatpush1.xpose.msra.mxu0 %v143
    %149 = vmatprep.subr.mxu0 0.0
    %150 = vmatpush1.xpose.msra.mxu0 0.0
    %151 = vmatprep.subr.mxu0 0.0
    %152 = vmatpush1.xpose.msra.mxu0 0.0
    %153 = vmatprep.subr.mxu0 0.0
    %154 = vmatpush1.xpose.msra.mxu0 0.0
    %155 = vmatprep.subr.mxu0 0.0
    %156 = vmatpush1.xpose.msra.mxu0 0.0
    %157 = vmatprep.subr.mxu0 0.0
    %158 = vmatpush1.xpose.msra.mxu0 0.0
    %159 = vmatprep.subr.mxu0 0.0
    %160 = vmatpush1.xpose.msra.mxu0 0.0
    %161 = vmatprep.subr.mxu0 0.0
    %162 = vmatpush1.xpose.msra.mxu0 0.0
    %163 = vmatprep.subr.mxu0 0.0
    %164 = vmatpush1.xpose.msra.mxu0 0.0
    %165 = vmatprep.subr.mxu0 0.0
    %166 = vmatpush1.xpose.msra.mxu0 0.0
    %167 = vmatprep.subr.mxu0 0.0
    %168 = vmatpush1.xpose.msra.mxu0 0.0
    %169 = vmatprep.subr.mxu0 0.0
    %170 = vmatpush1.xpose.msra.mxu0 0.0
    %171 = vmatprep.subr.mxu0 0.0
    %172 = vmatpush1.xpose.msra.mxu0 0.0
    %173 = vmatprep.subr.mxu0 0.0
    %174 = vmatpush1.xpose.msra.mxu0 0.0
    %175 = vmatprep.subr.mxu0 0.0
    %176 = vmatpush1.xpose.msra.mxu0 0.0
    %177 = vmatprep.subr.mxu0 0.0
    %178 = vmatpush1.xpose.msra.mxu0 0.0
    %179 = vmatprep.subr.mxu0 0.0
    %180 = vmatpush1.xpose.msra.mxu0 0.0
    %181 = vmatprep.subr.mxu0 0.0
    %182 = vmatpush1.xpose.msra.mxu0 0.0
    %183 = vmatprep.subr.mxu0 0.0
    %184 = vmatpush1.xpose.msra.mxu0 0.0
    %185 = vmatprep.subr.mxu0 0.0
    %186 = vmatpush1.xpose.msra.mxu0 0.0
    %187 = vmatprep.subr.mxu0 0.0
    %188 = vmatpush1.xpose.msra.mxu0 0.0
    %189 = vmatprep.subr.mxu0 0.0
    %190 = vmatpush1.xpose.msra.mxu0 0.0
    %191 = vmatprep.subr.mxu0 0.0
    %192 = vmatpush1.xpose.msra.mxu0 0.0
    %193 = vmatprep.subr.mxu0 0.0
    %194 = vmatpush1.xpose.msra.mxu0 0.0
    %195 = vmatprep.subr.mxu0 0.0
    %196 = vmatpush1.xpose.msra.mxu0 0.0
    %197 = vmatprep.subr.mxu0 0.0
    %198 = vmatpush1.xpose.msra.mxu0 0.0
    %199 = vmatprep.subr.mxu0 0.0
    %200 = vmatpush1.xpose.msra.mxu0 0.0
    %201 = vmatprep.subr.mxu0 0.0
    %202 = vmatpush1.xpose.msra.mxu0 0.0
    %203 = vmatprep.subr.mxu0 0.0
    %204 = vmatpush1.xpose.msra.mxu0 0.0
    %205 = vmatprep.subr.mxu0 0.0
    %206 = vmatpush1.xpose.msra.mxu0 0.0
    %207 = vmatprep.subr.mxu0 0.0
    %208 = vmatpush1.xpose.msra.mxu0 0.0
    %209 = vmatprep.mubr.f32.mxu0 0.0
    %210 = vmatmul.mubr.f32.gmra.mrb[0].mxu0 %v137
    %v211 = vpop.f32.mrb[0].mxu0
    %v212 = vadd.f32 0.0, %v211
    %v213 = vpop.f32.mrb[0].mxu0
    %214 = vmatprep.mubr.f32.mxu0 0.0
    %215 = vmatmul.mubr.f32.gmra.mrb[0].mxu0 %v139
    %v216 = vpop.f32.mrb[0].mxu0
    %v217 = vadd.f32 0.0, %v216
    %v218 = vpop.f32.mrb[0].mxu0
    %219 = vdwg.mxu0
    %vm220 = vcmask 97280
    %v221 = vsel %vm220, %v212, -inf
    %222 = vmax.xlane.f32.xlu0 %v221
    %v223 = vpop.xlane.xlu0 %222
    %vm224 = vcmask 93184
    %v225 = vsel %vm224, %v217, -inf
    %226 = vmax.xlane.f32.xlu0 %v225
    %v227 = vpop.xlane.xlu0 %226
    %v228 = vsub.f32 %v212, %v223
    %v229 = vsub.f32 %v217, %v227
    %v230 = vmul.f32 %v228, 1.442695
    %v231 = vpow.pop %v230
    %v232 = vmul.f32 %v229, 1.442695
    %v233 = vpow.pop %v232
    %v234 = vsel %vm220, %v231, 0.0
    %235 = vadd.xlane.f32.xlu0 %v234
    %v236 = vpop.xlane.xlu0 %235
    %v237 = vsel %vm224, %v233, 0.0
    %238 = vadd.xlane.f32.xlu0 %v237
    %v239 = vpop.xlane.xlu0 %238
    %v240 = vrcp.pop %v236
    %v241 = vrcp.pop %v239
    %v242 = vmul.f32 %v231, %v240
    %v243 = vmul.f32 %v233, %v241
    %244 = vrot.lane.b32.xlu0 %v122, 64
    %v245 = vpop.permute.xlu0 %244
    %246 = vrot.lane.b32.xlu0 %v127, 64
    %v247 = vpop.permute.xlu0 %246
    %v250 = vsel %vm220, %v242, 0
    %v253 = vsel %vm220, %v243, 0
    %vm255 = vcmask 1043456
    %v256 = vsel %vm255, %v247, 0
    %258 = vmatprep.subr.mxu0 0.0
    %259 = vmatpush1.msra.mxu0 %v245
    %260 = vmatprep.subr.mxu0 0.0
    %261 = vmatpush1.msra.mxu0 %v256
    %262 = vmatprep.subr.mxu0 0.0
    %263 = vmatpush1.msra.mxu0 0.0
    %264 = vmatprep.subr.mxu0 0.0
    %265 = vmatpush1.msra.mxu0 0.0
    %266 = vmatprep.subr.mxu0 0.0
    %267 = vmatpush1.msra.mxu0 0.0
    %268 = vmatprep.subr.mxu0 0.0
    %269 = vmatpush1.msra.mxu0 0.0
    %270 = vmatprep.subr.mxu0 0.0
    %271 = vmatpush1.msra.mxu0 0.0
    %272 = vmatprep.subr.mxu0 0.0
    %273 = vmatpush1.msra.mxu0 0.0
    %274 = vmatprep.subr.mxu0 0.0
    %275 = vmatpush1.msra.mxu0 0.0
    %276 = vmatprep.subr.mxu0 0.0
    %277 = vmatpush1.msra.mxu0 0.0
    %278 = vmatprep.subr.mxu0 0.0
    %279 = vmatpush1.msra.mxu0 0.0
    %280 = vmatprep.subr.mxu0 0.0
    %281 = vmatpush1.msra.mxu0 0.0
    %282 = vmatprep.subr.mxu0 0.0
    %283 = vmatpush1.msra.mxu0 0.0
    %284 = vmatprep.subr.mxu0 0.0
    %285 = vmatpush1.msra.mxu0 0.0
    %286 = vmatprep.subr.mxu0 0.0
    %287 = vmatpush1.msra.mxu0 0.0
    %288 = vmatprep.subr.mxu0 0.0
    %289 = vmatpush1.msra.mxu0 0.0
    %290 = vmatprep.subr.mxu0 0.0
    %291 = vmatpush1.msra.mxu0 0.0
    %292 = vmatprep.subr.mxu0 0.0
    %293 = vmatpush1.msra.mxu0 0.0
    %294 = vmatprep.subr.mxu0 0.0
    %295 = vmatpush1.msra.mxu0 0.0
    %296 = vmatprep.subr.mxu0 0.0
    %297 = vmatpush1.msra.mxu0 0.0
    %298 = vmatprep.subr.mxu0 0.0
    %299 = vmatpush1.msra.mxu0 0.0
    %300 = vmatprep.subr.mxu0 0.0
    %301 = vmatpush1.msra.mxu0 0.0
    %302 = vmatprep.subr.mxu0 0.0
    %303 = vmatpush1.msra.mxu0 0.0
    %304 = vmatprep.subr.mxu0 0.0
    %305 = vmatpush1.msra.mxu0 0.0
    %306 = vmatprep.subr.mxu0 0.0
    %307 = vmatpush1.msra.mxu0 0.0
    %308 = vmatprep.subr.mxu0 0.0
    %309 = vmatpush1.msra.mxu0 0.0
    %310 = vmatprep.subr.mxu0 0.0
    %311 = vmatpush1.msra.mxu0 0.0
    %312 = vmatprep.subr.mxu0 0.0
    %313 = vmatpush1.msra.mxu0 0.0
    %314 = vmatprep.subr.mxu0 0.0
    %315 = vmatpush1.msra.mxu0 0.0
    %316 = vmatprep.subr.mxu0 0.0
    %317 = vmatpush1.msra.mxu0 0.0
    %318 = vmatprep.subr.mxu0 0.0
    %319 = vmatpush1.msra.mxu0 0.0
    %320 = vmatprep.subr.mxu0 0.0
    %321 = vmatpush1.msra.mxu0 0.0
    %322 = vmatprep.mubr.f32.mxu0 0.0
    %323 = vmatmul.mubr.f32.gmra.mrb[0].mxu0 %v250
    %v324 = vpop.f32.mrb[0].mxu0
    %v325 = vadd.f32 0.0, %v324
    %v326 = vpop.f32.mrb[0].mxu0
    %327 = vmatprep.mubr.f32.mxu0 0.0
    %328 = vmatmul.mubr.f32.gmra.mrb[0].mxu0 %v253
    %v329 = vpop.f32.mrb[0].mxu0
    %v330 = vadd.f32 0.0, %v329
    %v331 = vpop.f32.mrb[0].mxu0
    %332 = vdwg.mxu0
    %v333 = vld [vmem:[%s2] sm:$0xff]
    %334 = vrot.lane.b32.xlu0 %v122, 120
    %v335 = vpop.permute.xlu0 %334
    %336 = vrot.lane.b32.xlu0 %v127, 120
    %v337 = vpop.permute.xlu0 %336
    %338 = vrot.lane.b32.xlu0 %v122, 88
    %v339 = vpop.permute.xlu0 %338
    %340 = vrot.lane.b32.xlu0 %v127, 88
    %v341 = vpop.permute.xlu0 %340
    %v342 = vsel %vm136, %v335, 0
    %v344 = vsel %vm136, %v337, 0
    %v346 = vsel %vm136, %v339, 0
    %v348 = vsel %vm136, %v341, 0
    %350 = vmatprep.subr.mxu0 0.0
    %351 = vmatpush1.xpose.msra.mxu0 %v346
    %352 = vmatprep.subr.mxu0 0.0
    %353 = vmatpush1.xpose.msra.mxu0 %v348
    %354 = vmatprep.subr.mxu0 0.0
    %355 = vmatpush1.xpose.msra.mxu0 0.0
    %356 = vmatprep.subr.mxu0 0.0
    %357 = vmatpush1.xpose.msra.mxu0 0.0
    %358 = vmatprep.subr.mxu0 0.0
    %359 = vmatpush1.xpose.msra.mxu0 0.0
    %360 = vmatprep.subr.mxu0 0.0
    %361 = vmatpush1.xpose.msra.mxu0 0.0
    %362 = vmatprep.subr.mxu0 0.0
    %363 = vmatpush1.xpose.msra.mxu0 0.0
    %364 = vmatprep.subr.mxu0 0.0
    %365 = vmatpush1.xpose.msra.mxu0 0.0
    %366 = vmatprep.subr.mxu0 0.0
    %367 = vmatpush1.xpose.msra.mxu0 0.0
    %368 = vmatprep.subr.mxu0 0.0
    %369 = vmatpush1.xpose.msra.mxu0 0.0
    %370 = vmatprep.subr.mxu0 0.0
    %371 = vmatpush1.xpose.msra.mxu0 0.0
    %372 = vmatprep.subr.mxu0 0.0
    %373 = vmatpush1.xpose.msra.mxu0 0.0
    %374 = vmatprep.subr.mxu0 0.0
    %375 = vmatpush1.xpose.msra.mxu0 0.0
    %376 = vmatprep.subr.mxu0 0.0
    %377 = vmatpush1.xpose.msra.mxu0 0.0
    %378 = vmatprep.subr.mxu0 0.0
    %379 = vmatpush1.xpose.msra.mxu0 0.0
    %380 = vmatprep.subr.mxu0 0.0
    %381 = vmatpush1.xpose.msra.mxu0 0.0
    %382 = vmatprep.subr.mxu0 0.0
    %383 = vmatpush1.xpose.msra.mxu0 0.0
    %384 = vmatprep.subr.mxu0 0.0
    %385 = vmatpush1.xpose.msra.mxu0 0.0
    %386 = vmatprep.subr.mxu0 0.0
    %387 = vmatpush1.xpose.msra.mxu0 0.0
    %388 = vmatprep.subr.mxu0 0.0
    %389 = vmatpush1.xpose.msra.mxu0 0.0
    %390 = vmatprep.subr.mxu0 0.0
    %391 = vmatpush1.xpose.msra.mxu0 0.0
    %392 = vmatprep.subr.mxu0 0.0
    %393 = vmatpush1.xpose.msra.mxu0 0.0
    %394 = vmatprep.subr.mxu0 0.0
    %395 = vmatpush1.xpose.msra.mxu0 0.0
    %396 = vmatprep.subr.mxu0 0.0
    %397 = vmatpush1.xpose.msra.mxu0 0.0
    %398 = vmatprep.subr.mxu0 0.0
    %399 = vmatpush1.xpose.msra.mxu0 0.0
    %400 = vmatprep.subr.mxu0 0.0
    %401 = vmatpush1.xpose.msra.mxu0 0.0
    %402 = vmatprep.subr.mxu0 0.0
    %403 = vmatpush1.xpose.msra.mxu0 0.0
    %404 = vmatprep.subr.mxu0 0.0
    %405 = vmatpush1.xpose.msra.mxu0 0.0
    %406 = vmatprep.subr.mxu0 0.0
    %407 = vmatpush1.xpose.msra.mxu0 0.0
    %408 = vmatprep.subr.mxu0 0.0
    %409 = vmatpush1.xpose.msra.mxu0 0.0
    %410 = vmatprep.subr.mxu0 0.0
    %411 = vmatpush1.xpose.msra.mxu0 0.0
    %412 = vmatprep.subr.mxu0 0.0
    %413 = vmatpush1.xpose.msra.mxu0 0.0
    %414 = vmatprep.mubr.f32.mxu0 0.0
    %415 = vmatmul.mubr.f32.gmra.mrb[0].mxu0 %v342
    %v416 = vpop.f32.mrb[0].mxu0
    %v417 = vadd.f32 0.0, %v416
    %v418 = vpop.f32.mrb[0].mxu0
    %419 = vmatprep.mubr.f32.mxu0 0.0
    %420 = vmatmul.mubr.f32.gmra.mrb[0].mxu0 %v344
    %v421 = vpop.f32.mrb[0].mxu0
    %v422 = vadd.f32 0.0, %v421
    %v423 = vpop.f32.mrb[0].mxu0
    %424 = vdwg.mxu0
    %v425 = vsel %vm220, %v417, -inf
    %426 = vmax.xlane.f32.xlu0 %v425
    %v427 = vpop.xlane.xlu0 %426
    %v428 = vsel %vm224, %v422, -inf
    %429 = vmax.xlane.f32.xlu0 %v428
    %v430 = vpop.xlane.xlu0 %429
    %v431 = vsub.f32 %v417, %v427
    %v432 = vsub.f32 %v422, %v430
    %v433 = vmul.f32 %v431, 1.442695
    %v434 = vpow.pop %v433
    %v435 = vmul.f32 %v432, 1.442695
    %v436 = vpow.pop %v435
    %v437 = vsel %vm220, %v434, 0.0
    %438 = vadd.xlane.f32.xlu0 %v437
    %v439 = vpop.xlane.xlu0 %438
    %v440 = vsel %vm224, %v436, 0.0
    %441 = vadd.xlane.f32.xlu0 %v440
    %v442 = vpop.xlane.xlu0 %441
    %v443 = vrcp.pop %v439
    %v444 = vrcp.pop %v442
    %v445 = vmul.f32 %v434, %v443
    %v446 = vmul.f32 %v436, %v444
    %447 = vrot.lane.b32.xlu0 %v122, 56
    %v448 = vpop.permute.xlu0 %447
    %449 = vrot.lane.b32.xlu0 %v127, 56
    %v450 = vpop.permute.xlu0 %449
    %v453 = vsel %vm220, %v445, 0
    %v456 = vsel %vm220, %v446, 0
    %v458 = vsel %vm255, %v450, 0
    %460 = vmatprep.subr.mxu0 0.0
    %461 = vmatpush1.msra.mxu0 %v448
    %462 = vmatprep.subr.mxu0 0.0
    %463 = vmatpush1.msra.mxu0 %v458
    %464 = vmatprep.subr.mxu0 0.0
    %465 = vmatpush1.msra.mxu0 0.0
    %466 = vmatprep.subr.mxu0 0.0
    %467 = vmatpush1.msra.mxu0 0.0
    %468 = vmatprep.subr.mxu0 0.0
    %469 = vmatpush1.msra.mxu0 0.0
    %470 = vmatprep.subr.mxu0 0.0
    %471 = vmatpush1.msra.mxu0 0.0
    %472 = vmatprep.subr.mxu0 0.0
    %473 = vmatpush1.msra.mxu0 0.0
    %474 = vmatprep.subr.mxu0 0.0
    %475 = vmatpush1.msra.mxu0 0.0
    %476 = vmatprep.subr.mxu0 0.0
    %477 = vmatpush1.msra.mxu0 0.0
    %478 = vmatprep.subr.mxu0 0.0
    %479 = vmatpush1.msra.mxu0 0.0
    %480 = vmatprep.subr.mxu0 0.0
    %481 = vmatpush1.msra.mxu0 0.0
    %482 = vmatprep.subr.mxu0 0.0
    %483 = vmatpush1.msra.mxu0 0.0
    %484 = vmatprep.subr.mxu0 0.0
    %485 = vmatpush1.msra.mxu0 0.0
    %486 = vmatprep.subr.mxu0 0.0
    %487 = vmatpush1.msra.mxu0 0.0
    %488 = vmatprep.subr.mxu0 0.0
    %489 = vmatpush1.msra.mxu0 0.0
    %490 = vmatprep.subr.mxu0 0.0
    %491 = vmatpush1.msra.mxu0 0.0
    %492 = vmatprep.subr.mxu0 0.0
    %493 = vmatpush1.msra.mxu0 0.0
    %494 = vmatprep.subr.mxu0 0.0
    %495 = vmatpush1.msra.mxu0 0.0
    %496 = vmatprep.subr.mxu0 0.0
    %497 = vmatpush1.msra.mxu0 0.0
    %498 = vmatprep.subr.mxu0 0.0
    %499 = vmatpush1.msra.mxu0 0.0
    %500 = vmatprep.subr.mxu0 0.0
    %501 = vmatpush1.msra.mxu0 0.0
    %502 = vmatprep.subr.mxu0 0.0
    %503 = vmatpush1.msra.mxu0 0.0
    %504 = vmatprep.subr.mxu0 0.0
    %505 = vmatpush1.msra.mxu0 0.0
    %506 = vmatprep.subr.mxu0 0.0
    %507 = vmatpush1.msra.mxu0 0.0
    %508 = vmatprep.subr.mxu0 0.0
    %509 = vmatpush1.msra.mxu0 0.0
    %510 = vmatprep.subr.mxu0 0.0
    %511 = vmatpush1.msra.mxu0 0.0
    %512 = vmatprep.subr.mxu0 0.0
    %513 = vmatpush1.msra.mxu0 0.0
    %514 = vmatprep.subr.mxu0 0.0
    %515 = vmatpush1.msra.mxu0 0.0
    %516 = vmatprep.subr.mxu0 0.0
    %517 = vmatpush1.msra.mxu0 0.0
    %518 = vmatprep.subr.mxu0 0.0
    %519 = vmatpush1.msra.mxu0 0.0
    %520 = vmatprep.subr.mxu0 0.0
    %521 = vmatpush1.msra.mxu0 0.0
    %522 = vmatprep.subr.mxu0 0.0
    %523 = vmatpush1.msra.mxu0 0.0
    %524 = vmatprep.mubr.f32.mxu0 0.0
    %525 = vmatmul.mubr.f32.gmra.mrb[0].mxu0 %v453
    %v526 = vpop.f32.mrb[0].mxu0
    %v527 = vadd.f32 0.0, %v526
    %v528 = vpop.f32.mrb[0].mxu0
    %529 = vmatprep.mubr.f32.mxu0 0.0
    %530 = vmatmul.mubr.f32.gmra.mrb[0].mxu0 %v456
    %v531 = vpop.f32.mrb[0].mxu0
    %v532 = vadd.f32 0.0, %v531
    %v533 = vpop.f32.mrb[0].mxu0
    %534 = vdwg.mxu0
    %s535 = scalar_lea.vmem %s2, 8
    %v536 = vld [vmem:[%s535] sm:$0xff]
    %v538 = vsel %vm136, %v527, 0
    %v541 = vsel %vm136, %v532, 0
    %543 = vmatprep.subr.mxu0 0.0
    %544 = vmatpush1.msra.mxu0 %v536
    %545 = vmatprep.subr.mxu0 0.0
    %546 = vmatpush1.msra.mxu0 0.0
    %547 = vmatprep.subr.mxu0 0.0
    %548 = vmatpush1.msra.mxu0 0.0
    %549 = vmatprep.subr.mxu0 0.0
    %550 = vmatpush1.msra.mxu0 0.0
    %551 = vmatprep.subr.mxu0 0.0
    %552 = vmatpush1.msra.mxu0 0.0
    %553 = vmatprep.subr.mxu0 0.0
    %554 = vmatpush1.msra.mxu0 0.0
    %555 = vmatprep.subr.mxu0 0.0
    %556 = vmatpush1.msra.mxu0 0.0
    %557 = vmatprep.subr.mxu0 0.0
    %558 = vmatpush1.msra.mxu0 0.0
    %559 = vmatprep.subr.mxu0 0.0
    %560 = vmatpush1.msra.mxu0 0.0
    %561 = vmatprep.subr.mxu0 0.0
    %562 = vmatpush1.msra.mxu0 0.0
    %563 = vmatprep.subr.mxu0 0.0
    %564 = vmatpush1.msra.mxu0 0.0
    %565 = vmatprep.subr.mxu0 0.0
    %566 = vmatpush1.msra.mxu0 0.0
    %567 = vmatprep.subr.mxu0 0.0
    %568 = vmatpush1.msra.mxu0 0.0
    %569 = vmatprep.subr.mxu0 0.0
    %570 = vmatpush1.msra.mxu0 0.0
    %571 = vmatprep.subr.mxu0 0.0
    %572 = vmatpush1.msra.mxu0 0.0
    %573 = vmatprep.subr.mxu0 0.0
    %574 = vmatpush1.msra.mxu0 0.0
    %575 = vmatprep.subr.mxu0 0.0
    %576 = vmatpush1.msra.mxu0 0.0
    %577 = vmatprep.subr.mxu0 0.0
    %578 = vmatpush1.msra.mxu0 0.0
    %579 = vmatprep.subr.mxu0 0.0
    %580 = vmatpush1.msra.mxu0 0.0
    %581 = vmatprep.subr.mxu0 0.0
    %582 = vmatpush1.msra.mxu0 0.0
    %583 = vmatprep.subr.mxu0 0.0
    %584 = vmatpush1.msra.mxu0 0.0
    %585 = vmatprep.subr.mxu0 0.0
    %586 = vmatpush1.msra.mxu0 0.0
    %587 = vmatprep.subr.mxu0 0.0
    %588 = vmatpush1.msra.mxu0 0.0
    %589 = vmatprep.subr.mxu0 0.0
    %590 = vmatpush1.msra.mxu0 0.0
    %591 = vmatprep.subr.mxu0 0.0
    %592 = vmatpush1.msra.mxu0 0.0
    %593 = vmatprep.subr.mxu0 0.0
    %594 = vmatpush1.msra.mxu0 0.0
    %595 = vmatprep.subr.mxu0 0.0
    %596 = vmatpush1.msra.mxu0 0.0
    %597 = vmatprep.subr.mxu0 0.0
    %598 = vmatpush1.msra.mxu0 0.0
    %599 = vmatprep.subr.mxu0 0.0
    %600 = vmatpush1.msra.mxu0 0.0
    %601 = vmatprep.subr.mxu0 0.0
    %602 = vmatpush1.msra.mxu0 0.0
    %603 = vmatprep.subr.mxu0 0.0
    %604 = vmatpush1.msra.mxu0 0.0
    %605 = vmatprep.subr.mxu0 0.0
    %606 = vmatpush1.msra.mxu0 0.0
    %607 = vmatprep.mubr.f32.mxu0 0.0
    %608 = vmatmul.mubr.f32.gmra.mrb[0].mxu0 %v538
    %v609 = vpop.f32.mrb[0].mxu0
    %v610 = vadd.f32 0.0, %v609
    %v611 = vpop.f32.mrb[0].mxu0
    %612 = vmatprep.mubr.f32.mxu0 0.0
    %613 = vmatmul.mubr.f32.gmra.mrb[0].mxu0 %v541
    %v614 = vpop.f32.mrb[0].mxu0
    %v615 = vadd.f32 0.0, %v614
    %v616 = vpop.f32.mrb[0].mxu0
    %617 = vdwg.mxu0
    %v619 = vsel %vm136, %v325, 0
    %v622 = vsel %vm136, %v330, 0
    %624 = vmatprep.subr.mxu0 0.0
    %625 = vmatpush1.msra.mxu0 %v333
    %626 = vmatprep.subr.mxu0 0.0
    %627 = vmatpush1.msra.mxu0 0.0
    %628 = vmatprep.subr.mxu0 0.0
    %629 = vmatpush1.msra.mxu0 0.0
    %630 = vmatprep.subr.mxu0 0.0
    %631 = vmatpush1.msra.mxu0 0.0
    %632 = vmatprep.subr.mxu0 0.0
    %633 = vmatpush1.msra.mxu0 0.0
    %634 = vmatprep.subr.mxu0 0.0
    %635 = vmatpush1.msra.mxu0 0.0
    %636 = vmatprep.subr.mxu0 0.0
    %637 = vmatpush1.msra.mxu0 0.0
    %638 = vmatprep.subr.mxu0 0.0
    %639 = vmatpush1.msra.mxu0 0.0
    %640 = vmatprep.subr.mxu0 0.0
    %641 = vmatpush1.msra.mxu0 0.0
    %642 = vmatprep.subr.mxu0 0.0
    %643 = vmatpush1.msra.mxu0 0.0
    %644 = vmatprep.subr.mxu0 0.0
    %645 = vmatpush1.msra.mxu0 0.0
    %646 = vmatprep.subr.mxu0 0.0
    %647 = vmatpush1.msra.mxu0 0.0
    %648 = vmatprep.subr.mxu0 0.0
    %649 = vmatpush1.msra.mxu0 0.0
    %650 = vmatprep.subr.mxu0 0.0
    %651 = vmatpush1.msra.mxu0 0.0
    %652 = vmatprep.subr.mxu0 0.0
    %653 = vmatpush1.msra.mxu0 0.0
    %654 = vmatprep.subr.mxu0 0.0
    %655 = vmatpush1.msra.mxu0 0.0
    %656 = vmatprep.subr.mxu0 0.0
    %657 = vmatpush1.msra.mxu0 0.0
    %658 = vmatprep.subr.mxu0 0.0
    %659 = vmatpush1.msra.mxu0 0.0
    %660 = vmatprep.subr.mxu0 0.0
    %661 = vmatpush1.msra.mxu0 0.0
    %662 = vmatprep.subr.mxu0 0.0
    %663 = vmatpush1.msra.mxu0 0.0
    %664 = vmatprep.subr.mxu0 0.0
    %665 = vmatpush1.msra.mxu0 0.0
    %666 = vmatprep.subr.mxu0 0.0
    %667 = vmatpush1.msra.mxu0 0.0
    %668 = vmatprep.subr.mxu0 0.0
    %669 = vmatpush1.msra.mxu0 0.0
    %670 = vmatprep.subr.mxu0 0.0
    %671 = vmatpush1.msra.mxu0 0.0
    %672 = vmatprep.subr.mxu0 0.0
    %673 = vmatpush1.msra.mxu0 0.0
    %674 = vmatprep.subr.mxu0 0.0
    %675 = vmatpush1.msra.mxu0 0.0
    %676 = vmatprep.subr.mxu0 0.0
    %677 = vmatpush1.msra.mxu0 0.0
    %678 = vmatprep.subr.mxu0 0.0
    %679 = vmatpush1.msra.mxu0 0.0
    %680 = vmatprep.subr.mxu0 0.0
    %681 = vmatpush1.msra.mxu0 0.0
    %682 = vmatprep.subr.mxu0 0.0
    %683 = vmatpush1.msra.mxu0 0.0
    %684 = vmatprep.subr.mxu0 0.0
    %685 = vmatpush1.msra.mxu0 0.0
    %686 = vmatprep.subr.mxu0 0.0
    %687 = vmatpush1.msra.mxu0 0.0
    %688 = vmatprep.mubr.f32.mxu0 0.0
    %689 = vmatmul.mubr.f32.gmra.mrb[0].mxu0 %v619
    %v690 = vpop.f32.mrb[0].mxu0
    %v691 = vadd.f32 %v610, %v690
    %v692 = vpop.f32.mrb[0].mxu0
    %693 = vmatprep.mubr.f32.mxu0 0.0
    %694 = vmatmul.mubr.f32.gmra.mrb[0].mxu0 %v622
    %v695 = vpop.f32.mrb[0].mxu0
    %v696 = vadd.f32 %v615, %v695
    %v697 = vpop.f32.mrb[0].mxu0
    %698 = vdwg.mxu0
    %699 = vrot.lane.b32.xlu0 %v122, 112
    %v700 = vpop.permute.xlu0 %699
    %701 = vrot.lane.b32.xlu0 %v127, 112
    %v702 = vpop.permute.xlu0 %701
    %703 = vrot.lane.b32.xlu0 %v122, 80
    %v704 = vpop.permute.xlu0 %703
    %705 = vrot.lane.b32.xlu0 %v127, 80
    %v706 = vpop.permute.xlu0 %705
    %v707 = vsel %vm136, %v700, 0
    %v709 = vsel %vm136, %v702, 0
    %v711 = vsel %vm136, %v704, 0
    %v713 = vsel %vm136, %v706, 0
    %715 = vmatprep.subr.mxu0 0.0
    %716 = vmatpush1.xpose.msra.mxu0 %v711
    %717 = vmatprep.subr.mxu0 0.0
    %718 = vmatpush1.xpose.msra.mxu0 %v713
    %719 = vmatprep.subr.mxu0 0.0
    %720 = vmatpush1.xpose.msra.mxu0 0.0
    %721 = vmatprep.subr.mxu0 0.0
    %722 = vmatpush1.xpose.msra.mxu0 0.0
    %723 = vmatprep.subr.mxu0 0.0
    %724 = vmatpush1.xpose.msra.mxu0 0.0
    %725 = vmatprep.subr.mxu0 0.0
    %726 = vmatpush1.xpose.msra.mxu0 0.0
    %727 = vmatprep.subr.mxu0 0.0
    %728 = vmatpush1.xpose.msra.mxu0 0.0
    %729 = vmatprep.subr.mxu0 0.0
    %730 = vmatpush1.xpose.msra.mxu0 0.0
    %731 = vmatprep.subr.mxu0 0.0
    %732 = vmatpush1.xpose.msra.mxu0 0.0
    %733 = vmatprep.subr.mxu0 0.0
    %734 = vmatpush1.xpose.msra.mxu0 0.0
    %735 = vmatprep.subr.mxu0 0.0
    %736 = vmatpush1.xpose.msra.mxu0 0.0
    %737 = vmatprep.subr.mxu0 0.0
    %738 = vmatpush1.xpose.msra.mxu0 0.0
    %739 = vmatprep.subr.mxu0 0.0
    %740 = vmatpush1.xpose.msra.mxu0 0.0
    %741 = vmatprep.subr.mxu0 0.0
    %742 = vmatpush1.xpose.msra.mxu0 0.0
    %743 = vmatprep.subr.mxu0 0.0
    %744 = vmatpush1.xpose.msra.mxu0 0.0
    %745 = vmatprep.subr.mxu0 0.0
    %746 = vmatpush1.xpose.msra.mxu0 0.0
    %747 = vmatprep.subr.mxu0 0.0
    %748 = vmatpush1.xpose.msra.mxu0 0.0
    %749 = vmatprep.subr.mxu0 0.0
    %750 = vmatpush1.xpose.msra.mxu0 0.0
    %751 = vmatprep.subr.mxu0 0.0
    %752 = vmatpush1.xpose.msra.mxu0 0.0
    %753 = vmatprep.subr.mxu0 0.0
    %754 = vmatpush1.xpose.msra.mxu0 0.0
    %755 = vmatprep.subr.mxu0 0.0
    %756 = vmatpush1.xpose.msra.mxu0 0.0
    %757 = vmatprep.subr.mxu0 0.0
    %758 = vmatpush1.xpose.msra.mxu0 0.0
    %759 = vmatprep.subr.mxu0 0.0
    %760 = vmatpush1.xpose.msra.mxu0 0.0
    %761 = vmatprep.subr.mxu0 0.0
    %762 = vmatpush1.xpose.msra.mxu0 0.0
    %763 = vmatprep.subr.mxu0 0.0
    %764 = vmatpush1.xpose.msra.mxu0 0.0
    %765 = vmatprep.subr.mxu0 0.0
    %766 = vmatpush1.xpose.msra.mxu0 0.0
    %767 = vmatprep.subr.mxu0 0.0
    %768 = vmatpush1.xpose.msra.mxu0 0.0
    %769 = vmatprep.subr.mxu0 0.0
    %770 = vmatpush1.xpose.msra.mxu0 0.0
    %771 = vmatprep.subr.mxu0 0.0
    %772 = vmatpush1.xpose.msra.mxu0 0.0
    %773 = vmatprep.subr.mxu0 0.0
    %774 = vmatpush1.xpose.msra.mxu0 0.0
    %775 = vmatprep.subr.mxu0 0.0
    %776 = vmatpush1.xpose.msra.mxu0 0.0
    %777 = vmatprep.subr.mxu0 0.0
    %778 = vmatpush1.xpose.msra.mxu0 0.0
    %779 = vmatprep.mubr.f32.mxu0 0.0
    %780 = vmatmul.mubr.f32.gmra.mrb[0].mxu0 %v707
    %v781 = vpop.f32.mrb[0].mxu0
    %v782 = vadd.f32 0.0, %v781
    %v783 = vpop.f32.mrb[0].mxu0
    %784 = vmatprep.mubr.f32.mxu0 0.0
    %785 = vmatmul.mubr.f32.gmra.mrb[0].mxu0 %v709
    %v786 = vpop.f32.mrb[0].mxu0
    %v787 = vadd.f32 0.0, %v786
    %v788 = vpop.f32.mrb[0].mxu0
    %789 = vdwg.mxu0
    %v790 = vsel %vm220, %v782, -inf
    %791 = vmax.xlane.f32.xlu0 %v790
    %v792 = vpop.xlane.xlu0 %791
    %v793 = vsel %vm224, %v787, -inf
    %794 = vmax.xlane.f32.xlu0 %v793
    %v795 = vpop.xlane.xlu0 %794
    %v796 = vsub.f32 %v782, %v792
    %v797 = vsub.f32 %v787, %v795
    %v798 = vmul.f32 %v796, 1.442695
    %v799 = vpow.pop %v798
    %v800 = vmul.f32 %v797, 1.442695
    %v801 = vpow.pop %v800
    %v802 = vsel %vm220, %v799, 0.0
    %803 = vadd.xlane.f32.xlu0 %v802
    %v804 = vpop.xlane.xlu0 %803
    %v805 = vsel %vm224, %v801, 0.0
    %806 = vadd.xlane.f32.xlu0 %v805
    %v807 = vpop.xlane.xlu0 %806
    %v808 = vrcp.pop %v804
    %v809 = vrcp.pop %v807
    %v810 = vmul.f32 %v799, %v808
    %v811 = vmul.f32 %v801, %v809
    %812 = vrot.lane.b32.xlu0 %v122, 48
    %v813 = vpop.permute.xlu0 %812
    %814 = vrot.lane.b32.xlu0 %v127, 48
    %v815 = vpop.permute.xlu0 %814
    %v818 = vsel %vm220, %v810, 0
    %v821 = vsel %vm220, %v811, 0
    %v823 = vsel %vm255, %v815, 0
    %825 = vmatprep.subr.mxu0 0.0
    %826 = vmatpush1.msra.mxu0 %v813
    %827 = vmatprep.subr.mxu0 0.0
    %828 = vmatpush1.msra.mxu0 %v823
    %829 = vmatprep.subr.mxu0 0.0
    %830 = vmatpush1.msra.mxu0 0.0
    %831 = vmatprep.subr.mxu0 0.0
    %832 = vmatpush1.msra.mxu0 0.0
    %833 = vmatprep.subr.mxu0 0.0
    %834 = vmatpush1.msra.mxu0 0.0
    %835 = vmatprep.subr.mxu0 0.0
    %836 = vmatpush1.msra.mxu0 0.0
    %837 = vmatprep.subr.mxu0 0.0
    %838 = vmatpush1.msra.mxu0 0.0
    %839 = vmatprep.subr.mxu0 0.0
    %840 = vmatpush1.msra.mxu0 0.0
    %841 = vmatprep.subr.mxu0 0.0
    %842 = vmatpush1.msra.mxu0 0.0
    %843 = vmatprep.subr.mxu0 0.0
    %844 = vmatpush1.msra.mxu0 0.0
    %845 = vmatprep.subr.mxu0 0.0
    %846 = vmatpush1.msra.mxu0 0.0
    %847 = vmatprep.subr.mxu0 0.0
    %848 = vmatpush1.msra.mxu0 0.0
    %849 = vmatprep.subr.mxu0 0.0
    %850 = vmatpush1.msra.mxu0 0.0
    %851 = vmatprep.subr.mxu0 0.0
    %852 = vmatpush1.msra.mxu0 0.0
    %853 = vmatprep.subr.mxu0 0.0
    %854 = vmatpush1.msra.mxu0 0.0
    %855 = vmatprep.subr.mxu0 0.0
    %856 = vmatpush1.msra.mxu0 0.0
    %857 = vmatprep.subr.mxu0 0.0
    %858 = vmatpush1.msra.mxu0 0.0
    %859 = vmatprep.subr.mxu0 0.0
    %860 = vmatpush1.msra.mxu0 0.0
    %861 = vmatprep.subr.mxu0 0.0
    %862 = vmatpush1.msra.mxu0 0.0
    %863 = vmatprep.subr.mxu0 0.0
    %864 = vmatpush1.msra.mxu0 0.0
    %865 = vmatprep.subr.mxu0 0.0
    %866 = vmatpush1.msra.mxu0 0.0
    %867 = vmatprep.subr.mxu0 0.0
    %868 = vmatpush1.msra.mxu0 0.0
    %869 = vmatprep.subr.mxu0 0.0
    %870 = vmatpush1.msra.mxu0 0.0
    %871 = vmatprep.subr.mxu0 0.0
    %872 = vmatpush1.msra.mxu0 0.0
    %873 = vmatprep.subr.mxu0 0.0
    %874 = vmatpush1.msra.mxu0 0.0
    %875 = vmatprep.subr.mxu0 0.0
    %876 = vmatpush1.msra.mxu0 0.0
    %877 = vmatprep.subr.mxu0 0.0
    %878 = vmatpush1.msra.mxu0 0.0
    %879 = vmatprep.subr.mxu0 0.0
    %880 = vmatpush1.msra.mxu0 0.0
    %881 = vmatprep.subr.mxu0 0.0
    %882 = vmatpush1.msra.mxu0 0.0
    %883 = vmatprep.subr.mxu0 0.0
    %884 = vmatpush1.msra.mxu0 0.0
    %885 = vmatprep.subr.mxu0 0.0
    %886 = vmatpush1.msra.mxu0 0.0
    %887 = vmatprep.subr.mxu0 0.0
    %888 = vmatpush1.msra.mxu0 0.0
    %889 = vmatprep.mubr.f32.mxu0 0.0
    %890 = vmatmul.mubr.f32.gmra.mrb[0].mxu0 %v818
    %v891 = vpop.f32.mrb[0].mxu0
    %v892 = vadd.f32 0.0, %v891
    %v893 = vpop.f32.mrb[0].mxu0
    %894 = vmatprep.mubr.f32.mxu0 0.0
    %895 = vmatmul.mubr.f32.gmra.mrb[0].mxu0 %v821
    %v896 = vpop.f32.mrb[0].mxu0
    %v897 = vadd.f32 0.0, %v896
    %v898 = vpop.f32.mrb[0].mxu0
    %899 = vdwg.mxu0
    %s900 = scalar_lea.vmem %s2, 16
    %v901 = vld [vmem:[%s900] sm:$0xff]
    %v903 = vsel %vm136, %v892, 0
    %v906 = vsel %vm136, %v897, 0
    %908 = vmatprep.subr.mxu0 0.0
    %909 = vmatpush1.msra.mxu0 %v901
    %910 = vmatprep.subr.mxu0 0.0
    %911 = vmatpush1.msra.mxu0 0.0
    %912 = vmatprep.subr.mxu0 0.0
    %913 = vmatpush1.msra.mxu0 0.0
    %914 = vmatprep.subr.mxu0 0.0
    %915 = vmatpush1.msra.mxu0 0.0
    %916 = vmatprep.subr.mxu0 0.0
    %917 = vmatpush1.msra.mxu0 0.0
    %918 = vmatprep.subr.mxu0 0.0
    %919 = vmatpush1.msra.mxu0 0.0
    %920 = vmatprep.subr.mxu0 0.0
    %921 = vmatpush1.msra.mxu0 0.0
    %922 = vmatprep.subr.mxu0 0.0
    %923 = vmatpush1.msra.mxu0 0.0
    %924 = vmatprep.subr.mxu0 0.0
    %925 = vmatpush1.msra.mxu0 0.0
    %926 = vmatprep.subr.mxu0 0.0
    %927 = vmatpush1.msra.mxu0 0.0
    %928 = vmatprep.subr.mxu0 0.0
    %929 = vmatpush1.msra.mxu0 0.0
    %930 = vmatprep.subr.mxu0 0.0
    %931 = vmatpush1.msra.mxu0 0.0
    %932 = vmatprep.subr.mxu0 0.0
    %933 = vmatpush1.msra.mxu0 0.0
    %934 = vmatprep.subr.mxu0 0.0
    %935 = vmatpush1.msra.mxu0 0.0
    %936 = vmatprep.subr.mxu0 0.0
    %937 = vmatpush1.msra.mxu0 0.0
    %938 = vmatprep.subr.mxu0 0.0
    %939 = vmatpush1.msra.mxu0 0.0
    %940 = vmatprep.subr.mxu0 0.0
    %941 = vmatpush1.msra.mxu0 0.0
    %942 = vmatprep.subr.mxu0 0.0
    %943 = vmatpush1.msra.mxu0 0.0
    %944 = vmatprep.subr.mxu0 0.0
    %945 = vmatpush1.msra.mxu0 0.0
    %946 = vmatprep.subr.mxu0 0.0
    %947 = vmatpush1.msra.mxu0 0.0
    %948 = vmatprep.subr.mxu0 0.0
    %949 = vmatpush1.msra.mxu0 0.0
    %950 = vmatprep.subr.mxu0 0.0
    %951 = vmatpush1.msra.mxu0 0.0
    %952 = vmatprep.subr.mxu0 0.0
    %953 = vmatpush1.msra.mxu0 0.0
    %954 = vmatprep.subr.mxu0 0.0
    %955 = vmatpush1.msra.mxu0 0.0
    %956 = vmatprep.subr.mxu0 0.0
    %957 = vmatpush1.msra.mxu0 0.0
    %958 = vmatprep.subr.mxu0 0.0
    %959 = vmatpush1.msra.mxu0 0.0
    %960 = vmatprep.subr.mxu0 0.0
    %961 = vmatpush1.msra.mxu0 0.0
    %962 = vmatprep.subr.mxu0 0.0
    %963 = vmatpush1.msra.mxu0 0.0
    %964 = vmatprep.subr.mxu0 0.0
    %965 = vmatpush1.msra.mxu0 0.0
    %966 = vmatprep.subr.mxu0 0.0
    %967 = vmatpush1.msra.mxu0 0.0
    %968 = vmatprep.subr.mxu0 0.0
    %969 = vmatpush1.msra.mxu0 0.0
    %970 = vmatprep.subr.mxu0 0.0
    %971 = vmatpush1.msra.mxu0 0.0
    %972 = vmatprep.mubr.f32.mxu0 0.0
    %973 = vmatmul.mubr.f32.gmra.mrb[0].mxu0 %v903
    %v974 = vpop.f32.mrb[0].mxu0
    %v975 = vadd.f32 0.0, %v974
    %v976 = vpop.f32.mrb[0].mxu0
    %977 = vmatprep.mubr.f32.mxu0 0.0
    %978 = vmatmul.mubr.f32.gmra.mrb[0].mxu0 %v906
    %v979 = vpop.f32.mrb[0].mxu0
    %v980 = vadd.f32 0.0, %v979
    %v981 = vpop.f32.mrb[0].mxu0
    %982 = vdwg.mxu0
    %v983 = vadd.f32 %v691, %v975
    %v984 = vadd.f32 %v696, %v980
    %985 = vrot.lane.b32.xlu0 %v122, 104
    %v986 = vpop.permute.xlu0 %985
    %987 = vrot.lane.b32.xlu0 %v127, 104
    %v988 = vpop.permute.xlu0 %987
    %989 = vrot.lane.b32.xlu0 %v122, 72
    %v990 = vpop.permute.xlu0 %989
    %991 = vrot.lane.b32.xlu0 %v127, 72
    %v992 = vpop.permute.xlu0 %991
    %v993 = vsel %vm136, %v986, 0
    %v995 = vsel %vm136, %v988, 0
    %v997 = vsel %vm136, %v990, 0
    %v999 = vsel %vm136, %v992, 0
    %1001 = vmatprep.subr.mxu0 0.0
    %1002 = vmatpush1.xpose.msra.mxu0 %v997
    %1003 = vmatprep.subr.mxu0 0.0
    %1004 = vmatpush1.xpose.msra.mxu0 %v999
    %1005 = vmatprep.subr.mxu0 0.0
    %1006 = vmatpush1.xpose.msra.mxu0 0.0
    %1007 = vmatprep.subr.mxu0 0.0
    %1008 = vmatpush1.xpose.msra.mxu0 0.0
    %1009 = vmatprep.subr.mxu0 0.0
    %1010 = vmatpush1.xpose.msra.mxu0 0.0
    %1011 = vmatprep.subr.mxu0 0.0
    %1012 = vmatpush1.xpose.msra.mxu0 0.0
    %1013 = vmatprep.subr.mxu0 0.0
    %1014 = vmatpush1.xpose.msra.mxu0 0.0
    %1015 = vmatprep.subr.mxu0 0.0
    %1016 = vmatpush1.xpose.msra.mxu0 0.0
    %1017 = vmatprep.subr.mxu0 0.0
    %1018 = vmatpush1.xpose.msra.mxu0 0.0
    %1019 = vmatprep.subr.mxu0 0.0
    %1020 = vmatpush1.xpose.msra.mxu0 0.0
    %1021 = vmatprep.subr.mxu0 0.0
    %1022 = vmatpush1.xpose.msra.mxu0 0.0
    %1023 = vmatprep.subr.mxu0 0.0
    %1024 = vmatpush1.xpose.msra.mxu0 0.0
    %1025 = vmatprep.subr.mxu0 0.0
    %1026 = vmatpush1.xpose.msra.mxu0 0.0
    %1027 = vmatprep.subr.mxu0 0.0
    %1028 = vmatpush1.xpose.msra.mxu0 0.0
    %1029 = vmatprep.subr.mxu0 0.0
    %1030 = vmatpush1.xpose.msra.mxu0 0.0
    %1031 = vmatprep.subr.mxu0 0.0
    %1032 = vmatpush1.xpose.msra.mxu0 0.0
    %1033 = vmatprep.subr.mxu0 0.0
    %1034 = vmatpush1.xpose.msra.mxu0 0.0
    %1035 = vmatprep.subr.mxu0 0.0
    %1036 = vmatpush1.xpose.msra.mxu0 0.0
    %1037 = vmatprep.subr.mxu0 0.0
    %1038 = vmatpush1.xpose.msra.mxu0 0.0
    %1039 = vmatprep.subr.mxu0 0.0
    %1040 = vmatpush1.xpose.msra.mxu0 0.0
    %1041 = vmatprep.subr.mxu0 0.0
    %1042 = vmatpush1.xpose.msra.mxu0 0.0
    %1043 = vmatprep.subr.mxu0 0.0
    %1044 = vmatpush1.xpose.msra.mxu0 0.0
    %1045 = vmatprep.subr.mxu0 0.0
    %1046 = vmatpush1.xpose.msra.mxu0 0.0
    %1047 = vmatprep.subr.mxu0 0.0
    %1048 = vmatpush1.xpose.msra.mxu0 0.0
    %1049 = vmatprep.subr.mxu0 0.0
    %1050 = vmatpush1.xpose.msra.mxu0 0.0
    %1051 = vmatprep.subr.mxu0 0.0
    %1052 = vmatpush1.xpose.msra.mxu0 0.0
    %1053 = vmatprep.subr.mxu0 0.0
    %1054 = vmatpush1.xpose.msra.mxu0 0.0
    %1055 = vmatprep.subr.mxu0 0.0
    %1056 = vmatpush1.xpose.msra.mxu0 0.0
    %1057 = vmatprep.subr.mxu0 0.0
    %1058 = vmatpush1.xpose.msra.mxu0 0.0
    %1059 = vmatprep.subr.mxu0 0.0
    %1060 = vmatpush1.xpose.msra.mxu0 0.0
    %1061 = vmatprep.subr.mxu0 0.0
    %1062 = vmatpush1.xpose.msra.mxu0 0.0
    %1063 = vmatprep.subr.mxu0 0.0
    %1064 = vmatpush1.xpose.msra.mxu0 0.0
    %1065 = vmatprep.mubr.f32.mxu0 0.0
    %1066 = vmatmul.mubr.f32.gmra.mrb[0].mxu0 %v993
    %v1067 = vpop.f32.mrb[0].mxu0
    %v1068 = vadd.f32 0.0, %v1067
    %v1069 = vpop.f32.mrb[0].mxu0
    %1070 = vmatprep.mubr.f32.mxu0 0.0
    %1071 = vmatmul.mubr.f32.gmra.mrb[0].mxu0 %v995
    %v1072 = vpop.f32.mrb[0].mxu0
    %v1073 = vadd.f32 0.0, %v1072
    %v1074 = vpop.f32.mrb[0].mxu0
    %1075 = vdwg.mxu0
    %v1076 = vsel %vm220, %v1068, -inf
    %1077 = vmax.xlane.f32.xlu0 %v1076
    %v1078 = vpop.xlane.xlu0 %1077
    %v1079 = vsel %vm224, %v1073, -inf
    %1080 = vmax.xlane.f32.xlu0 %v1079
    %v1081 = vpop.xlane.xlu0 %1080
    %v1082 = vsub.f32 %v1068, %v1078
    %v1083 = vsub.f32 %v1073, %v1081
    %v1084 = vmul.f32 %v1082, 1.442695
    %v1085 = vpow.pop %v1084
    %v1086 = vmul.f32 %v1083, 1.442695
    %v1087 = vpow.pop %v1086
    %v1088 = vsel %vm220, %v1085, 0.0
    %1089 = vadd.xlane.f32.xlu0 %v1088
    %v1090 = vpop.xlane.xlu0 %1089
    %v1091 = vsel %vm224, %v1087, 0.0
    %1092 = vadd.xlane.f32.xlu0 %v1091
    %v1093 = vpop.xlane.xlu0 %1092
    %v1094 = vrcp.pop %v1090
    %v1095 = vrcp.pop %v1093
    %v1096 = vmul.f32 %v1085, %v1094
    %v1097 = vmul.f32 %v1087, %v1095
    %1098 = vrot.lane.b32.xlu0 %v122, 40
    %v1099 = vpop.permute.xlu0 %1098
    %1100 = vrot.lane.b32.xlu0 %v127, 40
    %v1101 = vpop.permute.xlu0 %1100
    %v1104 = vsel %vm220, %v1096, 0
    %v1107 = vsel %vm220, %v1097, 0
    %v1109 = vsel %vm255, %v1101, 0
    %1111 = vmatprep.subr.mxu0 0.0
    %1112 = vmatpush1.msra.mxu0 %v1099
    %1113 = vmatprep.subr.mxu0 0.0
    %1114 = vmatpush1.msra.mxu0 %v1109
    %1115 = vmatprep.subr.mxu0 0.0
    %1116 = vmatpush1.msra.mxu0 0.0
    %1117 = vmatprep.subr.mxu0 0.0
    %1118 = vmatpush1.msra.mxu0 0.0
    %1119 = vmatprep.subr.mxu0 0.0
    %1120 = vmatpush1.msra.mxu0 0.0
    %1121 = vmatprep.subr.mxu0 0.0
    %1122 = vmatpush1.msra.mxu0 0.0
    %1123 = vmatprep.subr.mxu0 0.0
    %1124 = vmatpush1.msra.mxu0 0.0
    %1125 = vmatprep.subr.mxu0 0.0
    %1126 = vmatpush1.msra.mxu0 0.0
    %1127 = vmatprep.subr.mxu0 0.0
    %1128 = vmatpush1.msra.mxu0 0.0
    %1129 = vmatprep.subr.mxu0 0.0
    %1130 = vmatpush1.msra.mxu0 0.0
    %1131 = vmatprep.subr.mxu0 0.0
    %1132 = vmatpush1.msra.mxu0 0.0
    %1133 = vmatprep.subr.mxu0 0.0
    %1134 = vmatpush1.msra.mxu0 0.0
    %1135 = vmatprep.subr.mxu0 0.0
    %1136 = vmatpush1.msra.mxu0 0.0
    %1137 = vmatprep.subr.mxu0 0.0
    %1138 = vmatpush1.msra.mxu0 0.0
    %1139 = vmatprep.subr.mxu0 0.0
    %1140 = vmatpush1.msra.mxu0 0.0
    %1141 = vmatprep.subr.mxu0 0.0
    %1142 = vmatpush1.msra.mxu0 0.0
    %1143 = vmatprep.subr.mxu0 0.0
    %1144 = vmatpush1.msra.mxu0 0.0
    %1145 = vmatprep.subr.mxu0 0.0
    %1146 = vmatpush1.msra.mxu0 0.0
    %1147 = vmatprep.subr.mxu0 0.0
    %1148 = vmatpush1.msra.mxu0 0.0
    %1149 = vmatprep.subr.mxu0 0.0
    %1150 = vmatpush1.msra.mxu0 0.0
    %1151 = vmatprep.subr.mxu0 0.0
    %1152 = vmatpush1.msra.mxu0 0.0
    %1153 = vmatprep.subr.mxu0 0.0
    %1154 = vmatpush1.msra.mxu0 0.0
    %1155 = vmatprep.subr.mxu0 0.0
    %1156 = vmatpush1.msra.mxu0 0.0
    %1157 = vmatprep.subr.mxu0 0.0
    %1158 = vmatpush1.msra.mxu0 0.0
    %1159 = vmatprep.subr.mxu0 0.0
    %1160 = vmatpush1.msra.mxu0 0.0
    %1161 = vmatprep.subr.mxu0 0.0
    %1162 = vmatpush1.msra.mxu0 0.0
    %1163 = vmatprep.subr.mxu0 0.0
    %1164 = vmatpush1.msra.mxu0 0.0
    %1165 = vmatprep.subr.mxu0 0.0
    %1166 = vmatpush1.msra.mxu0 0.0
    %1167 = vmatprep.subr.mxu0 0.0
    %1168 = vmatpush1.msra.mxu0 0.0
    %1169 = vmatprep.subr.mxu0 0.0
    %1170 = vmatpush1.msra.mxu0 0.0
    %1171 = vmatprep.subr.mxu0 0.0
    %1172 = vmatpush1.msra.mxu0 0.0
    %1173 = vmatprep.subr.mxu0 0.0
    %1174 = vmatpush1.msra.mxu0 0.0
    %1175 = vmatprep.mubr.f32.mxu0 0.0
    %1176 = vmatmul.mubr.f32.gmra.mrb[0].mxu0 %v1104
    %v1177 = vpop.f32.mrb[0].mxu0
    %v1178 = vadd.f32 0.0, %v1177
    %v1179 = vpop.f32.mrb[0].mxu0
    %1180 = vmatprep.mubr.f32.mxu0 0.0
    %1181 = vmatmul.mubr.f32.gmra.mrb[0].mxu0 %v1107
    %v1182 = vpop.f32.mrb[0].mxu0
    %v1183 = vadd.f32 0.0, %v1182
    %v1184 = vpop.f32.mrb[0].mxu0
    %1185 = vdwg.mxu0
    %s1186 = scalar_lea.vmem %s2, 24
    %v1187 = vld [vmem:[%s1186] sm:$0xff]
    %v1189 = vsel %vm136, %v1178, 0
    %v1192 = vsel %vm136, %v1183, 0
    %1194 = vmatprep.subr.mxu0 0.0
    %1195 = vmatpush1.msra.mxu0 %v1187
    %1196 = vmatprep.subr.mxu0 0.0
    %1197 = vmatpush1.msra.mxu0 0.0
    %1198 = vmatprep.subr.mxu0 0.0
    %1199 = vmatpush1.msra.mxu0 0.0
    %1200 = vmatprep.subr.mxu0 0.0
    %1201 = vmatpush1.msra.mxu0 0.0
    %1202 = vmatprep.subr.mxu0 0.0
    %1203 = vmatpush1.msra.mxu0 0.0
    %1204 = vmatprep.subr.mxu0 0.0
    %1205 = vmatpush1.msra.mxu0 0.0
    %1206 = vmatprep.subr.mxu0 0.0
    %1207 = vmatpush1.msra.mxu0 0.0
    %1208 = vmatprep.subr.mxu0 0.0
    %1209 = vmatpush1.msra.mxu0 0.0
    %1210 = vmatprep.subr.mxu0 0.0
    %1211 = vmatpush1.msra.mxu0 0.0
    %1212 = vmatprep.subr.mxu0 0.0
    %1213 = vmatpush1.msra.mxu0 0.0
    %1214 = vmatprep.subr.mxu0 0.0
    %1215 = vmatpush1.msra.mxu0 0.0
    %1216 = vmatprep.subr.mxu0 0.0
    %1217 = vmatpush1.msra.mxu0 0.0
    %1218 = vmatprep.subr.mxu0 0.0
    %1219 = vmatpush1.msra.mxu0 0.0
    %1220 = vmatprep.subr.mxu0 0.0
    %1221 = vmatpush1.msra.mxu0 0.0
    %1222 = vmatprep.subr.mxu0 0.0
    %1223 = vmatpush1.msra.mxu0 0.0
    %1224 = vmatprep.subr.mxu0 0.0
    %1225 = vmatpush1.msra.mxu0 0.0
    %1226 = vmatprep.subr.mxu0 0.0
    %1227 = vmatpush1.msra.mxu0 0.0
    %1228 = vmatprep.subr.mxu0 0.0
    %1229 = vmatpush1.msra.mxu0 0.0
    %1230 = vmatprep.subr.mxu0 0.0
    %1231 = vmatpush1.msra.mxu0 0.0
    %1232 = vmatprep.subr.mxu0 0.0
    %1233 = vmatpush1.msra.mxu0 0.0
    %1234 = vmatprep.subr.mxu0 0.0
    %1235 = vmatpush1.msra.mxu0 0.0
    %1236 = vmatprep.subr.mxu0 0.0
    %1237 = vmatpush1.msra.mxu0 0.0
    %1238 = vmatprep.subr.mxu0 0.0
    %1239 = vmatpush1.msra.mxu0 0.0
    %1240 = vmatprep.subr.mxu0 0.0
    %1241 = vmatpush1.msra.mxu0 0.0
    %1242 = vmatprep.subr.mxu0 0.0
    %1243 = vmatpush1.msra.mxu0 0.0
    %1244 = vmatprep.subr.mxu0 0.0
    %1245 = vmatpush1.msra.mxu0 0.0
    %1246 = vmatprep.subr.mxu0 0.0
    %1247 = vmatpush1.msra.mxu0 0.0
    %1248 = vmatprep.subr.mxu0 0.0
    %1249 = vmatpush1.msra.mxu0 0.0
    %1250 = vmatprep.subr.mxu0 0.0
    %1251 = vmatpush1.msra.mxu0 0.0
    %1252 = vmatprep.subr.mxu0 0.0
    %1253 = vmatpush1.msra.mxu0 0.0
    %1254 = vmatprep.subr.mxu0 0.0
    %1255 = vmatpush1.msra.mxu0 0.0
    %1256 = vmatprep.subr.mxu0 0.0
    %1257 = vmatpush1.msra.mxu0 0.0
    %1258 = vmatprep.mubr.f32.mxu0 0.0
    %1259 = vmatmul.mubr.f32.gmra.mrb[0].mxu0 %v1189
    %v1260 = vpop.f32.mrb[0].mxu0
    %v1261 = vadd.f32 0.0, %v1260
    %v1262 = vpop.f32.mrb[0].mxu0
    %1263 = vmatprep.mubr.f32.mxu0 0.0
    %1264 = vmatmul.mubr.f32.gmra.mrb[0].mxu0 %v1192
    %v1265 = vpop.f32.mrb[0].mxu0
    %v1266 = vadd.f32 0.0, %v1265
    %v1267 = vpop.f32.mrb[0].mxu0
    %1268 = vdwg.mxu0
    %v1269 = vadd.f32 %v983, %v1261
    %v1270 = vadd.f32 %v984, %v1266
    %v1271 = vlaneseq
    %v1272 = vshrl.u32 %v1271, 7
    %v1273 = vsub.s32 1, %v1272
    %v1274 = vrot.slane %v39, %v1273
    %v1275 = vadd.f32 %v1269, %v1274
    %v1276 = vadd.f32 %v1270, %v1274
    %v1277 = vadd.f32 %v37, %v1275
    %v1278 = vadd.f32 %v38, %v1276
    %v1279 = vsel %vm48, %v1277, 0.0
    %1280 = vadd.xlane.f32.xlu0 %v1279
    %v1281 = vpop.xlane.xlu0 %1280
    %vm1282 = vcmask 257024
    %v1283 = vsel %vm1282, %v1278, 0.0
    %1284 = vadd.xlane.f32.xlu0 %v1283
    %v1285 = vpop.xlane.xlu0 %1284
    %v1286 = vrcp.pop 32.0
    %v1287 = vmul.f32 %v1281, %v1286
    %v1288 = vmul.f32 %v1285, %v1286
    %v1289 = vsub.f32 %v1277, %v1287
    %v1290 = vsub.f32 %v1278, %v1288
    %v1291 = vmul.f32 %v1289, %v1289
    %v1292 = vmul.f32 %v1290, %v1290
    %v1293 = vsel %vm48, %v1291, 0.0
    %1294 = vadd.xlane.f32.xlu0 %v1293
    %v1295 = vpop.xlane.xlu0 %1294
    %v1296 = vsel %vm1282, %v1292, 0.0
    %1297 = vadd.xlane.f32.xlu0 %v1296
    %v1298 = vpop.xlane.xlu0 %1297
    %v1299 = vmul.f32 %v1295, %v1286
    %v1300 = vmul.f32 %v1298, %v1286
    %v1301 = vadd.f32 %v1299, 1e-05
    %v1302 = vadd.f32 %v1300, 1e-05
    %v1303 = vrsqrt.pop %v1301
    %v1304 = vrsqrt.pop %v1302
    %v1305 = vmul.f32 %v1289, %v1303
    %v1306 = vmul.f32 %v1290, %v1304
    %v1307 = vlaneseq
    %v1308 = vshrl.u32 %v1307, 7
    %v1309 = vsub.s32 4, %v1308
    %v1310 = vrot.slane %v39, %v1309
    %v1311 = vmul.f32 %v1305, %v1310
    %v1312 = vmul.f32 %v1306, %v1310
    %v1313 = vlaneseq
    %v1314 = vshrl.u32 %v1313, 7
    %v1315 = vsub.s32 5, %v1314
    %v1316 = vrot.slane %v39, %v1315
    %v1317 = vadd.f32 %v1311, %v1316
    %v1318 = vadd.f32 %v1312, %v1316
    %v1319 = vld [vmem:[%s3] sm:$0xff]
    %v1320 = vld [vmem:[%s3 + $0x8] sm:$0xff]
    %v1321 = vld [vmem:[%s3 + $0x10] sm:$0xff]
    %v1322 = vld [vmem:[%s3 + $0x18] sm:$0xff]
    %v1323 = vlaneseq
    %v1324 = vshrl.u32 %v1323, 7
    %v1325 = vsub.s32 2, %v1324
    %v1326 = vrot.slane %v39, %v1325
    %v1328 = vsel %vm48, %v1317, 0
    %v1331 = vsel %vm48, %v1318, 0
    %1333 = vmatprep.subr.mxu0 0.0
    %1334 = vmatpush1.msra.mxu0 %v1319
    %1335 = vmatprep.subr.mxu0 0.0
    %1336 = vmatpush1.msra.mxu0 %v1320
    %1337 = vmatprep.subr.mxu0 0.0
    %1338 = vmatpush1.msra.mxu0 %v1321
    %1339 = vmatprep.subr.mxu0 0.0
    %1340 = vmatpush1.msra.mxu0 %v1322
    %1341 = vmatprep.subr.mxu0 0.0
    %1342 = vmatpush1.msra.mxu0 0.0
    %1343 = vmatprep.subr.mxu0 0.0
    %1344 = vmatpush1.msra.mxu0 0.0
    %1345 = vmatprep.subr.mxu0 0.0
    %1346 = vmatpush1.msra.mxu0 0.0
    %1347 = vmatprep.subr.mxu0 0.0
    %1348 = vmatpush1.msra.mxu0 0.0
    %1349 = vmatprep.subr.mxu0 0.0
    %1350 = vmatpush1.msra.mxu0 0.0
    %1351 = vmatprep.subr.mxu0 0.0
    %1352 = vmatpush1.msra.mxu0 0.0
    %1353 = vmatprep.subr.mxu0 0.0
    %1354 = vmatpush1.msra.mxu0 0.0
    %1355 = vmatprep.subr.mxu0 0.0
    %1356 = vmatpush1.msra.mxu0 0.0
    %1357 = vmatprep.subr.mxu0 0.0
    %1358 = vmatpush1.msra.mxu0 0.0
    %1359 = vmatprep.subr.mxu0 0.0
    %1360 = vmatpush1.msra.mxu0 0.0
    %1361 = vmatprep.subr.mxu0 0.0
    %1362 = vmatpush1.msra.mxu0 0.0
    %1363 = vmatprep.subr.mxu0 0.0
    %1364 = vmatpush1.msra.mxu0 0.0
    %1365 = vmatprep.subr.mxu0 0.0
    %1366 = vmatpush1.msra.mxu0 0.0
    %1367 = vmatprep.subr.mxu0 0.0
    %1368 = vmatpush1.msra.mxu0 0.0
    %1369 = vmatprep.subr.mxu0 0.0
    %1370 = vmatpush1.msra.mxu0 0.0
    %1371 = vmatprep.subr.mxu0 0.0
    %1372 = vmatpush1.msra.mxu0 0.0
    %1373 = vmatprep.subr.mxu0 0.0
    %1374 = vmatpush1.msra.mxu0 0.0
    %1375 = vmatprep.subr.mxu0 0.0
    %1376 = vmatpush1.msra.mxu0 0.0
    %1377 = vmatprep.subr.mxu0 0.0
    %1378 = vmatpush1.msra.mxu0 0.0
    %1379 = vmatprep.subr.mxu0 0.0
    %1380 = vmatpush1.msra.mxu0 0.0
    %1381 = vmatprep.subr.mxu0 0.0
    %1382 = vmatpush1.msra.mxu0 0.0
    %1383 = vmatprep.subr.mxu0 0.0
    %1384 = vmatpush1.msra.mxu0 0.0
    %1385 = vmatprep.subr.mxu0 0.0
    %1386 = vmatpush1.msra.mxu0 0.0
    %1387 = vmatprep.subr.mxu0 0.0
    %1388 = vmatpush1.msra.mxu0 0.0
    %1389 = vmatprep.subr.mxu0 0.0
    %1390 = vmatpush1.msra.mxu0 0.0
    %1391 = vmatprep.subr.mxu0 0.0
    %1392 = vmatpush1.msra.mxu0 0.0
    %1393 = vmatprep.subr.mxu0 0.0
    %1394 = vmatpush1.msra.mxu0 0.0
    %1395 = vmatprep.subr.mxu0 0.0
    %1396 = vmatpush1.msra.mxu0 0.0
    %1397 = vmatprep.mubr.f32.mxu0 0.0
    %1398 = vmatmul.mubr.f32.gmra.mrb[0].mxu0 %v1328
    %v1399 = vpop.f32.mrb[0].mxu0
    %v1400 = vadd.f32 %v1326, %v1399
    %v1401 = vpop.f32.mrb[0].mxu0
    %1402 = vmatprep.mubr.f32.mxu0 0.0
    %1403 = vmatmul.mubr.f32.gmra.mrb[0].mxu0 %v1331
    %v1404 = vpop.f32.mrb[0].mxu0
    %v1405 = vadd.f32 %v1326, %v1404
    %v1406 = vpop.f32.mrb[0].mxu0
    %1407 = vdwg.mxu0
    %v1408 = vmax.f32 %v1400, 0.0
    %v1409 = vmax.f32 %v1405, 0.0
    %v1410 = vld [vmem:[#allocation2] sm:$0xff]
    %v1411 = vld [vmem:[#allocation2 + $0x8] sm:$0xff]
    %v1412 = vld [vmem:[#allocation2 + $0x10] sm:$0xff]
    %v1413 = vld [vmem:[#allocation2 + $0x18] sm:$0xff]
    %v1414 = vlaneseq
    %v1415 = vshrl.u32 %v1414, 7
    %v1416 = vsub.s32 3, %v1415
    %v1417 = vrot.slane %v39, %v1416
    %v1419 = vsel %vm48, %v1408, 0
    %v1422 = vsel %vm48, %v1409, 0
    %1424 = vmatprep.subr.mxu0 0.0
    %1425 = vmatpush1.msra.mxu0 %v1410
    %1426 = vmatprep.subr.mxu0 0.0
    %1427 = vmatpush1.msra.mxu0 %v1411
    %1428 = vmatprep.subr.mxu0 0.0
    %1429 = vmatpush1.msra.mxu0 %v1412
    %1430 = vmatprep.subr.mxu0 0.0
    %1431 = vmatpush1.msra.mxu0 %v1413
    %1432 = vmatprep.subr.mxu0 0.0
    %1433 = vmatpush1.msra.mxu0 0.0
    %1434 = vmatprep.subr.mxu0 0.0
    %1435 = vmatpush1.msra.mxu0 0.0
    %1436 = vmatprep.subr.mxu0 0.0
    %1437 = vmatpush1.msra.mxu0 0.0
    %1438 = vmatprep.subr.mxu0 0.0
    %1439 = vmatpush1.msra.mxu0 0.0
    %1440 = vmatprep.subr.mxu0 0.0
    %1441 = vmatpush1.msra.mxu0 0.0
    %1442 = vmatprep.subr.mxu0 0.0
    %1443 = vmatpush1.msra.mxu0 0.0
    %1444 = vmatprep.subr.mxu0 0.0
    %1445 = vmatpush1.msra.mxu0 0.0
    %1446 = vmatprep.subr.mxu0 0.0
    %1447 = vmatpush1.msra.mxu0 0.0
    %1448 = vmatprep.subr.mxu0 0.0
    %1449 = vmatpush1.msra.mxu0 0.0
    %1450 = vmatprep.subr.mxu0 0.0
    %1451 = vmatpush1.msra.mxu0 0.0
    %1452 = vmatprep.subr.mxu0 0.0
    %1453 = vmatpush1.msra.mxu0 0.0
    %1454 = vmatprep.subr.mxu0 0.0
    %1455 = vmatpush1.msra.mxu0 0.0
    %1456 = vmatprep.subr.mxu0 0.0
    %1457 = vmatpush1.msra.mxu0 0.0
    %1458 = vmatprep.subr.mxu0 0.0
    %1459 = vmatpush1.msra.mxu0 0.0
    %1460 = vmatprep.subr.mxu0 0.0
    %1461 = vmatpush1.msra.mxu0 0.0
    %1462 = vmatprep.subr.mxu0 0.0
    %1463 = vmatpush1.msra.mxu0 0.0
    %1464 = vmatprep.subr.mxu0 0.0
    %1465 = vmatpush1.msra.mxu0 0.0
    %1466 = vmatprep.subr.mxu0 0.0
    %1467 = vmatpush1.msra.mxu0 0.0
    %1468 = vmatprep.subr.mxu0 0.0
    %1469 = vmatpush1.msra.mxu0 0.0
    %1470 = vmatprep.subr.mxu0 0.0
    %1471 = vmatpush1.msra.mxu0 0.0
    %1472 = vmatprep.subr.mxu0 0.0
    %1473 = vmatpush1.msra.mxu0 0.0
    %1474 = vmatprep.subr.mxu0 0.0
    %1475 = vmatpush1.msra.mxu0 0.0
    %1476 = vmatprep.subr.mxu0 0.0
    %1477 = vmatpush1.msra.mxu0 0.0
    %1478 = vmatprep.subr.mxu0 0.0
    %1479 = vmatpush1.msra.mxu0 0.0
    %1480 = vmatprep.subr.mxu0 0.0
    %1481 = vmatpush1.msra.mxu0 0.0
    %1482 = vmatprep.subr.mxu0 0.0
    %1483 = vmatpush1.msra.mxu0 0.0
    %1484 = vmatprep.subr.mxu0 0.0
    %1485 = vmatpush1.msra.mxu0 0.0
    %1486 = vmatprep.subr.mxu0 0.0
    %1487 = vmatpush1.msra.mxu0 0.0
    %1488 = vmatprep.mubr.f32.mxu0 0.0
    %1489 = vmatmul.mubr.f32.gmra.mrb[0].mxu0 %v1419
    %v1490 = vpop.f32.mrb[0].mxu0
    %v1491 = vadd.f32 %v1417, %v1490
    %v1492 = vpop.f32.mrb[0].mxu0
    %1493 = vmatprep.mubr.f32.mxu0 0.0
    %1494 = vmatmul.mubr.f32.gmra.mrb[0].mxu0 %v1422
    %v1495 = vpop.f32.mrb[0].mxu0
    %v1496 = vadd.f32 %v1417, %v1495
    %v1497 = vpop.f32.mrb[0].mxu0
    %1498 = vdwg.mxu0
    %v1499 = vadd.f32 %v1317, %v1491
    %v1500 = vadd.f32 %v1318, %v1496
    %v1501 = vsel %vm48, %v1499, 0.0
    %1502 = vadd.xlane.f32.xlu0 %v1501
    %v1503 = vpop.xlane.xlu0 %1502
    %v1504 = vsel %vm1282, %v1500, 0.0
    %1505 = vadd.xlane.f32.xlu0 %v1504
    %v1506 = vpop.xlane.xlu0 %1505
    %v1507 = vmul.f32 %v1503, %v1286
    %v1508 = vmul.f32 %v1506, %v1286
    %v1509 = vsub.f32 %v1499, %v1507
    %v1510 = vsub.f32 %v1500, %v1508
    %v1511 = vmul.f32 %v1509, %v1509
    %v1512 = vmul.f32 %v1510, %v1510
    %v1513 = vsel %vm48, %v1511, 0.0
    %1514 = vadd.xlane.f32.xlu0 %v1513
    %v1515 = vpop.xlane.xlu0 %1514
    %v1516 = vsel %vm1282, %v1512, 0.0
    %1517 = vadd.xlane.f32.xlu0 %v1516
    %v1518 = vpop.xlane.xlu0 %1517
    %v1519 = vmul.f32 %v1515, %v1286
    %v1520 = vmul.f32 %v1518, %v1286
    %v1521 = vadd.f32 %v1519, 1e-05
    %v1522 = vadd.f32 %v1520, 1e-05
    %v1523 = vrsqrt.pop %v1521
    %v1524 = vrsqrt.pop %v1522
    %v1525 = vmul.f32 %v1509, %v1523
    %v1526 = vmul.f32 %v1510, %v1524
    %v1527 = vlaneseq
    %v1528 = vshrl.u32 %v1527, 7
    %v1529 = vsub.s32 6, %v1528
    %v1530 = vrot.slane %v39, %v1529
    %v1531 = vmul.f32 %v1525, %v1530
    %v1532 = vmul.f32 %v1526, %v1530
    %v1533 = vlaneseq
    %v1534 = vshrl.u32 %v1533, 7
    %v1535 = vsub.s32 7, %v1534
    %v1536 = vrot.slane %v39, %v1535
    %v1537 = vadd.f32 %v1531, %v1536
    %v1538 = vadd.f32 %v1532, %v1536
    %s1539 = scalar_lea.vmem %s5, 8
    %v1540 = vld [vmem:[%s1539] sm:$0xff]
    %s1541 = scalar_lea.vmem %s1, 32
    %v1542 = vld [vmem:[%s1541] sm:$0xff]
    %v1543 = vld [vmem:[%s1541 + $0x8] sm:$0xff]
    %v1544 = vld [vmem:[%s1541 + $0x10] sm:$0xff]
    %v1545 = vld [vmem:[%s1541 + $0x18] sm:$0xff]
    %v1546 = vlaneseq
    %v1547 = vshrl.u32 %v1546, 7
    %v1548 = vsub.s32 0, %v1547
    %v1549 = vrot.slane %v1540, %v1548
    %v1551 = vsel %vm48, %v1537, 0
    %v1554 = vsel %vm48, %v1538, 0
    %1556 = vmatprep.subr.mxu0 0.0
    %1557 = vmatpush1.msra.mxu0 %v1542
    %1558 = vmatprep.subr.mxu0 0.0
    %1559 = vmatpush1.msra.mxu0 %v1543
    %1560 = vmatprep.subr.mxu0 0.0
    %1561 = vmatpush1.msra.mxu0 %v1544
    %1562 = vmatprep.subr.mxu0 0.0
    %1563 = vmatpush1.msra.mxu0 %v1545
    %1564 = vmatprep.subr.mxu0 0.0
    %1565 = vmatpush1.msra.mxu0 0.0
    %1566 = vmatprep.subr.mxu0 0.0
    %1567 = vmatpush1.msra.mxu0 0.0
    %1568 = vmatprep.subr.mxu0 0.0
    %1569 = vmatpush1.msra.mxu0 0.0
    %1570 = vmatprep.subr.mxu0 0.0
    %1571 = vmatpush1.msra.mxu0 0.0
    %1572 = vmatprep.subr.mxu0 0.0
    %1573 = vmatpush1.msra.mxu0 0.0
    %1574 = vmatprep.subr.mxu0 0.0
    %1575 = vmatpush1.msra.mxu0 0.0
    %1576 = vmatprep.subr.mxu0 0.0
    %1577 = vmatpush1.msra.mxu0 0.0
    %1578 = vmatprep.subr.mxu0 0.0
    %1579 = vmatpush1.msra.mxu0 0.0
    %1580 = vmatprep.subr.mxu0 0.0
    %1581 = vmatpush1.msra.mxu0 0.0
    %1582 = vmatprep.subr.mxu0 0.0
    %1583 = vmatpush1.msra.mxu0 0.0
    %1584 = vmatprep.subr.mxu0 0.0
    %1585 = vmatpush1.msra.mxu0 0.0
    %1586 = vmatprep.subr.mxu0 0.0
    %1587 = vmatpush1.msra.mxu0 0.0
    %1588 = vmatprep.subr.mxu0 0.0
    %1589 = vmatpush1.msra.mxu0 0.0
    %1590 = vmatprep.subr.mxu0 0.0
    %1591 = vmatpush1.msra.mxu0 0.0
    %1592 = vmatprep.subr.mxu0 0.0
    %1593 = vmatpush1.msra.mxu0 0.0
    %1594 = vmatprep.subr.mxu0 0.0
    %1595 = vmatpush1.msra.mxu0 0.0
    %1596 = vmatprep.subr.mxu0 0.0
    %1597 = vmatpush1.msra.mxu0 0.0
    %1598 = vmatprep.subr.mxu0 0.0
    %1599 = vmatpush1.msra.mxu0 0.0
    %1600 = vmatprep.subr.mxu0 0.0
    %1601 = vmatpush1.msra.mxu0 0.0
    %1602 = vmatprep.subr.mxu0 0.0
    %1603 = vmatpush1.msra.mxu0 0.0
    %1604 = vmatprep.subr.mxu0 0.0
    %1605 = vmatpush1.msra.mxu0 0.0
    %1606 = vmatprep.subr.mxu0 0.0
    %1607 = vmatpush1.msra.mxu0 0.0
    %1608 = vmatprep.subr.mxu0 0.0
    %1609 = vmatpush1.msra.mxu0 0.0
    %1610 = vmatprep.subr.mxu0 0.0
    %1611 = vmatpush1.msra.mxu0 0.0
    %1612 = vmatprep.subr.mxu0 0.0
    %1613 = vmatpush1.msra.mxu0 0.0
    %1614 = vmatprep.subr.mxu0 0.0
    %1615 = vmatpush1.msra.mxu0 0.0
    %1616 = vmatprep.subr.mxu0 0.0
    %1617 = vmatpush1.msra.mxu0 0.0
    %1618 = vmatprep.subr.mxu0 0.0
    %1619 = vmatpush1.msra.mxu0 0.0
    %1620 = vmatprep.mubr.f32.mxu0 0.0
    %1621 = vmatmul.mubr.f32.gmra.mrb[0].mxu0 %v1551
    %v1622 = vpop.f32.mrb[0].mxu0
    %v1623 = vadd.f32 %v1549, %v1622
    %v1624 = vpop.f32.mrb[0].mxu0
    %1625 = vmatprep.mubr.f32.mxu0 0.0
    %1626 = vmatmul.mubr.f32.gmra.mrb[0].mxu0 %v1554
    %v1627 = vpop.f32.mrb[0].mxu0
    %v1628 = vadd.f32 %v1549, %v1627
    %v1629 = vpop.f32.mrb[0].mxu0
    %1630 = vdwg.mxu0
    %1633 = vrot.lane.b32.xlu0 %v1623, 96
    %v1634 = vpop.permute.xlu0 %1633
    %1635 = vrot.lane.b32.xlu0 %v1628, 96
    %v1636 = vpop.permute.xlu0 %1635
    %v1637 = vsel %vm136, %v1623, 0
    %v1639 = vsel %vm136, %v1628, 0
    %v1641 = vsel %vm136, %v1634, 0
    %v1643 = vsel %vm136, %v1636, 0
    %1645 = vmatprep.subr.mxu0 0.0
    %1646 = vmatpush1.xpose.msra.mxu0 %v1641
    %1647 = vmatprep.subr.mxu0 0.0
    %1648 = vmatpush1.xpose.msra.mxu0 %v1643
    %1649 = vmatprep.subr.mxu0 0.0
    %1650 = vmatpush1.xpose.msra.mxu0 0.0
    %1651 = vmatprep.subr.mxu0 0.0
    %1652 = vmatpush1.xpose.msra.mxu0 0.0
    %1653 = vmatprep.subr.mxu0 0.0
    %1654 = vmatpush1.xpose.msra.mxu0 0.0
    %1655 = vmatprep.subr.mxu0 0.0
    %1656 = vmatpush1.xpose.msra.mxu0 0.0
    %1657 = vmatprep.subr.mxu0 0.0
    %1658 = vmatpush1.xpose.msra.mxu0 0.0
    %1659 = vmatprep.subr.mxu0 0.0
    %1660 = vmatpush1.xpose.msra.mxu0 0.0
    %1661 = vmatprep.subr.mxu0 0.0
    %1662 = vmatpush1.xpose.msra.mxu0 0.0
    %1663 = vmatprep.subr.mxu0 0.0
    %1664 = vmatpush1.xpose.msra.mxu0 0.0
    %1665 = vmatprep.subr.mxu0 0.0
    %1666 = vmatpush1.xpose.msra.mxu0 0.0
    %1667 = vmatprep.subr.mxu0 0.0
    %1668 = vmatpush1.xpose.msra.mxu0 0.0
    %1669 = vmatprep.subr.mxu0 0.0
    %1670 = vmatpush1.xpose.msra.mxu0 0.0
    %1671 = vmatprep.subr.mxu0 0.0
    %1672 = vmatpush1.xpose.msra.mxu0 0.0
    %1673 = vmatprep.subr.mxu0 0.0
    %1674 = vmatpush1.xpose.msra.mxu0 0.0
    %1675 = vmatprep.subr.mxu0 0.0
    %1676 = vmatpush1.xpose.msra.mxu0 0.0
    %1677 = vmatprep.subr.mxu0 0.0
    %1678 = vmatpush1.xpose.msra.mxu0 0.0
    %1679 = vmatprep.subr.mxu0 0.0
    %1680 = vmatpush1.xpose.msra.mxu0 0.0
    %1681 = vmatprep.subr.mxu0 0.0
    %1682 = vmatpush1.xpose.msra.mxu0 0.0
    %1683 = vmatprep.subr.mxu0 0.0
    %1684 = vmatpush1.xpose.msra.mxu0 0.0
    %1685 = vmatprep.subr.mxu0 0.0
    %1686 = vmatpush1.xpose.msra.mxu0 0.0
    %1687 = vmatprep.subr.mxu0 0.0
    %1688 = vmatpush1.xpose.msra.mxu0 0.0
    %1689 = vmatprep.subr.mxu0 0.0
    %1690 = vmatpush1.xpose.msra.mxu0 0.0
    %1691 = vmatprep.subr.mxu0 0.0
    %1692 = vmatpush1.xpose.msra.mxu0 0.0
    %1693 = vmatprep.subr.mxu0 0.0
    %1694 = vmatpush1.xpose.msra.mxu0 0.0
    %1695 = vmatprep.subr.mxu0 0.0
    %1696 = vmatpush1.xpose.msra.mxu0 0.0
    %1697 = vmatprep.subr.mxu0 0.0
    %1698 = vmatpush1.xpose.msra.mxu0 0.0
    %1699 = vmatprep.subr.mxu0 0.0
    %1700 = vmatpush1.xpose.msra.mxu0 0.0
    %1701 = vmatprep.subr.mxu0 0.0
    %1702 = vmatpush1.xpose.msra.mxu0 0.0
    %1703 = vmatprep.subr.mxu0 0.0
    %1704 = vmatpush1.xpose.msra.mxu0 0.0
    %1705 = vmatprep.subr.mxu0 0.0
    %1706 = vmatpush1.xpose.msra.mxu0 0.0
    %1707 = vmatprep.subr.mxu0 0.0
    %1708 = vmatpush1.xpose.msra.mxu0 0.0
    %1709 = vmatprep.mubr.f32.mxu0 0.0
    %1710 = vmatmul.mubr.f32.gmra.mrb[0].mxu0 %v1637
    %v1711 = vpop.f32.mrb[0].mxu0
    %v1712 = vadd.f32 0.0, %v1711
    %v1713 = vpop.f32.mrb[0].mxu0
    %1714 = vmatprep.mubr.f32.mxu0 0.0
    %1715 = vmatmul.mubr.f32.gmra.mrb[0].mxu0 %v1639
    %v1716 = vpop.f32.mrb[0].mxu0
    %v1717 = vadd.f32 0.0, %v1716
    %v1718 = vpop.f32.mrb[0].mxu0
    %1719 = vdwg.mxu0
    %v1720 = vsel %vm220, %v1712, -inf
    %1721 = vmax.xlane.f32.xlu0 %v1720
    %v1722 = vpop.xlane.xlu0 %1721
    %v1723 = vsel %vm224, %v1717, -inf
    %1724 = vmax.xlane.f32.xlu0 %v1723
    %v1725 = vpop.xlane.xlu0 %1724
    %v1726 = vsub.f32 %v1712, %v1722
    %v1727 = vsub.f32 %v1717, %v1725
    %v1728 = vmul.f32 %v1726, 1.442695
    %v1729 = vpow.pop %v1728
    %v1730 = vmul.f32 %v1727, 1.442695
    %v1731 = vpow.pop %v1730
    %v1732 = vsel %vm220, %v1729, 0.0
    %1733 = vadd.xlane.f32.xlu0 %v1732
    %v1734 = vpop.xlane.xlu0 %1733
    %v1735 = vsel %vm224, %v1731, 0.0
    %1736 = vadd.xlane.f32.xlu0 %v1735
    %v1737 = vpop.xlane.xlu0 %1736
    %v1738 = vrcp.pop %v1734
    %v1739 = vrcp.pop %v1737
    %v1740 = vmul.f32 %v1729, %v1738
    %v1741 = vmul.f32 %v1731, %v1739
    %1742 = vrot.lane.b32.xlu0 %v1623, 64
    %v1743 = vpop.permute.xlu0 %1742
    %1744 = vrot.lane.b32.xlu0 %v1628, 64
    %v1745 = vpop.permute.xlu0 %1744
    %v1748 = vsel %vm220, %v1740, 0
    %v1751 = vsel %vm220, %v1741, 0
    %v1753 = vsel %vm255, %v1745, 0
    %1755 = vmatprep.subr.mxu0 0.0
    %1756 = vmatpush1.msra.mxu0 %v1743
    %1757 = vmatprep.subr.mxu0 0.0
    %1758 = vmatpush1.msra.mxu0 %v1753
    %1759 = vmatprep.subr.mxu0 0.0
    %1760 = vmatpush1.msra.mxu0 0.0
    %1761 = vmatprep.subr.mxu0 0.0
    %1762 = vmatpush1.msra.mxu0 0.0
    %1763 = vmatprep.subr.mxu0 0.0
    %1764 = vmatpush1.msra.mxu0 0.0
    %1765 = vmatprep.subr.mxu0 0.0
    %1766 = vmatpush1.msra.mxu0 0.0
    %1767 = vmatprep.subr.mxu0 0.0
    %1768 = vmatpush1.msra.mxu0 0.0
    %1769 = vmatprep.subr.mxu0 0.0
    %1770 = vmatpush1.msra.mxu0 0.0
    %1771 = vmatprep.subr.mxu0 0.0
    %1772 = vmatpush1.msra.mxu0 0.0
    %1773 = vmatprep.subr.mxu0 0.0
    %1774 = vmatpush1.msra.mxu0 0.0
    %1775 = vmatprep.subr.mxu0 0.0
    %1776 = vmatpush1.msra.mxu0 0.0
    %1777 = vmatprep.subr.mxu0 0.0
    %1778 = vmatpush1.msra.mxu0 0.0
    %1779 = vmatprep.subr.mxu0 0.0
    %1780 = vmatpush1.msra.mxu0 0.0
    %1781 = vmatprep.subr.mxu0 0.0
    %1782 = vmatpush1.msra.mxu0 0.0
    %1783 = vmatprep.subr.mxu0 0.0
    %1784 = vmatpush1.msra.mxu0 0.0
    %1785 = vmatprep.subr.mxu0 0.0
    %1786 = vmatpush1.msra.mxu0 0.0
    %1787 = vmatprep.subr.mxu0 0.0
    %1788 = vmatpush1.msra.mxu0 0.0
    %1789 = vmatprep.subr.mxu0 0.0
    %1790 = vmatpush1.msra.mxu0 0.0
    %1791 = vmatprep.subr.mxu0 0.0
    %1792 = vmatpush1.msra.mxu0 0.0
    %1793 = vmatprep.subr.mxu0 0.0
    %1794 = vmatpush1.msra.mxu0 0.0
    %1795 = vmatprep.subr.mxu0 0.0
    %1796 = vmatpush1.msra.mxu0 0.0
    %1797 = vmatprep.subr.mxu0 0.0
    %1798 = vmatpush1.msra.mxu0 0.0
    %1799 = vmatprep.subr.mxu0 0.0
    %1800 = vmatpush1.msra.mxu0 0.0
    %1801 = vmatprep.subr.mxu0 0.0
    %1802 = vmatpush1.msra.mxu0 0.0
    %1803 = vmatprep.subr.mxu0 0.0
    %1804 = vmatpush1.msra.mxu0 0.0
    %1805 = vmatprep.subr.mxu0 0.0
    %1806 = vmatpush1.msra.mxu0 0.0
    %1807 = vmatprep.subr.mxu0 0.0
    %1808 = vmatpush1.msra.mxu0 0.0
    %1809 = vmatprep.subr.mxu0 0.0
    %1810 = vmatpush1.msra.mxu0 0.0
    %1811 = vmatprep.subr.mxu0 0.0
    %1812 = vmatpush1.msra.mxu0 0.0
    %1813 = vmatprep.subr.mxu0 0.0
    %1814 = vmatpush1.msra.mxu0 0.0
    %1815 = vmatprep.subr.mxu0 0.0
    %1816 = vmatpush1.msra.mxu0 0.0
    %1817 = vmatprep.subr.mxu0 0.0
    %1818 = vmatpush1.msra.mxu0 0.0
    %1819 = vmatprep.mubr.f32.mxu0 0.0
    %1820 = vmatmul.mubr.f32.gmra.mrb[0].mxu0 %v1748
    %v1821 = vpop.f32.mrb[0].mxu0
    %v1822 = vadd.f32 0.0, %v1821
    %v1823 = vpop.f32.mrb[0].mxu0
    %1824 = vmatprep.mubr.f32.mxu0 0.0
    %1825 = vmatmul.mubr.f32.gmra.mrb[0].mxu0 %v1751
    %v1826 = vpop.f32.mrb[0].mxu0
    %v1827 = vadd.f32 0.0, %v1826
    %v1828 = vpop.f32.mrb[0].mxu0
    %1829 = vdwg.mxu0
    %s1830 = scalar_lea.vmem %s2, 32
    %v1831 = vld [vmem:[%s1830] sm:$0xff]
    %1832 = vrot.lane.b32.xlu0 %v1623, 120
    %v1833 = vpop.permute.xlu0 %1832
    %1834 = vrot.lane.b32.xlu0 %v1628, 120
    %v1835 = vpop.permute.xlu0 %1834
    %1836 = vrot.lane.b32.xlu0 %v1623, 88
    %v1837 = vpop.permute.xlu0 %1836
    %1838 = vrot.lane.b32.xlu0 %v1628, 88
    %v1839 = vpop.permute.xlu0 %1838
    %v1840 = vsel %vm136, %v1833, 0
    %v1842 = vsel %vm136, %v1835, 0
    %v1844 = vsel %vm136, %v1837, 0
    %v1846 = vsel %vm136, %v1839, 0
    %1848 = vmatprep.subr.mxu0 0.0
    %1849 = vmatpush1.xpose.msra.mxu0 %v1844
    %1850 = vmatprep.subr.mxu0 0.0
    %1851 = vmatpush1.xpose.msra.mxu0 %v1846
    %1852 = vmatprep.subr.mxu0 0.0
    %1853 = vmatpush1.xpose.msra.mxu0 0.0
    %1854 = vmatprep.subr.mxu0 0.0
    %1855 = vmatpush1.xpose.msra.mxu0 0.0
    %1856 = vmatprep.subr.mxu0 0.0
    %1857 = vmatpush1.xpose.msra.mxu0 0.0
    %1858 = vmatprep.subr.mxu0 0.0
    %1859 = vmatpush1.xpose.msra.mxu0 0.0
    %1860 = vmatprep.subr.mxu0 0.0
    %1861 = vmatpush1.xpose.msra.mxu0 0.0
    %1862 = vmatprep.subr.mxu0 0.0
    %1863 = vmatpush1.xpose.msra.mxu0 0.0
    %1864 = vmatprep.subr.mxu0 0.0
    %1865 = vmatpush1.xpose.msra.mxu0 0.0
    %1866 = vmatprep.subr.mxu0 0.0
    %1867 = vmatpush1.xpose.msra.mxu0 0.0
    %1868 = vmatprep.subr.mxu0 0.0
    %1869 = vmatpush1.xpose.msra.mxu0 0.0
    %1870 = vmatprep.subr.mxu0 0.0
    %1871 = vmatpush1.xpose.msra.mxu0 0.0
    %1872 = vmatprep.subr.mxu0 0.0
    %1873 = vmatpush1.xpose.msra.mxu0 0.0
    %1874 = vmatprep.subr.mxu0 0.0
    %1875 = vmatpush1.xpose.msra.mxu0 0.0
    %1876 = vmatprep.subr.mxu0 0.0
    %1877 = vmatpush1.xpose.msra.mxu0 0.0
    %1878 = vmatprep.subr.mxu0 0.0
    %1879 = vmatpush1.xpose.msra.mxu0 0.0
    %1880 = vmatprep.subr.mxu0 0.0
    %1881 = vmatpush1.xpose.msra.mxu0 0.0
    %1882 = vmatprep.subr.mxu0 0.0
    %1883 = vmatpush1.xpose.msra.mxu0 0.0
    %1884 = vmatprep.subr.mxu0 0.0
    %1885 = vmatpush1.xpose.msra.mxu0 0.0
    %1886 = vmatprep.subr.mxu0 0.0
    %1887 = vmatpush1.xpose.msra.mxu0 0.0
    %1888 = vmatprep.subr.mxu0 0.0
    %1889 = vmatpush1.xpose.msra.mxu0 0.0
    %1890 = vmatprep.subr.mxu0 0.0
    %1891 = vmatpush1.xpose.msra.mxu0 0.0
    %1892 = vmatprep.subr.mxu0 0.0
    %1893 = vmatpush1.xpose.msra.mxu0 0.0
    %1894 = vmatprep.subr.mxu0 0.0
    %1895 = vmatpush1.xpose.msra.mxu0 0.0
    %1896 = vmatprep.subr.mxu0 0.0
    %1897 = vmatpush1.xpose.msra.mxu0 0.0
    %1898 = vmatprep.subr.mxu0 0.0
    %1899 = vmatpush1.xpose.msra.mxu0 0.0
    %1900 = vmatprep.subr.mxu0 0.0
    %1901 = vmatpush1.xpose.msra.mxu0 0.0
    %1902 = vmatprep.subr.mxu0 0.0
    %1903 = vmatpush1.xpose.msra.mxu0 0.0
    %1904 = vmatprep.subr.mxu0 0.0
    %1905 = vmatpush1.xpose.msra.mxu0 0.0
    %1906 = vmatprep.subr.mxu0 0.0
    %1907 = vmatpush1.xpose.msra.mxu0 0.0
    %1908 = vmatprep.subr.mxu0 0.0
    %1909 = vmatpush1.xpose.msra.mxu0 0.0
    %1910 = vmatprep.subr.mxu0 0.0
    %1911 = vmatpush1.xpose.msra.mxu0 0.0
    %1912 = vmatprep.mubr.f32.mxu0 0.0
    %1913 = vmatmul.mubr.f32.gmra.mrb[0].mxu0 %v1840
    %v1914 = vpop.f32.mrb[0].mxu0
    %v1915 = vadd.f32 0.0, %v1914
    %v1916 = vpop.f32.mrb[0].mxu0
    %1917 = vmatprep.mubr.f32.mxu0 0.0
    %1918 = vmatmul.mubr.f32.gmra.mrb[0].mxu0 %v1842
    %v1919 = vpop.f32.mrb[0].mxu0
    %v1920 = vadd.f32 0.0, %v1919
    %v1921 = vpop.f32.mrb[0].mxu0
    %1922 = vdwg.mxu0
    %v1923 = vsel %vm220, %v1915, -inf
    %1924 = vmax.xlane.f32.xlu0 %v1923
    %v1925 = vpop.xlane.xlu0 %1924
    %v1926 = vsel %vm224, %v1920, -inf
    %1927 = vmax.xlane.f32.xlu0 %v1926
    %v1928 = vpop.xlane.xlu0 %1927
    %v1929 = vsub.f32 %v1915, %v1925
    %v1930 = vsub.f32 %v1920, %v1928
    %v1931 = vmul.f32 %v1929, 1.442695
    %v1932 = vpow.pop %v1931
    %v1933 = vmul.f32 %v1930, 1.442695
    %v1934 = vpow.pop %v1933
    %v1935 = vsel %vm220, %v1932, 0.0
    %1936 = vadd.xlane.f32.xlu0 %v1935
    %v1937 = vpop.xlane.xlu0 %1936
    %v1938 = vsel %vm224, %v1934, 0.0
    %1939 = vadd.xlane.f32.xlu0 %v1938
    %v1940 = vpop.xlane.xlu0 %1939
    %v1941 = vrcp.pop %v1937
    %v1942 = vrcp.pop %v1940
    %v1943 = vmul.f32 %v1932, %v1941
    %v1944 = vmul.f32 %v1934, %v1942
    %1945 = vrot.lane.b32.xlu0 %v1623, 56
    %v1946 = vpop.permute.xlu0 %1945
    %1947 = vrot.lane.b32.xlu0 %v1628, 56
    %v1948 = vpop.permute.xlu0 %1947
    %v1951 = vsel %vm220, %v1943, 0
    %v1954 = vsel %vm220, %v1944, 0
    %v1956 = vsel %vm255, %v1948, 0
    %1958 = vmatprep.subr.mxu0 0.0
    %1959 = vmatpush1.msra.mxu0 %v1946
    %1960 = vmatprep.subr.mxu0 0.0
    %1961 = vmatpush1.msra.mxu0 %v1956
    %1962 = vmatprep.subr.mxu0 0.0
    %1963 = vmatpush1.msra.mxu0 0.0
    %1964 = vmatprep.subr.mxu0 0.0
    %1965 = vmatpush1.msra.mxu0 0.0
    %1966 = vmatprep.subr.mxu0 0.0
    %1967 = vmatpush1.msra.mxu0 0.0
    %1968 = vmatprep.subr.mxu0 0.0
    %1969 = vmatpush1.msra.mxu0 0.0
    %1970 = vmatprep.subr.mxu0 0.0
    %1971 = vmatpush1.msra.mxu0 0.0
    %1972 = vmatprep.subr.mxu0 0.0
    %1973 = vmatpush1.msra.mxu0 0.0
    %1974 = vmatprep.subr.mxu0 0.0
    %1975 = vmatpush1.msra.mxu0 0.0
    %1976 = vmatprep.subr.mxu0 0.0
    %1977 = vmatpush1.msra.mxu0 0.0
    %1978 = vmatprep.subr.mxu0 0.0
    %1979 = vmatpush1.msra.mxu0 0.0
    %1980 = vmatprep.subr.mxu0 0.0
    %1981 = vmatpush1.msra.mxu0 0.0
    %1982 = vmatprep.subr.mxu0 0.0
    %1983 = vmatpush1.msra.mxu0 0.0
    %1984 = vmatprep.subr.mxu0 0.0
    %1985 = vmatpush1.msra.mxu0 0.0
    %1986 = vmatprep.subr.mxu0 0.0
    %1987 = vmatpush1.msra.mxu0 0.0
    %1988 = vmatprep.subr.mxu0 0.0
    %1989 = vmatpush1.msra.mxu0 0.0
    %1990 = vmatprep.subr.mxu0 0.0
    %1991 = vmatpush1.msra.mxu0 0.0
    %1992 = vmatprep.subr.mxu0 0.0
    %1993 = vmatpush1.msra.mxu0 0.0
    %1994 = vmatprep.subr.mxu0 0.0
    %1995 = vmatpush1.msra.mxu0 0.0
    %1996 = vmatprep.subr.mxu0 0.0
    %1997 = vmatpush1.msra.mxu0 0.0
    %1998 = vmatprep.subr.mxu0 0.0
    %1999 = vmatpush1.msra.mxu0 0.0
    %2000 = vmatprep.subr.mxu0 0.0
    %2001 = vmatpush1.msra.mxu0 0.0
    %2002 = vmatprep.subr.mxu0 0.0
    %2003 = vmatpush1.msra.mxu0 0.0
    %2004 = vmatprep.subr.mxu0 0.0
    %2005 = vmatpush1.msra.mxu0 0.0
    %2006 = vmatprep.subr.mxu0 0.0
    %2007 = vmatpush1.msra.mxu0 0.0
    %2008 = vmatprep.subr.mxu0 0.0
    %2009 = vmatpush1.msra.mxu0 0.0
    %2010 = vmatprep.subr.mxu0 0.0
    %2011 = vmatpush1.msra.mxu0 0.0
    %2012 = vmatprep.subr.mxu0 0.0
    %2013 = vmatpush1.msra.mxu0 0.0
    %2014 = vmatprep.subr.mxu0 0.0
    %2015 = vmatpush1.msra.mxu0 0.0
    %2016 = vmatprep.subr.mxu0 0.0
    %2017 = vmatpush1.msra.mxu0 0.0
    %2018 = vmatprep.subr.mxu0 0.0
    %2019 = vmatpush1.msra.mxu0 0.0
    %2020 = vmatprep.subr.mxu0 0.0
    %2021 = vmatpush1.msra.mxu0 0.0
    %2022 = vmatprep.mubr.f32.mxu0 0.0
    %2023 = vmatmul.mubr.f32.gmra.mrb[0].mxu0 %v1951
    %v2024 = vpop.f32.mrb[0].mxu0
    %v2025 = vadd.f32 0.0, %v2024
    %v2026 = vpop.f32.mrb[0].mxu0
    %2027 = vmatprep.mubr.f32.mxu0 0.0
    %2028 = vmatmul.mubr.f32.gmra.mrb[0].mxu0 %v1954
    %v2029 = vpop.f32.mrb[0].mxu0
    %v2030 = vadd.f32 0.0, %v2029
    %v2031 = vpop.f32.mrb[0].mxu0
    %2032 = vdwg.mxu0
    %s2033 = scalar_lea.vmem %s2, 40
    %v2034 = vld [vmem:[%s2033] sm:$0xff]
    %v2036 = vsel %vm136, %v2025, 0
    %v2039 = vsel %vm136, %v2030, 0
    %2041 = vmatprep.subr.mxu0 0.0
    %2042 = vmatpush1.msra.mxu0 %v2034
    %2043 = vmatprep.subr.mxu0 0.0
    %2044 = vmatpush1.msra.mxu0 0.0
    %2045 = vmatprep.subr.mxu0 0.0
    %2046 = vmatpush1.msra.mxu0 0.0
    %2047 = vmatprep.subr.mxu0 0.0
    %2048 = vmatpush1.msra.mxu0 0.0
    %2049 = vmatprep.subr.mxu0 0.0
    %2050 = vmatpush1.msra.mxu0 0.0
    %2051 = vmatprep.subr.mxu0 0.0
    %2052 = vmatpush1.msra.mxu0 0.0
    %2053 = vmatprep.subr.mxu0 0.0
    %2054 = vmatpush1.msra.mxu0 0.0
    %2055 = vmatprep.subr.mxu0 0.0
    %2056 = vmatpush1.msra.mxu0 0.0
    %2057 = vmatprep.subr.mxu0 0.0
    %2058 = vmatpush1.msra.mxu0 0.0
    %2059 = vmatprep.subr.mxu0 0.0
    %2060 = vmatpush1.msra.mxu0 0.0
    %2061 = vmatprep.subr.mxu0 0.0
    %2062 = vmatpush1.msra.mxu0 0.0
    %2063 = vmatprep.subr.mxu0 0.0
    %2064 = vmatpush1.msra.mxu0 0.0
    %2065 = vmatprep.subr.mxu0 0.0
    %2066 = vmatpush1.msra.mxu0 0.0
    %2067 = vmatprep.subr.mxu0 0.0
    %2068 = vmatpush1.msra.mxu0 0.0
    %2069 = vmatprep.subr.mxu0 0.0
    %2070 = vmatpush1.msra.mxu0 0.0
    %2071 = vmatprep.subr.mxu0 0.0
    %2072 = vmatpush1.msra.mxu0 0.0
    %2073 = vmatprep.subr.mxu0 0.0
    %2074 = vmatpush1.msra.mxu0 0.0
    %2075 = vmatprep.subr.mxu0 0.0
    %2076 = vmatpush1.msra.mxu0 0.0
    %2077 = vmatprep.subr.mxu0 0.0
    %2078 = vmatpush1.msra.mxu0 0.0
    %2079 = vmatprep.subr.mxu0 0.0
    %2080 = vmatpush1.msra.mxu0 0.0
    %2081 = vmatprep.subr.mxu0 0.0
    %2082 = vmatpush1.msra.mxu0 0.0
    %2083 = vmatprep.subr.mxu0 0.0
    %2084 = vmatpush1.msra.mxu0 0.0
    %2085 = vmatprep.subr.mxu0 0.0
    %2086 = vmatpush1.msra.mxu0 0.0
    %2087 = vmatprep.subr.mxu0 0.0
    %2088 = vmatpush1.msra.mxu0 0.0
    %2089 = vmatprep.subr.mxu0 0.0
    %2090 = vmatpush1.msra.mxu0 0.0
    %2091 = vmatprep.subr.mxu0 0.0
    %2092 = vmatpush1.msra.mxu0 0.0
    %2093 = vmatprep.subr.mxu0 0.0
    %2094 = vmatpush1.msra.mxu0 0.0
    %2095 = vmatprep.subr.mxu0 0.0
    %2096 = vmatpush1.msra.mxu0 0.0
    %2097 = vmatprep.subr.mxu0 0.0
    %2098 = vmatpush1.msra.mxu0 0.0
    %2099 = vmatprep.subr.mxu0 0.0
    %2100 = vmatpush1.msra.mxu0 0.0
    %2101 = vmatprep.subr.mxu0 0.0
    %2102 = vmatpush1.msra.mxu0 0.0
    %2103 = vmatprep.subr.mxu0 0.0
    %2104 = vmatpush1.msra.mxu0 0.0
    %2105 = vmatprep.mubr.f32.mxu0 0.0
    %2106 = vmatmul.mubr.f32.gmra.mrb[0].mxu0 %v2036
    %v2107 = vpop.f32.mrb[0].mxu0
    %v2108 = vadd.f32 0.0, %v2107
    %v2109 = vpop.f32.mrb[0].mxu0
    %2110 = vmatprep.mubr.f32.mxu0 0.0
    %2111 = vmatmul.mubr.f32.gmra.mrb[0].mxu0 %v2039
    %v2112 = vpop.f32.mrb[0].mxu0
    %v2113 = vadd.f32 0.0, %v2112
    %v2114 = vpop.f32.mrb[0].mxu0
    %2115 = vdwg.mxu0
    %v2117 = vsel %vm136, %v1822, 0
    %v2120 = vsel %vm136, %v1827, 0
    %2122 = vmatprep.subr.mxu0 0.0
    %2123 = vmatpush1.msra.mxu0 %v1831
    %2124 = vmatprep.subr.mxu0 0.0
    %2125 = vmatpush1.msra.mxu0 0.0
    %2126 = vmatprep.subr.mxu0 0.0
    %2127 = vmatpush1.msra.mxu0 0.0
    %2128 = vmatprep.subr.mxu0 0.0
    %2129 = vmatpush1.msra.mxu0 0.0
    %2130 = vmatprep.subr.mxu0 0.0
    %2131 = vmatpush1.msra.mxu0 0.0
    %2132 = vmatprep.subr.mxu0 0.0
    %2133 = vmatpush1.msra.mxu0 0.0
    %2134 = vmatprep.subr.mxu0 0.0
    %2135 = vmatpush1.msra.mxu0 0.0
    %2136 = vmatprep.subr.mxu0 0.0
    %2137 = vmatpush1.msra.mxu0 0.0
    %2138 = vmatprep.subr.mxu0 0.0
    %2139 = vmatpush1.msra.mxu0 0.0
    %2140 = vmatprep.subr.mxu0 0.0
    %2141 = vmatpush1.msra.mxu0 0.0
    %2142 = vmatprep.subr.mxu0 0.0
    %2143 = vmatpush1.msra.mxu0 0.0
    %2144 = vmatprep.subr.mxu0 0.0
    %2145 = vmatpush1.msra.mxu0 0.0
    %2146 = vmatprep.subr.mxu0 0.0
    %2147 = vmatpush1.msra.mxu0 0.0
    %2148 = vmatprep.subr.mxu0 0.0
    %2149 = vmatpush1.msra.mxu0 0.0
    %2150 = vmatprep.subr.mxu0 0.0
    %2151 = vmatpush1.msra.mxu0 0.0
    %2152 = vmatprep.subr.mxu0 0.0
    %2153 = vmatpush1.msra.mxu0 0.0
    %2154 = vmatprep.subr.mxu0 0.0
    %2155 = vmatpush1.msra.mxu0 0.0
    %2156 = vmatprep.subr.mxu0 0.0
    %2157 = vmatpush1.msra.mxu0 0.0
    %2158 = vmatprep.subr.mxu0 0.0
    %2159 = vmatpush1.msra.mxu0 0.0
    %2160 = vmatprep.subr.mxu0 0.0
    %2161 = vmatpush1.msra.mxu0 0.0
    %2162 = vmatprep.subr.mxu0 0.0
    %2163 = vmatpush1.msra.mxu0 0.0
    %2164 = vmatprep.subr.mxu0 0.0
    %2165 = vmatpush1.msra.mxu0 0.0
    %2166 = vmatprep.subr.mxu0 0.0
    %2167 = vmatpush1.msra.mxu0 0.0
    %2168 = vmatprep.subr.mxu0 0.0
    %2169 = vmatpush1.msra.mxu0 0.0
    %2170 = vmatprep.subr.mxu0 0.0
    %2171 = vmatpush1.msra.mxu0 0.0
    %2172 = vmatprep.subr.mxu0 0.0
    %2173 = vmatpush1.msra.mxu0 0.0
    %2174 = vmatprep.subr.mxu0 0.0
    %2175 = vmatpush1.msra.mxu0 0.0
    %2176 = vmatprep.subr.mxu0 0.0
    %2177 = vmatpush1.msra.mxu0 0.0
    %2178 = vmatprep.subr.mxu0 0.0
    %2179 = vmatpush1.msra.mxu0 0.0
    %2180 = vmatprep.subr.mxu0 0.0
    %2181 = vmatpush1.msra.mxu0 0.0
    %2182 = vmatprep.subr.mxu0 0.0
    %2183 = vmatpush1.msra.mxu0 0.0
    %2184 = vmatprep.subr.mxu0 0.0
    %2185 = vmatpush1.msra.mxu0 0.0
    %2186 = vmatprep.mubr.f32.mxu0 0.0
    %2187 = vmatmul.mubr.f32.gmra.mrb[0].mxu0 %v2117
    %v2188 = vpop.f32.mrb[0].mxu0
    %v2189 = vadd.f32 %v2108, %v2188
    %v2190 = vpop.f32.mrb[0].mxu0
    %2191 = vmatprep.mubr.f32.mxu0 0.0
    %2192 = vmatmul.mubr.f32.gmra.mrb[0].mxu0 %v2120
    %v2193 = vpop.f32.mrb[0].mxu0
    %v2194 = vadd.f32 %v2113, %v2193
    %v2195 = vpop.f32.mrb[0].mxu0
    %2196 = vdwg.mxu0
    %2197 = vrot.lane.b32.xlu0 %v1623, 112
    %v2198 = vpop.permute.xlu0 %2197
    %2199 = vrot.lane.b32.xlu0 %v1628, 112
    %v2200 = vpop.permute.xlu0 %2199
    %2201 = vrot.lane.b32.xlu0 %v1623, 80
    %v2202 = vpop.permute.xlu0 %2201
    %2203 = vrot.lane.b32.xlu0 %v1628, 80
    %v2204 = vpop.permute.xlu0 %2203
    %v2205 = vsel %vm136, %v2198, 0
    %v2207 = vsel %vm136, %v2200, 0
    %v2209 = vsel %vm136, %v2202, 0
    %v2211 = vsel %vm136, %v2204, 0
    %2213 = vmatprep.subr.mxu0 0.0
    %2214 = vmatpush1.xpose.msra.mxu0 %v2209
    %2215 = vmatprep.subr.mxu0 0.0
    %2216 = vmatpush1.xpose.msra.mxu0 %v2211
    %2217 = vmatprep.subr.mxu0 0.0
    %2218 = vmatpush1.xpose.msra.mxu0 0.0
    %2219 = vmatprep.subr.mxu0 0.0
    %2220 = vmatpush1.xpose.msra.mxu0 0.0
    %2221 = vmatprep.subr.mxu0 0.0
    %2222 = vmatpush1.xpose.msra.mxu0 0.0
    %2223 = vmatprep.subr.mxu0 0.0
    %2224 = vmatpush1.xpose.msra.mxu0 0.0
    %2225 = vmatprep.subr.mxu0 0.0
    %2226 = vmatpush1.xpose.msra.mxu0 0.0
    %2227 = vmatprep.subr.mxu0 0.0
    %2228 = vmatpush1.xpose.msra.mxu0 0.0
    %2229 = vmatprep.subr.mxu0 0.0
    %2230 = vmatpush1.xpose.msra.mxu0 0.0
    %2231 = vmatprep.subr.mxu0 0.0
    %2232 = vmatpush1.xpose.msra.mxu0 0.0
    %2233 = vmatprep.subr.mxu0 0.0
    %2234 = vmatpush1.xpose.msra.mxu0 0.0
    %2235 = vmatprep.subr.mxu0 0.0
    %2236 = vmatpush1.xpose.msra.mxu0 0.0
    %2237 = vmatprep.subr.mxu0 0.0
    %2238 = vmatpush1.xpose.msra.mxu0 0.0
    %2239 = vmatprep.subr.mxu0 0.0
    %2240 = vmatpush1.xpose.msra.mxu0 0.0
    %2241 = vmatprep.subr.mxu0 0.0
    %2242 = vmatpush1.xpose.msra.mxu0 0.0
    %2243 = vmatprep.subr.mxu0 0.0
    %2244 = vmatpush1.xpose.msra.mxu0 0.0
    %2245 = vmatprep.subr.mxu0 0.0
    %2246 = vmatpush1.xpose.msra.mxu0 0.0
    %2247 = vmatprep.subr.mxu0 0.0
    %2248 = vmatpush1.xpose.msra.mxu0 0.0
    %2249 = vmatprep.subr.mxu0 0.0
    %2250 = vmatpush1.xpose.msra.mxu0 0.0
    %2251 = vmatprep.subr.mxu0 0.0
    %2252 = vmatpush1.xpose.msra.mxu0 0.0
    %2253 = vmatprep.subr.mxu0 0.0
    %2254 = vmatpush1.xpose.msra.mxu0 0.0
    %2255 = vmatprep.subr.mxu0 0.0
    %2256 = vmatpush1.xpose.msra.mxu0 0.0
    %2257 = vmatprep.subr.mxu0 0.0
    %2258 = vmatpush1.xpose.msra.mxu0 0.0
    %2259 = vmatprep.subr.mxu0 0.0
    %2260 = vmatpush1.xpose.msra.mxu0 0.0
    %2261 = vmatprep.subr.mxu0 0.0
    %2262 = vmatpush1.xpose.msra.mxu0 0.0
    %2263 = vmatprep.subr.mxu0 0.0
    %2264 = vmatpush1.xpose.msra.mxu0 0.0
    %2265 = vmatprep.subr.mxu0 0.0
    %2266 = vmatpush1.xpose.msra.mxu0 0.0
    %2267 = vmatprep.subr.mxu0 0.0
    %2268 = vmatpush1.xpose.msra.mxu0 0.0
    %2269 = vmatprep.subr.mxu0 0.0
    %2270 = vmatpush1.xpose.msra.mxu0 0.0
    %2271 = vmatprep.subr.mxu0 0.0
    %2272 = vmatpush1.xpose.msra.mxu0 0.0
    %2273 = vmatprep.subr.mxu0 0.0
    %2274 = vmatpush1.xpose.msra.mxu0 0.0
    %2275 = vmatprep.subr.mxu0 0.0
    %2276 = vmatpush1.xpose.msra.mxu0 0.0
    %2277 = vmatprep.mubr.f32.mxu0 0.0
    %2278 = vmatmul.mubr.f32.gmra.mrb[0].mxu0 %v2205
    %v2279 = vpop.f32.mrb[0].mxu0
    %v2280 = vadd.f32 0.0, %v2279
    %v2281 = vpop.f32.mrb[0].mxu0
    %2282 = vmatprep.mubr.f32.mxu0 0.0
    %2283 = vmatmul.mubr.f32.gmra.mrb[0].mxu0 %v2207
    %v2284 = vpop.f32.mrb[0].mxu0
    %v2285 = vadd.f32 0.0, %v2284
    %v2286 = vpop.f32.mrb[0].mxu0
    %2287 = vdwg.mxu0
    %v2288 = vsel %vm220, %v2280, -inf
    %2289 = vmax.xlane.f32.xlu0 %v2288
    %v2290 = vpop.xlane.xlu0 %2289
    %v2291 = vsel %vm224, %v2285, -inf
    %2292 = vmax.xlane.f32.xlu0 %v2291
    %v2293 = vpop.xlane.xlu0 %2292
    %v2294 = vsub.f32 %v2280, %v2290
    %v2295 = vsub.f32 %v2285, %v2293
    %v2296 = vmul.f32 %v2294, 1.442695
    %v2297 = vpow.pop %v2296
    %v2298 = vmul.f32 %v2295, 1.442695
    %v2299 = vpow.pop %v2298
    %v2300 = vsel %vm220, %v2297, 0.0
    %2301 = vadd.xlane.f32.xlu0 %v2300
    %v2302 = vpop.xlane.xlu0 %2301
    %v2303 = vsel %vm224, %v2299, 0.0
    %2304 = vadd.xlane.f32.xlu0 %v2303
    %v2305 = vpop.xlane.xlu0 %2304
    %v2306 = vrcp.pop %v2302
    %v2307 = vrcp.pop %v2305
    %v2308 = vmul.f32 %v2297, %v2306
    %v2309 = vmul.f32 %v2299, %v2307
    %2310 = vrot.lane.b32.xlu0 %v1623, 48
    %v2311 = vpop.permute.xlu0 %2310
    %2312 = vrot.lane.b32.xlu0 %v1628, 48
    %v2313 = vpop.permute.xlu0 %2312
    %v2316 = vsel %vm220, %v2308, 0
    %v2319 = vsel %vm220, %v2309, 0
    %v2321 = vsel %vm255, %v2313, 0
    %2323 = vmatprep.subr.mxu0 0.0
    %2324 = vmatpush1.msra.mxu0 %v2311
    %2325 = vmatprep.subr.mxu0 0.0
    %2326 = vmatpush1.msra.mxu0 %v2321
    %2327 = vmatprep.subr.mxu0 0.0
    %2328 = vmatpush1.msra.mxu0 0.0
    %2329 = vmatprep.subr.mxu0 0.0
    %2330 = vmatpush1.msra.mxu0 0.0
    %2331 = vmatprep.subr.mxu0 0.0
    %2332 = vmatpush1.msra.mxu0 0.0
    %2333 = vmatprep.subr.mxu0 0.0
    %2334 = vmatpush1.msra.mxu0 0.0
    %2335 = vmatprep.subr.mxu0 0.0
    %2336 = vmatpush1.msra.mxu0 0.0
    %2337 = vmatprep.subr.mxu0 0.0
    %2338 = vmatpush1.msra.mxu0 0.0
    %2339 = vmatprep.subr.mxu0 0.0
    %2340 = vmatpush1.msra.mxu0 0.0
    %2341 = vmatprep.subr.mxu0 0.0
    %2342 = vmatpush1.msra.mxu0 0.0
    %2343 = vmatprep.subr.mxu0 0.0
    %2344 = vmatpush1.msra.mxu0 0.0
    %2345 = vmatprep.subr.mxu0 0.0
    %2346 = vmatpush1.msra.mxu0 0.0
    %2347 = vmatprep.subr.mxu0 0.0
    %2348 = vmatpush1.msra.mxu0 0.0
    %2349 = vmatprep.subr.mxu0 0.0
    %2350 = vmatpush1.msra.mxu0 0.0
    %2351 = vmatprep.subr.mxu0 0.0
    %2352 = vmatpush1.msra.mxu0 0.0
    %2353 = vmatprep.subr.mxu0 0.0
    %2354 = vmatpush1.msra.mxu0 0.0
    %2355 = vmatprep.subr.mxu0 0.0
    %2356 = vmatpush1.msra.mxu0 0.0
    %2357 = vmatprep.subr.mxu0 0.0
    %2358 = vmatpush1.msra.mxu0 0.0
    %2359 = vmatprep.subr.mxu0 0.0
    %2360 = vmatpush1.msra.mxu0 0.0
    %2361 = vmatprep.subr.mxu0 0.0
    %2362 = vmatpush1.msra.mxu0 0.0
    %2363 = vmatprep.subr.mxu0 0.0
    %2364 = vmatpush1.msra.mxu0 0.0
    %2365 = vmatprep.subr.mxu0 0.0
    %2366 = vmatpush1.msra.mxu0 0.0
    %2367 = vmatprep.subr.mxu0 0.0
    %2368 = vmatpush1.msra.mxu0 0.0
    %2369 = vmatprep.subr.mxu0 0.0
    %2370 = vmatpush1.msra.mxu0 0.0
    %2371 = vmatprep.subr.mxu0 0.0
    %2372 = vmatpush1.msra.mxu0 0.0
    %2373 = vmatprep.subr.mxu0 0.0
    %2374 = vmatpush1.msra.mxu0 0.0
    %2375 = vmatprep.subr.mxu0 0.0
    %2376 = vmatpush1.msra.mxu0 0.0
    %2377 = vmatprep.subr.mxu0 0.0
    %2378 = vmatpush1.msra.mxu0 0.0
    %2379 = vmatprep.subr.mxu0 0.0
    %2380 = vmatpush1.msra.mxu0 0.0
    %2381 = vmatprep.subr.mxu0 0.0
    %2382 = vmatpush1.msra.mxu0 0.0
    %2383 = vmatprep.subr.mxu0 0.0
    %2384 = vmatpush1.msra.mxu0 0.0
    %2385 = vmatprep.subr.mxu0 0.0
    %2386 = vmatpush1.msra.mxu0 0.0
    %2387 = vmatprep.mubr.f32.mxu0 0.0
    %2388 = vmatmul.mubr.f32.gmra.mrb[0].mxu0 %v2316
    %v2389 = vpop.f32.mrb[0].mxu0
    %v2390 = vadd.f32 0.0, %v2389
    %v2391 = vpop.f32.mrb[0].mxu0
    %2392 = vmatprep.mubr.f32.mxu0 0.0
    %2393 = vmatmul.mubr.f32.gmra.mrb[0].mxu0 %v2319
    %v2394 = vpop.f32.mrb[0].mxu0
    %v2395 = vadd.f32 0.0, %v2394
    %v2396 = vpop.f32.mrb[0].mxu0
    %2397 = vdwg.mxu0
    %s2398 = scalar_lea.vmem %s2, 48
    %v2399 = vld [vmem:[%s2398] sm:$0xff]
    %v2401 = vsel %vm136, %v2390, 0
    %v2404 = vsel %vm136, %v2395, 0
    %2406 = vmatprep.subr.mxu0 0.0
    %2407 = vmatpush1.msra.mxu0 %v2399
    %2408 = vmatprep.subr.mxu0 0.0
    %2409 = vmatpush1.msra.mxu0 0.0
    %2410 = vmatprep.subr.mxu0 0.0
    %2411 = vmatpush1.msra.mxu0 0.0
    %2412 = vmatprep.subr.mxu0 0.0
    %2413 = vmatpush1.msra.mxu0 0.0
    %2414 = vmatprep.subr.mxu0 0.0
    %2415 = vmatpush1.msra.mxu0 0.0
    %2416 = vmatprep.subr.mxu0 0.0
    %2417 = vmatpush1.msra.mxu0 0.0
    %2418 = vmatprep.subr.mxu0 0.0
    %2419 = vmatpush1.msra.mxu0 0.0
    %2420 = vmatprep.subr.mxu0 0.0
    %2421 = vmatpush1.msra.mxu0 0.0
    %2422 = vmatprep.subr.mxu0 0.0
    %2423 = vmatpush1.msra.mxu0 0.0
    %2424 = vmatprep.subr.mxu0 0.0
    %2425 = vmatpush1.msra.mxu0 0.0
    %2426 = vmatprep.subr.mxu0 0.0
    %2427 = vmatpush1.msra.mxu0 0.0
    %2428 = vmatprep.subr.mxu0 0.0
    %2429 = vmatpush1.msra.mxu0 0.0
    %2430 = vmatprep.subr.mxu0 0.0
    %2431 = vmatpush1.msra.mxu0 0.0
    %2432 = vmatprep.subr.mxu0 0.0
    %2433 = vmatpush1.msra.mxu0 0.0
    %2434 = vmatprep.subr.mxu0 0.0
    %2435 = vmatpush1.msra.mxu0 0.0
    %2436 = vmatprep.subr.mxu0 0.0
    %2437 = vmatpush1.msra.mxu0 0.0
    %2438 = vmatprep.subr.mxu0 0.0
    %2439 = vmatpush1.msra.mxu0 0.0
    %2440 = vmatprep.subr.mxu0 0.0
    %2441 = vmatpush1.msra.mxu0 0.0
    %2442 = vmatprep.subr.mxu0 0.0
    %2443 = vmatpush1.msra.mxu0 0.0
    %2444 = vmatprep.subr.mxu0 0.0
    %2445 = vmatpush1.msra.mxu0 0.0
    %2446 = vmatprep.subr.mxu0 0.0
    %2447 = vmatpush1.msra.mxu0 0.0
    %2448 = vmatprep.subr.mxu0 0.0
    %2449 = vmatpush1.msra.mxu0 0.0
    %2450 = vmatprep.subr.mxu0 0.0
    %2451 = vmatpush1.msra.mxu0 0.0
    %2452 = vmatprep.subr.mxu0 0.0
    %2453 = vmatpush1.msra.mxu0 0.0
    %2454 = vmatprep.subr.mxu0 0.0
    %2455 = vmatpush1.msra.mxu0 0.0
    %2456 = vmatprep.subr.mxu0 0.0
    %2457 = vmatpush1.msra.mxu0 0.0
    %2458 = vmatprep.subr.mxu0 0.0
    %2459 = vmatpush1.msra.mxu0 0.0
    %2460 = vmatprep.subr.mxu0 0.0
    %2461 = vmatpush1.msra.mxu0 0.0
    %2462 = vmatprep.subr.mxu0 0.0
    %2463 = vmatpush1.msra.mxu0 0.0
    %2464 = vmatprep.subr.mxu0 0.0
    %2465 = vmatpush1.msra.mxu0 0.0
    %2466 = vmatprep.subr.mxu0 0.0
    %2467 = vmatpush1.msra.mxu0 0.0
    %2468 = vmatprep.subr.mxu0 0.0
    %2469 = vmatpush1.msra.mxu0 0.0
    %2470 = vmatprep.mubr.f32.mxu0 0.0
    %2471 = vmatmul.mubr.f32.gmra.mrb[0].mxu0 %v2401
    %v2472 = vpop.f32.mrb[0].mxu0
    %v2473 = vadd.f32 0.0, %v2472
    %v2474 = vpop.f32.mrb[0].mxu0
    %2475 = vmatprep.mubr.f32.mxu0 0.0
    %2476 = vmatmul.mubr.f32.gmra.mrb[0].mxu0 %v2404
    %v2477 = vpop.f32.mrb[0].mxu0
    %v2478 = vadd.f32 0.0, %v2477
    %v2479 = vpop.f32.mrb[0].mxu0
    %2480 = vdwg.mxu0
    %v2481 = vadd.f32 %v2189, %v2473
    %v2482 = vadd.f32 %v2194, %v2478
    %2483 = vrot.lane.b32.xlu0 %v1623, 104
    %v2484 = vpop.permute.xlu0 %2483
    %2485 = vrot.lane.b32.xlu0 %v1628, 104
    %v2486 = vpop.permute.xlu0 %2485
    %2487 = vrot.lane.b32.xlu0 %v1623, 72
    %v2488 = vpop.permute.xlu0 %2487
    %2489 = vrot.lane.b32.xlu0 %v1628, 72
    %v2490 = vpop.permute.xlu0 %2489
    %v2491 = vsel %vm136, %v2484, 0
    %v2493 = vsel %vm136, %v2486, 0
    %v2495 = vsel %vm136, %v2488, 0
    %v2497 = vsel %vm136, %v2490, 0
    %2499 = vmatprep.subr.mxu0 0.0
    %2500 = vmatpush1.xpose.msra.mxu0 %v2495
    %2501 = vmatprep.subr.mxu0 0.0
    %2502 = vmatpush1.xpose.msra.mxu0 %v2497
    %2503 = vmatprep.subr.mxu0 0.0
    %2504 = vmatpush1.xpose.msra.mxu0 0.0
    %2505 = vmatprep.subr.mxu0 0.0
    %2506 = vmatpush1.xpose.msra.mxu0 0.0
    %2507 = vmatprep.subr.mxu0 0.0
    %2508 = vmatpush1.xpose.msra.mxu0 0.0
    %2509 = vmatprep.subr.mxu0 0.0
    %2510 = vmatpush1.xpose.msra.mxu0 0.0
    %2511 = vmatprep.subr.mxu0 0.0
    %2512 = vmatpush1.xpose.msra.mxu0 0.0
    %2513 = vmatprep.subr.mxu0 0.0
    %2514 = vmatpush1.xpose.msra.mxu0 0.0
    %2515 = vmatprep.subr.mxu0 0.0
    %2516 = vmatpush1.xpose.msra.mxu0 0.0
    %2517 = vmatprep.subr.mxu0 0.0
    %2518 = vmatpush1.xpose.msra.mxu0 0.0
    %2519 = vmatprep.subr.mxu0 0.0
    %2520 = vmatpush1.xpose.msra.mxu0 0.0
    %2521 = vmatprep.subr.mxu0 0.0
    %2522 = vmatpush1.xpose.msra.mxu0 0.0
    %2523 = vmatprep.subr.mxu0 0.0
    %2524 = vmatpush1.xpose.msra.mxu0 0.0
    %2525 = vmatprep.subr.mxu0 0.0
    %2526 = vmatpush1.xpose.msra.mxu0 0.0
    %2527 = vmatprep.subr.mxu0 0.0
    %2528 = vmatpush1.xpose.msra.mxu0 0.0
    %2529 = vmatprep.subr.mxu0 0.0
    %2530 = vmatpush1.xpose.msra.mxu0 0.0
    %2531 = vmatprep.subr.mxu0 0.0
    %2532 = vmatpush1.xpose.msra.mxu0 0.0
    %2533 = vmatprep.subr.mxu0 0.0
    %2534 = vmatpush1.xpose.msra.mxu0 0.0
    %2535 = vmatprep.subr.mxu0 0.0
    %2536 = vmatpush1.xpose.msra.mxu0 0.0
    %2537 = vmatprep.subr.mxu0 0.0
    %2538 = vmatpush1.xpose.msra.mxu0 0.0
    %2539 = vmatprep.subr.mxu0 0.0
    %2540 = vmatpush1.xpose.msra.mxu0 0.0
    %2541 = vmatprep.subr.mxu0 0.0
    %2542 = vmatpush1.xpose.msra.mxu0 0.0
    %2543 = vmatprep.subr.mxu0 0.0
    %2544 = vmatpush1.xpose.msra.mxu0 0.0
    %2545 = vmatprep.subr.mxu0 0.0
    %2546 = vmatpush1.xpose.msra.mxu0 0.0
    %2547 = vmatprep.subr.mxu0 0.0
    %2548 = vmatpush1.xpose.msra.mxu0 0.0
    %2549 = vmatprep.subr.mxu0 0.0
    %2550 = vmatpush1.xpose.msra.mxu0 0.0
    %2551 = vmatprep.subr.mxu0 0.0
    %2552 = vmatpush1.xpose.msra.mxu0 0.0
    %2553 = vmatprep.subr.mxu0 0.0
    %2554 = vmatpush1.xpose.msra.mxu0 0.0
    %2555 = vmatprep.subr.mxu0 0.0
    %2556 = vmatpush1.xpose.msra.mxu0 0.0
    %2557 = vmatprep.subr.mxu0 0.0
    %2558 = vmatpush1.xpose.msra.mxu0 0.0
    %2559 = vmatprep.subr.mxu0 0.0
    %2560 = vmatpush1.xpose.msra.mxu0 0.0
    %2561 = vmatprep.subr.mxu0 0.0
    %2562 = vmatpush1.xpose.msra.mxu0 0.0
    %2563 = vmatprep.mubr.f32.mxu0 0.0
    %2564 = vmatmul.mubr.f32.gmra.mrb[0].mxu0 %v2491
    %v2565 = vpop.f32.mrb[0].mxu0
    %v2566 = vadd.f32 0.0, %v2565
    %v2567 = vpop.f32.mrb[0].mxu0
    %2568 = vmatprep.mubr.f32.mxu0 0.0
    %2569 = vmatmul.mubr.f32.gmra.mrb[0].mxu0 %v2493
    %v2570 = vpop.f32.mrb[0].mxu0
    %v2571 = vadd.f32 0.0, %v2570
    %v2572 = vpop.f32.mrb[0].mxu0
    %2573 = vdwg.mxu0
    %v2574 = vsel %vm220, %v2566, -inf
    %2575 = vmax.xlane.f32.xlu0 %v2574
    %v2576 = vpop.xlane.xlu0 %2575
    %v2577 = vsel %vm224, %v2571, -inf
    %2578 = vmax.xlane.f32.xlu0 %v2577
    %v2579 = vpop.xlane.xlu0 %2578
    %v2580 = vsub.f32 %v2566, %v2576
    %v2581 = vsub.f32 %v2571, %v2579
    %v2582 = vmul.f32 %v2580, 1.442695
    %v2583 = vpow.pop %v2582
    %v2584 = vmul.f32 %v2581, 1.442695
    %v2585 = vpow.pop %v2584
    %v2586 = vsel %vm220, %v2583, 0.0
    %2587 = vadd.xlane.f32.xlu0 %v2586
    %v2588 = vpop.xlane.xlu0 %2587
    %v2589 = vsel %vm224, %v2585, 0.0
    %2590 = vadd.xlane.f32.xlu0 %v2589
    %v2591 = vpop.xlane.xlu0 %2590
    %v2592 = vrcp.pop %v2588
    %v2593 = vrcp.pop %v2591
    %v2594 = vmul.f32 %v2583, %v2592
    %v2595 = vmul.f32 %v2585, %v2593
    %2596 = vrot.lane.b32.xlu0 %v1623, 40
    %v2597 = vpop.permute.xlu0 %2596
    %2598 = vrot.lane.b32.xlu0 %v1628, 40
    %v2599 = vpop.permute.xlu0 %2598
    %v2602 = vsel %vm220, %v2594, 0
    %v2605 = vsel %vm220, %v2595, 0
    %v2607 = vsel %vm255, %v2599, 0
    %2609 = vmatprep.subr.mxu0 0.0
    %2610 = vmatpush1.msra.mxu0 %v2597
    %2611 = vmatprep.subr.mxu0 0.0
    %2612 = vmatpush1.msra.mxu0 %v2607
    %2613 = vmatprep.subr.mxu0 0.0
    %2614 = vmatpush1.msra.mxu0 0.0
    %2615 = vmatprep.subr.mxu0 0.0
    %2616 = vmatpush1.msra.mxu0 0.0
    %2617 = vmatprep.subr.mxu0 0.0
    %2618 = vmatpush1.msra.mxu0 0.0
    %2619 = vmatprep.subr.mxu0 0.0
    %2620 = vmatpush1.msra.mxu0 0.0
    %2621 = vmatprep.subr.mxu0 0.0
    %2622 = vmatpush1.msra.mxu0 0.0
    %2623 = vmatprep.subr.mxu0 0.0
    %2624 = vmatpush1.msra.mxu0 0.0
    %2625 = vmatprep.subr.mxu0 0.0
    %2626 = vmatpush1.msra.mxu0 0.0
    %2627 = vmatprep.subr.mxu0 0.0
    %2628 = vmatpush1.msra.mxu0 0.0
    %2629 = vmatprep.subr.mxu0 0.0
    %2630 = vmatpush1.msra.mxu0 0.0
    %2631 = vmatprep.subr.mxu0 0.0
    %2632 = vmatpush1.msra.mxu0 0.0
    %2633 = vmatprep.subr.mxu0 0.0
    %2634 = vmatpush1.msra.mxu0 0.0
    %2635 = vmatprep.subr.mxu0 0.0
    %2636 = vmatpush1.msra.mxu0 0.0
    %2637 = vmatprep.subr.mxu0 0.0
    %2638 = vmatpush1.msra.mxu0 0.0
    %2639 = vmatprep.subr.mxu0 0.0
    %2640 = vmatpush1.msra.mxu0 0.0
    %2641 = vmatprep.subr.mxu0 0.0
    %2642 = vmatpush1.msra.mxu0 0.0
    %2643 = vmatprep.subr.mxu0 0.0
    %2644 = vmatpush1.msra.mxu0 0.0
    %2645 = vmatprep.subr.mxu0 0.0
    %2646 = vmatpush1.msra.mxu0 0.0
    %2647 = vmatprep.subr.mxu0 0.0
    %2648 = vmatpush1.msra.mxu0 0.0
    %2649 = vmatprep.subr.mxu0 0.0
    %2650 = vmatpush1.msra.mxu0 0.0
    %2651 = vmatprep.subr.mxu0 0.0
    %2652 = vmatpush1.msra.mxu0 0.0
    %2653 = vmatprep.subr.mxu0 0.0
    %2654 = vmatpush1.msra.mxu0 0.0
    %2655 = vmatprep.subr.mxu0 0.0
    %2656 = vmatpush1.msra.mxu0 0.0
    %2657 = vmatprep.subr.mxu0 0.0
    %2658 = vmatpush1.msra.mxu0 0.0
    %2659 = vmatprep.subr.mxu0 0.0
    %2660 = vmatpush1.msra.mxu0 0.0
    %2661 = vmatprep.subr.mxu0 0.0
    %2662 = vmatpush1.msra.mxu0 0.0
    %2663 = vmatprep.subr.mxu0 0.0
    %2664 = vmatpush1.msra.mxu0 0.0
    %2665 = vmatprep.subr.mxu0 0.0
    %2666 = vmatpush1.msra.mxu0 0.0
    %2667 = vmatprep.subr.mxu0 0.0
    %2668 = vmatpush1.msra.mxu0 0.0
    %2669 = vmatprep.subr.mxu0 0.0
    %2670 = vmatpush1.msra.mxu0 0.0
    %2671 = vmatprep.subr.mxu0 0.0
    %2672 = vmatpush1.msra.mxu0 0.0
    %2673 = vmatprep.mubr.f32.mxu0 0.0
    %2674 = vmatmul.mubr.f32.gmra.mrb[0].mxu0 %v2602
    %v2675 = vpop.f32.mrb[0].mxu0
    %v2676 = vadd.f32 0.0, %v2675
    %v2677 = vpop.f32.mrb[0].mxu0
    %2678 = vmatprep.mubr.f32.mxu0 0.0
    %2679 = vmatmul.mubr.f32.gmra.mrb[0].mxu0 %v2605
    %v2680 = vpop.f32.mrb[0].mxu0
    %v2681 = vadd.f32 0.0, %v2680
    %v2682 = vpop.f32.mrb[0].mxu0
    %2683 = vdwg.mxu0
    %s2684 = scalar_lea.vmem %s2, 56
    %v2685 = vld [vmem:[%s2684] sm:$0xff]
    %v2687 = vsel %vm136, %v2676, 0
    %v2690 = vsel %vm136, %v2681, 0
    %2692 = vmatprep.subr.mxu0 0.0
    %2693 = vmatpush1.msra.mxu0 %v2685
    %2694 = vmatprep.subr.mxu0 0.0
    %2695 = vmatpush1.msra.mxu0 0.0
    %2696 = vmatprep.subr.mxu0 0.0
    %2697 = vmatpush1.msra.mxu0 0.0
    %2698 = vmatprep.subr.mxu0 0.0
    %2699 = vmatpush1.msra.mxu0 0.0
    %2700 = vmatprep.subr.mxu0 0.0
    %2701 = vmatpush1.msra.mxu0 0.0
    %2702 = vmatprep.subr.mxu0 0.0
    %2703 = vmatpush1.msra.mxu0 0.0
    %2704 = vmatprep.subr.mxu0 0.0
    %2705 = vmatpush1.msra.mxu0 0.0
    %2706 = vmatprep.subr.mxu0 0.0
    %2707 = vmatpush1.msra.mxu0 0.0
    %2708 = vmatprep.subr.mxu0 0.0
    %2709 = vmatpush1.msra.mxu0 0.0
    %2710 = vmatprep.subr.mxu0 0.0
    %2711 = vmatpush1.msra.mxu0 0.0
    %2712 = vmatprep.subr.mxu0 0.0
    %2713 = vmatpush1.msra.mxu0 0.0
    %2714 = vmatprep.subr.mxu0 0.0
    %2715 = vmatpush1.msra.mxu0 0.0
    %2716 = vmatprep.subr.mxu0 0.0
    %2717 = vmatpush1.msra.mxu0 0.0
    %2718 = vmatprep.subr.mxu0 0.0
    %2719 = vmatpush1.msra.mxu0 0.0
    %2720 = vmatprep.subr.mxu0 0.0
    %2721 = vmatpush1.msra.mxu0 0.0
    %2722 = vmatprep.subr.mxu0 0.0
    %2723 = vmatpush1.msra.mxu0 0.0
    %2724 = vmatprep.subr.mxu0 0.0
    %2725 = vmatpush1.msra.mxu0 0.0
    %2726 = vmatprep.subr.mxu0 0.0
    %2727 = vmatpush1.msra.mxu0 0.0
    %2728 = vmatprep.subr.mxu0 0.0
    %2729 = vmatpush1.msra.mxu0 0.0
    %2730 = vmatprep.subr.mxu0 0.0
    %2731 = vmatpush1.msra.mxu0 0.0
    %2732 = vmatprep.subr.mxu0 0.0
    %2733 = vmatpush1.msra.mxu0 0.0
    %2734 = vmatprep.subr.mxu0 0.0
    %2735 = vmatpush1.msra.mxu0 0.0
    %2736 = vmatprep.subr.mxu0 0.0
    %2737 = vmatpush1.msra.mxu0 0.0
    %2738 = vmatprep.subr.mxu0 0.0
    %2739 = vmatpush1.msra.mxu0 0.0
    %2740 = vmatprep.subr.mxu0 0.0
    %2741 = vmatpush1.msra.mxu0 0.0
    %2742 = vmatprep.subr.mxu0 0.0
    %2743 = vmatpush1.msra.mxu0 0.0
    %2744 = vmatprep.subr.mxu0 0.0
    %2745 = vmatpush1.msra.mxu0 0.0
    %2746 = vmatprep.subr.mxu0 0.0
    %2747 = vmatpush1.msra.mxu0 0.0
    %2748 = vmatprep.subr.mxu0 0.0
    %2749 = vmatpush1.msra.mxu0 0.0
    %2750 = vmatprep.subr.mxu0 0.0
    %2751 = vmatpush1.msra.mxu0 0.0
    %2752 = vmatprep.subr.mxu0 0.0
    %2753 = vmatpush1.msra.mxu0 0.0
    %2754 = vmatprep.subr.mxu0 0.0
    %2755 = vmatpush1.msra.mxu0 0.0
    %2756 = vmatprep.mubr.f32.mxu0 0.0
    %2757 = vmatmul.mubr.f32.gmra.mrb[0].mxu0 %v2687
    %v2758 = vpop.f32.mrb[0].mxu0
    %v2759 = vadd.f32 0.0, %v2758
    %v2760 = vpop.f32.mrb[0].mxu0
    %2761 = vmatprep.mubr.f32.mxu0 0.0
    %2762 = vmatmul.mubr.f32.gmra.mrb[0].mxu0 %v2690
    %v2763 = vpop.f32.mrb[0].mxu0
    %v2764 = vadd.f32 0.0, %v2763
    %v2765 = vpop.f32.mrb[0].mxu0
    %2766 = vdwg.mxu0
    %v2767 = vadd.f32 %v2481, %v2759
    %v2768 = vadd.f32 %v2482, %v2764
    %v2769 = vlaneseq
    %v2770 = vshrl.u32 %v2769, 7
    %v2771 = vsub.s32 1, %v2770
    %v2772 = vrot.slane %v1540, %v2771
    %v2773 = vadd.f32 %v2767, %v2772
    %v2774 = vadd.f32 %v2768, %v2772
    %v2775 = vadd.f32 %v1537, %v2773
    %v2776 = vadd.f32 %v1538, %v2774
    %v2777 = vsel %vm48, %v2775, 0.0
    %2778 = vadd.xlane.f32.xlu0 %v2777
    %v2779 = vpop.xlane.xlu0 %2778
    %v2780 = vsel %vm1282, %v2776, 0.0
    %2781 = vadd.xlane.f32.xlu0 %v2780
    %v2782 = vpop.xlane.xlu0 %2781
    %v2783 = vmul.f32 %v2779, %v1286
    %v2784 = vmul.f32 %v2782, %v1286
    %v2785 = vsub.f32 %v2775, %v2783
    %v2786 = vsub.f32 %v2776, %v2784
    %v2787 = vmul.f32 %v2785, %v2785
    %v2788 = vmul.f32 %v2786, %v2786
    %v2789 = vsel %vm48, %v2787, 0.0
    %2790 = vadd.xlane.f32.xlu0 %v2789
    %v2791 = vpop.xlane.xlu0 %2790
    %v2792 = vsel %vm1282, %v2788, 0.0
    %2793 = vadd.xlane.f32.xlu0 %v2792
    %v2794 = vpop.xlane.xlu0 %2793
    %v2795 = vmul.f32 %v2791, %v1286
    %v2796 = vmul.f32 %v2794, %v1286
    %v2797 = vadd.f32 %v2795, 1e-05
    %v2798 = vadd.f32 %v2796, 1e-05
    %v2799 = vrsqrt.pop %v2797
    %v2800 = vrsqrt.pop %v2798
    %v2801 = vmul.f32 %v2785, %v2799
    %v2802 = vmul.f32 %v2786, %v2800
    %v2803 = vlaneseq
    %v2804 = vshrl.u32 %v2803, 7
    %v2805 = vsub.s32 4, %v2804
    %v2806 = vrot.slane %v1540, %v2805
    %v2807 = vmul.f32 %v2801, %v2806
    %v2808 = vmul.f32 %v2802, %v2806
    %v2809 = vlaneseq
    %v2810 = vshrl.u32 %v2809, 7
    %v2811 = vsub.s32 5, %v2810
    %v2812 = vrot.slane %v1540, %v2811
    %v2813 = vadd.f32 %v2807, %v2812
    %v2814 = vadd.f32 %v2808, %v2812
    %s2815 = scalar_lea.vmem %s3, 32
    %v2816 = vld [vmem:[%s2815] sm:$0xff]
    %v2817 = vld [vmem:[%s2815 + $0x8] sm:$0xff]
    %v2818 = vld [vmem:[%s2815 + $0x10] sm:$0xff]
    %v2819 = vld [vmem:[%s2815 + $0x18] sm:$0xff]
    %v2820 = vlaneseq
    %v2821 = vshrl.u32 %v2820, 7
    %v2822 = vsub.s32 2, %v2821
    %v2823 = vrot.slane %v1540, %v2822
    %v2825 = vsel %vm48, %v2813, 0
    %v2828 = vsel %vm48, %v2814, 0
    %2830 = vmatprep.subr.mxu0 0.0
    %2831 = vmatpush1.msra.mxu0 %v2816
    %2832 = vmatprep.subr.mxu0 0.0
    %2833 = vmatpush1.msra.mxu0 %v2817
    %2834 = vmatprep.subr.mxu0 0.0
    %2835 = vmatpush1.msra.mxu0 %v2818
    %2836 = vmatprep.subr.mxu0 0.0
    %2837 = vmatpush1.msra.mxu0 %v2819
    %2838 = vmatprep.subr.mxu0 0.0
    %2839 = vmatpush1.msra.mxu0 0.0
    %2840 = vmatprep.subr.mxu0 0.0
    %2841 = vmatpush1.msra.mxu0 0.0
    %2842 = vmatprep.subr.mxu0 0.0
    %2843 = vmatpush1.msra.mxu0 0.0
    %2844 = vmatprep.subr.mxu0 0.0
    %2845 = vmatpush1.msra.mxu0 0.0
    %2846 = vmatprep.subr.mxu0 0.0
    %2847 = vmatpush1.msra.mxu0 0.0
    %2848 = vmatprep.subr.mxu0 0.0
    %2849 = vmatpush1.msra.mxu0 0.0
    %2850 = vmatprep.subr.mxu0 0.0
    %2851 = vmatpush1.msra.mxu0 0.0
    %2852 = vmatprep.subr.mxu0 0.0
    %2853 = vmatpush1.msra.mxu0 0.0
    %2854 = vmatprep.subr.mxu0 0.0
    %2855 = vmatpush1.msra.mxu0 0.0
    %2856 = vmatprep.subr.mxu0 0.0
    %2857 = vmatpush1.msra.mxu0 0.0
    %2858 = vmatprep.subr.mxu0 0.0
    %2859 = vmatpush1.msra.mxu0 0.0
    %2860 = vmatprep.subr.mxu0 0.0
    %2861 = vmatpush1.msra.mxu0 0.0
    %2862 = vmatprep.subr.mxu0 0.0
    %2863 = vmatpush1.msra.mxu0 0.0
    %2864 = vmatprep.subr.mxu0 0.0
    %2865 = vmatpush1.msra.mxu0 0.0
    %2866 = vmatprep.subr.mxu0 0.0
    %2867 = vmatpush1.msra.mxu0 0.0
    %2868 = vmatprep.subr.mxu0 0.0
    %2869 = vmatpush1.msra.mxu0 0.0
    %2870 = vmatprep.subr.mxu0 0.0
    %2871 = vmatpush1.msra.mxu0 0.0
    %2872 = vmatprep.subr.mxu0 0.0
    %2873 = vmatpush1.msra.mxu0 0.0
    %2874 = vmatprep.subr.mxu0 0.0
    %2875 = vmatpush1.msra.mxu0 0.0
    %2876 = vmatprep.subr.mxu0 0.0
    %2877 = vmatpush1.msra.mxu0 0.0
    %2878 = vmatprep.subr.mxu0 0.0
    %2879 = vmatpush1.msra.mxu0 0.0
    %2880 = vmatprep.subr.mxu0 0.0
    %2881 = vmatpush1.msra.mxu0 0.0
    %2882 = vmatprep.subr.mxu0 0.0
    %2883 = vmatpush1.msra.mxu0 0.0
    %2884 = vmatprep.subr.mxu0 0.0
    %2885 = vmatpush1.msra.mxu0 0.0
    %2886 = vmatprep.subr.mxu0 0.0
    %2887 = vmatpush1.msra.mxu0 0.0
    %2888 = vmatprep.subr.mxu0 0.0
    %2889 = vmatpush1.msra.mxu0 0.0
    %2890 = vmatprep.subr.mxu0 0.0
    %2891 = vmatpush1.msra.mxu0 0.0
    %2892 = vmatprep.subr.mxu0 0.0
    %2893 = vmatpush1.msra.mxu0 0.0
    %2894 = vmatprep.mubr.f32.mxu0 0.0
    %2895 = vmatmul.mubr.f32.gmra.mrb[0].mxu0 %v2825
    %v2896 = vpop.f32.mrb[0].mxu0
    %v2897 = vadd.f32 %v2823, %v2896
    %v2898 = vpop.f32.mrb[0].mxu0
    %2899 = vmatprep.mubr.f32.mxu0 0.0
    %2900 = vmatmul.mubr.f32.gmra.mrb[0].mxu0 %v2828
    %v2901 = vpop.f32.mrb[0].mxu0
    %v2902 = vadd.f32 %v2823, %v2901
    %v2903 = vpop.f32.mrb[0].mxu0
    %2904 = vdwg.mxu0
    %v2905 = vmax.f32 %v2897, 0.0
    %v2906 = vmax.f32 %v2902, 0.0
    %s2907 = scalar_lea.vmem [#allocation2], 32
    %v2908 = vld [vmem:[%s2907] sm:$0xff]
    %v2909 = vld [vmem:[%s2907 + $0x8] sm:$0xff]
    %v2910 = vld [vmem:[%s2907 + $0x10] sm:$0xff]
    %v2911 = vld [vmem:[%s2907 + $0x18] sm:$0xff]
    %v2912 = vlaneseq
    %v2913 = vshrl.u32 %v2912, 7
    %v2914 = vsub.s32 3, %v2913
    %v2915 = vrot.slane %v1540, %v2914
    %v2917 = vsel %vm48, %v2905, 0
    %v2920 = vsel %vm48, %v2906, 0
    %2922 = vmatprep.subr.mxu0 0.0
    %2923 = vmatpush1.msra.mxu0 %v2908
    %2924 = vmatprep.subr.mxu0 0.0
    %2925 = vmatpush1.msra.mxu0 %v2909
    %2926 = vmatprep.subr.mxu0 0.0
    %2927 = vmatpush1.msra.mxu0 %v2910
    %2928 = vmatprep.subr.mxu0 0.0
    %2929 = vmatpush1.msra.mxu0 %v2911
    %2930 = vmatprep.subr.mxu0 0.0
    %2931 = vmatpush1.msra.mxu0 0.0
    %2932 = vmatprep.subr.mxu0 0.0
    %2933 = vmatpush1.msra.mxu0 0.0
    %2934 = vmatprep.subr.mxu0 0.0
    %2935 = vmatpush1.msra.mxu0 0.0
    %2936 = vmatprep.subr.mxu0 0.0
    %2937 = vmatpush1.msra.mxu0 0.0
    %2938 = vmatprep.subr.mxu0 0.0
    %2939 = vmatpush1.msra.mxu0 0.0
    %2940 = vmatprep.subr.mxu0 0.0
    %2941 = vmatpush1.msra.mxu0 0.0
    %2942 = vmatprep.subr.mxu0 0.0
    %2943 = vmatpush1.msra.mxu0 0.0
    %2944 = vmatprep.subr.mxu0 0.0
    %2945 = vmatpush1.msra.mxu0 0.0
    %2946 = vmatprep.subr.mxu0 0.0
    %2947 = vmatpush1.msra.mxu0 0.0
    %2948 = vmatprep.subr.mxu0 0.0
    %2949 = vmatpush1.msra.mxu0 0.0
    %2950 = vmatprep.subr.mxu0 0.0
    %2951 = vmatpush1.msra.mxu0 0.0
    %2952 = vmatprep.subr.mxu0 0.0
    %2953 = vmatpush1.msra.mxu0 0.0
    %2954 = vmatprep.subr.mxu0 0.0
    %2955 = vmatpush1.msra.mxu0 0.0
    %2956 = vmatprep.subr.mxu0 0.0
    %2957 = vmatpush1.msra.mxu0 0.0
    %2958 = vmatprep.subr.mxu0 0.0
    %2959 = vmatpush1.msra.mxu0 0.0
    %2960 = vmatprep.subr.mxu0 0.0
    %2961 = vmatpush1.msra.mxu0 0.0
    %2962 = vmatprep.subr.mxu0 0.0
    %2963 = vmatpush1.msra.mxu0 0.0
    %2964 = vmatprep.subr.mxu0 0.0
    %2965 = vmatpush1.msra.mxu0 0.0
    %2966 = vmatprep.subr.mxu0 0.0
    %2967 = vmatpush1.msra.mxu0 0.0
    %2968 = vmatprep.subr.mxu0 0.0
    %2969 = vmatpush1.msra.mxu0 0.0
    %2970 = vmatprep.subr.mxu0 0.0
    %2971 = vmatpush1.msra.mxu0 0.0
    %2972 = vmatprep.subr.mxu0 0.0
    %2973 = vmatpush1.msra.mxu0 0.0
    %2974 = vmatprep.subr.mxu0 0.0
    %2975 = vmatpush1.msra.mxu0 0.0
    %2976 = vmatprep.subr.mxu0 0.0
    %2977 = vmatpush1.msra.mxu0 0.0
    %2978 = vmatprep.subr.mxu0 0.0
    %2979 = vmatpush1.msra.mxu0 0.0
    %2980 = vmatprep.subr.mxu0 0.0
    %2981 = vmatpush1.msra.mxu0 0.0
    %2982 = vmatprep.subr.mxu0 0.0
    %2983 = vmatpush1.msra.mxu0 0.0
    %2984 = vmatprep.subr.mxu0 0.0
    %2985 = vmatpush1.msra.mxu0 0.0
    %2986 = vmatprep.mubr.f32.mxu0 0.0
    %2987 = vmatmul.mubr.f32.gmra.mrb[0].mxu0 %v2917
    %v2988 = vpop.f32.mrb[0].mxu0
    %v2989 = vadd.f32 %v2915, %v2988
    %v2990 = vpop.f32.mrb[0].mxu0
    %2991 = vmatprep.mubr.f32.mxu0 0.0
    %2992 = vmatmul.mubr.f32.gmra.mrb[0].mxu0 %v2920
    %v2993 = vpop.f32.mrb[0].mxu0
    %v2994 = vadd.f32 %v2915, %v2993
    %v2995 = vpop.f32.mrb[0].mxu0
    %2996 = vdwg.mxu0
    %v2997 = vadd.f32 %v2813, %v2989
    %v2998 = vadd.f32 %v2814, %v2994
    %v2999 = vsel %vm48, %v2997, 0.0
    %3000 = vadd.xlane.f32.xlu0 %v2999
    %v3001 = vpop.xlane.xlu0 %3000
    %v3002 = vsel %vm1282, %v2998, 0.0
    %3003 = vadd.xlane.f32.xlu0 %v3002
    %v3004 = vpop.xlane.xlu0 %3003
    %v3005 = vmul.f32 %v3001, %v1286
    %v3006 = vmul.f32 %v3004, %v1286
    %v3007 = vsub.f32 %v2997, %v3005
    %v3008 = vsub.f32 %v2998, %v3006
    %v3009 = vmul.f32 %v3007, %v3007
    %v3010 = vmul.f32 %v3008, %v3008
    %v3011 = vsel %vm48, %v3009, 0.0
    %3012 = vadd.xlane.f32.xlu0 %v3011
    %v3013 = vpop.xlane.xlu0 %3012
    %v3014 = vsel %vm1282, %v3010, 0.0
    %3015 = vadd.xlane.f32.xlu0 %v3014
    %v3016 = vpop.xlane.xlu0 %3015
    %v3017 = vmul.f32 %v3013, %v1286
    %v3018 = vmul.f32 %v3016, %v1286
    %v3019 = vadd.f32 %v3017, 1e-05
    %v3020 = vadd.f32 %v3018, 1e-05
    %v3021 = vrsqrt.pop %v3019
    %v3022 = vrsqrt.pop %v3020
    %v3023 = vmul.f32 %v3007, %v3021
    %v3024 = vmul.f32 %v3008, %v3022
    %v3025 = vlaneseq
    %v3026 = vshrl.u32 %v3025, 7
    %v3027 = vsub.s32 6, %v3026
    %v3028 = vrot.slane %v1540, %v3027
    %v3029 = vmul.f32 %v3023, %v3028
    %v3030 = vmul.f32 %v3024, %v3028
    %v3031 = vlaneseq
    %v3032 = vshrl.u32 %v3031, 7
    %v3033 = vsub.s32 7, %v3032
    %v3034 = vrot.slane %v1540, %v3033
    %v3035 = vadd.f32 %v3029, %v3034
    %v3036 = vadd.f32 %v3030, %v3034
    %3037 = vst.msk [vmem:[%s6] sm:$0xff] %vm48, %v3035
    %3038 = vst.msk [vmem:[%s6 + $0x8] sm:$0xf] %vm1282, %v3036
    // Predicated region
    $region30: #{transformer_forward.1} parent=1 // pred_check
      _
    $region31: #{transformer_forward.1} parent=1 // pred_check_branch
      %3040 = sbr.rel (0) target = $region33
    $region32: #{transformer_forward.1} parent=1 // pred_region
      _
    $region33: #{transformer_forward.1} parent=1 // pred_fallthru
      _
    // Predicated region
    $region34: #{transformer_forward.1} parent=1 // pred_check
      _
    $region35: #{transformer_forward.1} parent=1 // pred_check_branch
      %3042 = sbr.rel (0) target = $region37
    $region36: #{transformer_forward.1} parent=1 // pred_region
      _
    $region37: #{transformer_forward.1} parent=1 // pred_fallthru
      _
    %3043 = vsyncpa [#allocation3], 1

</llo_original>
